<compile_context>
chip_gen: v6e
topology: v6e:2x2x1
jax: 0.10.0
libtpu: 0.0.40
codegen_flags: <defaults>
</compile_context>

<pallas_src>
import math

import jax
import jax.numpy as jnp
from jax.experimental import pallas as pl
from jax.experimental.pallas import tpu as pltpu


# ----------------------------- config (small) -------------------------------
VOCAB_SIZE = 50
D_MODEL = 32
NHEAD = 4
HEAD_DIM = D_MODEL // NHEAD
DIM_FF = 64
NUM_LAYERS = 2
MAX_SEQ_LEN = 16
LN_EPS = 1e-5
NEG_INF = -1e30  # stands in for float('-inf') in the causal mask
V_PAD = pl.cdiv(VOCAB_SIZE, 128) * 128  # lane-dense fc_out width

# --- packed weight slab layout: (NUM_LAYERS, W_ROWS, W_COLS) ----------------
# every weight occupies a row band starting at a multiple of 8 sublanes, lane 0
R_SQKV, R_SO, R_CQ, R_CKV, R_CO, R_W1, R_W2 = 0, 32, 64, 96, 128, 160, 192
W_ROWS = 256
W_COLS = 3 * D_MODEL  # 96

# --- packed bias / LayerNorm slab layout: (NUM_LAYERS, V_ROWS, W_COLS) ------
(V_B_SQKV, V_B_SO, V_B_CQ, V_B_CKV, V_B_CO, V_B1, V_B2,
 V_N1W, V_N1B, V_N2W, V_N2B, V_N3W, V_N3B) = range(13)
V_ROWS = 16

# --- fc_out slab: rows 0..D-1 = fc_w, row D = fc_b, padded rows -------------
FC_ROWS = 40


# ----------------------------- kernel helpers --------------------------------
def _layernorm(x, w, b):
    mu = jnp.mean(x, axis=-1, keepdims=True)
    xc = x - mu
    var = jnp.mean(xc * xc, axis=-1, keepdims=True)
    return xc * jax.lax.rsqrt(var + LN_EPS) * w + b


def _dot(a, b):
    # Explicit precision: bf16 operands, f32 accumulation (equivalent class to
    # the default TPU f32 matmul truncation; halves operand load traffic).
    return jnp.dot(a.astype(jnp.bfloat16), b.astype(jnp.bfloat16),
                   preferred_element_type=jnp.float32)


def _mha(q, k, v, w_o, b_o, mask):
    """q: (Tq, D) (scale already folded into W_q), k/v: (Tk, D) -> (Tq, D)."""
    heads = []
    for h in range(NHEAD):  # static unroll (NHEAD = 4)
        sl = slice(h * HEAD_DIM, (h + 1) * HEAD_DIM)
        qh = q[:, sl].astype(jnp.bfloat16)
        kh = k[:, sl].astype(jnp.bfloat16)
        s = jax.lax.dot_general(qh, kh, (((1,), (1,)), ((), ())),
                                preferred_element_type=jnp.float32)  # (Tq, Tk)
        if mask is not None:
            s = s + mask
        m = jnp.max(s, axis=-1, keepdims=True)
        e = jnp.exp(s - m)
        p = e / jnp.sum(e, axis=-1, keepdims=True)  # exact softmax
        heads.append(_dot(p, v[:, sl]))             # (Tq, head_dim)
    o = jnp.concatenate(heads, axis=-1)             # (Tq, D)
    # single K=D dot with the full output projection (one MXU push)
    return _dot(o, w_o) + b_o


# ----------------------------- fused kernel ----------------------------------
def fused_decoder_kernel(x_ref, mem_ref, w_ref, v_ref, fc_ref, o_ref):
    T, D = x_ref.shape
    x = x_ref[...]        # (T, D) — one batch element per grid step
    mem = mem_ref[...]    # (S, D)

    # causal mask built in-kernel (iota + compare; no HBM operand, no broadcast)
    r = jax.lax.broadcasted_iota(jnp.int32, (T, T), 0)
    c = jax.lax.broadcasted_iota(jnp.int32, (T, T), 1)
    mask = jnp.where(c > r, NEG_INF, 0.0).astype(jnp.float32)

    for li in range(NUM_LAYERS):  # static unroll (NUM_LAYERS = 2)
        # static row-band / lane-0 slices of the packed slabs
        w_sqkv = w_ref[li, R_SQKV:R_SQKV + D, :]
        w_so = w_ref[li, R_SO:R_SO + D, :D]
        w_cq = w_ref[li, R_CQ:R_CQ + D, :D]
        w_ckv = w_ref[li, R_CKV:R_CKV + D, :2 * D]
        w_co = w_ref[li, R_CO:R_CO + D, :D]
        w1 = w_ref[li, R_W1:R_W1 + D, :DIM_FF]
        w2 = w_ref[li, R_W2:R_W2 + DIM_FF, :D]

        b_sqkv = v_ref[li, V_B_SQKV:V_B_SQKV + 1, :]
        b_so = v_ref[li, V_B_SO:V_B_SO + 1, :D]
        b_cq = v_ref[li, V_B_CQ:V_B_CQ + 1, :D]
        b_ckv = v_ref[li, V_B_CKV:V_B_CKV + 1, :2 * D]
        b_co = v_ref[li, V_B_CO:V_B_CO + 1, :D]
        b1 = v_ref[li, V_B1:V_B1 + 1, :DIM_FF]
        b2 = v_ref[li, V_B2:V_B2 + 1, :D]
        n1w = v_ref[li, V_N1W:V_N1W + 1, :D]
        n1b = v_ref[li, V_N1B:V_N1B + 1, :D]
        n2w = v_ref[li, V_N2W:V_N2W + 1, :D]
        n2b = v_ref[li, V_N2B:V_N2B + 1, :D]
        n3w = v_ref[li, V_N3W:V_N3W + 1, :D]
        n3b = v_ref[li, V_N3B:V_N3B + 1, :D]

        # --- self-attention block (post-norm, PyTorch default)
        qkv = _dot(x, w_sqkv) + b_sqkv  # fused QKV: one matmul instead of three
        sa = _mha(qkv[:, :D], qkv[:, D:2 * D], qkv[:, 2 * D:], w_so, b_so, mask)
        x = _layernorm(x + sa, n1w, n1b)

        # --- cross-attention block (query = tgt, key/value = encoder memory)
        q = _dot(x, w_cq) + b_cq
        kv = _dot(mem, w_ckv) + b_ckv   # fused KV
        ca = _mha(q, kv[:, :D], kv[:, D:], w_co, b_co, None)
        x = _layernorm(x + ca, n2w, n2b)

        # --- feed-forward block (relu activation, PyTorch default)
        h = jnp.maximum(_dot(x, w1) + b1, 0.0)
        ff = _dot(h, w2) + b2
        x = _layernorm(x + ff, n3w, n3b)

    # final vocab projection; lane width padded to 128 -> unmasked full-width vst
    fc_w = fc_ref[:D, :]
    fc_b = fc_ref[D:D + 1, :]
    o_ref[...] = _dot(x, fc_w) + fc_b


# ----------------------------- wrapper ----------------------------------------
@jax.jit
def decoder_transformer_forward(packed, encoder_out, tgt):
    """packed: output of pack_params; encoder_out: (B,S,D) f32; tgt: (B,T) int32."""
    B, T = tgt.shape
    S = encoder_out.shape[1]
    D = D_MODEL

    # embedding + positional encoding (gather — plain JAX glue)
    x = packed["embedding"][tgt] + packed["pos"][None, :T, :]
    # flatten batch at the HBM boundary (free reshape; no in-kernel relayout)
    x = x.astype(jnp.float32).reshape(B * T, D)
    mem = encoder_out.astype(jnp.float32).reshape(B * S, D)

    wslab, vslab, fcslab = packed["wslab"], packed["vslab"], packed["fcslab"]

    logits = pl.pallas_call(
        fused_decoder_kernel,
        grid=(B,),
        in_specs=[
            pl.BlockSpec((T, D), lambda b: (b, 0)),          # x: per-batch block
            pl.BlockSpec((S, D), lambda b: (b, 0)),          # memory: per-batch
            pl.BlockSpec(wslab.shape, lambda b: (0, 0, 0)),  # resident weight slab
            pl.BlockSpec(vslab.shape, lambda b: (0, 0, 0)),  # resident bias/LN slab
            pl.BlockSpec(fcslab.shape, lambda b: (0, 0)),    # resident fc slab
        ],
        out_specs=pl.BlockSpec((T, V_PAD), lambda b: (b, 0)),
        out_shape=jax.ShapeDtypeStruct((B * T, V_PAD), jnp.float32),
        compiler_params=pltpu.CompilerParams(
            dimension_semantics=("parallel",)),  # both TCs on v7x; loop elsewhere
    )(x, mem, wslab, vslab, fcslab)

    return logits[:, :VOCAB_SIZE].reshape(B, T, VOCAB_SIZE)


# ----------------------------- deterministic init ----------------------------
def _init_linear(key, fan_in, fan_out):
    kw, kb = jax.random.split(key)
    bound = 1.0 / math.sqrt(fan_in)
    w = jax.random.uniform(kw, (fan_in, fan_out), jnp.float32, -bound, bound)
    b = jax.random.uniform(kb, (1, fan_out), jnp.float32, -bound, bound)
    return w, b


def init_params(key):
    keys = jax.random.split(key, 3 + NUM_LAYERS)
    params = {
        "embedding": jax.random.normal(keys[0], (VOCAB_SIZE, D_MODEL), jnp.float32),
        "pos": jax.random.normal(keys[1], (MAX_SEQ_LEN, D_MODEL), jnp.float32),
    }
    params["fc_w"], params["fc_b"] = _init_linear(keys[2], D_MODEL, VOCAB_SIZE)

    layers = []
    for li in range(NUM_LAYERS):
        lk = jax.random.split(keys[3 + li], 7)
        lp = {}
        lp["w_sqkv"], lp["b_sqkv"] = _init_linear(lk[0], D_MODEL, 3 * D_MODEL)
        lp["w_so"], lp["b_so"] = _init_linear(lk[1], D_MODEL, D_MODEL)
        lp["w_cq"], lp["b_cq"] = _init_linear(lk[2], D_MODEL, D_MODEL)
        lp["w_ckv"], lp["b_ckv"] = _init_linear(lk[3], D_MODEL, 2 * D_MODEL)
        lp["w_co"], lp["b_co"] = _init_linear(lk[4], D_MODEL, D_MODEL)
        lp["w1"], lp["b1"] = _init_linear(lk[5], D_MODEL, DIM_FF)
        lp["w2"], lp["b2"] = _init_linear(lk[6], DIM_FF, D_MODEL)
        for n in ("n1", "n2", "n3"):
            lp[n + "w"] = jnp.ones((1, D_MODEL), jnp.float32)
            lp[n + "b"] = jnp.zeros((1, D_MODEL), jnp.float32)
        layers.append(lp)
    params["layers"] = layers
    return params


def pack_params(params):
    """One-time packing: 26 small operands -> 3 slabs (+ embedding/pos tables)."""
    scale = 1.0 / math.sqrt(HEAD_DIM)
    wslab = jnp.zeros((NUM_LAYERS, W_ROWS, W_COLS), jnp.float32)
    vslab = jnp.zeros((NUM_LAYERS, V_ROWS, W_COLS), jnp.float32)

    for li, lp in enumerate(params["layers"]):
        # fold 1/sqrt(head_dim) into the Q projections (weights and biases)
        w_sqkv = lp["w_sqkv"].at[:, :D_MODEL].multiply(scale)
        b_sqkv = lp["b_sqkv"].at[:, :D_MODEL].multiply(scale)
        w_cq = lp["w_cq"] * scale
        b_cq = lp["b_cq"] * scale

        for r0, w in ((R_SQKV, w_sqkv), (R_SO, lp["w_so"]), (R_CQ, w_cq),
                      (R_CKV, lp["w_ckv"]), (R_CO, lp["w_co"]),
                      (R_W1, lp["w1"]), (R_W2, lp["w2"])):
            wslab = wslab.at[li, r0:r0 + w.shape[0], :w.shape[1]].set(w)

        for r, v in ((V_B_SQKV, b_sqkv), (V_B_SO, lp["b_so"]), (V_B_CQ, b_cq),
                     (V_B_CKV, lp["b_ckv"]), (V_B_CO, lp["b_co"]),
                     (V_B1, lp["b1"]), (V_B2, lp["b2"]),
                     (V_N1W, lp["n1w"]), (V_N1B, lp["n1b"]),
                     (V_N2W, lp["n2w"]), (V_N2B, lp["n2b"]),
                     (V_N3W, lp["n3w"]), (V_N3B, lp["n3b"])):
            vslab = vslab.at[li, r, :v.shape[1]].set(v[0])

    fcslab = jnp.zeros((FC_ROWS, V_PAD), jnp.float32)
    fcslab = fcslab.at[:D_MODEL, :VOCAB_SIZE].set(params["fc_w"])
    fcslab = fcslab.at[D_MODEL, :VOCAB_SIZE].set(params["fc_b"][0])

    return {"embedding": params["embedding"], "pos": params["pos"],
            "wslab": wslab, "vslab": vslab, "fcslab": fcslab}


# ----------------------------- main ------------------------------------------
if __name__ == "__main__":
    key = jax.random.PRNGKey(0)
    kp, ke, kt = jax.random.split(key, 3)

    B, T, S = 2, 8, 8
    params = init_params(kp)
    packed = pack_params(params)   # one-time packing / padding (not per call)
    encoder_out = jax.random.normal(ke, (B, S, D_MODEL), jnp.float32)
    tgt = jax.random.randint(kt, (B, T), 0, VOCAB_SIZE, dtype=jnp.int32)

    logits = decoder_transformer_forward(packed, encoder_out, tgt)
    jax.block_until_ready(logits)

    assert logits.shape == (B, T, VOCAB_SIZE)
    assert bool(jnp.all(jnp.isfinite(logits)))
    print("KERNEL_OK")
</pallas_src>

<mosaic_0001>
module attributes {stable_mosaic.version = 11 : i64} {
  func.func @fused_decoder_kernel(%arg0: i32, %arg1: memref<8x32xf32, #tpu.memory_space<vmem>>, %arg2: memref<8x32xf32, #tpu.memory_space<vmem>>, %arg3: memref<2x256x96xf32, #tpu.memory_space<vmem>>, %arg4: memref<2x16x96xf32, #tpu.memory_space<vmem>>, %arg5: memref<40x128xf32, #tpu.memory_space<vmem>>, %arg6: memref<8x128xf32, #tpu.memory_space<vmem>>) attributes {dimension_semantics = [#tpu.dimension_semantics<parallel>], iteration_bounds = array<i64: 2>, scalar_prefetch = 0 : i64, scratch_operands = 0 : i64, tpu.core_type = #tpu.core_type<tc>, window_params = [{transform_indices = @transform_0, window_bounds = array<i64: 8, 32>}, {transform_indices = @transform_1, window_bounds = array<i64: 8, 32>}, {pipeline_mode = #tpu.pipeline_mode<synchronous>, transform_indices = @transform_2, window_bounds = array<i64: 2, 256, 96>}, {pipeline_mode = #tpu.pipeline_mode<synchronous>, transform_indices = @transform_3, window_bounds = array<i64: 2, 16, 96>}, {pipeline_mode = #tpu.pipeline_mode<synchronous>, transform_indices = @transform_4, window_bounds = array<i64: 40, 128>}, {transform_indices = @transform_5, window_bounds = array<i64: 8, 128>}]} {
    %c0 = arith.constant 0 : index
    %c0_0 = arith.constant 0 : index
    %0 = vector.load %arg1[%c0, %c0_0] : memref<8x32xf32, #tpu.memory_space<vmem>>, vector<8x32xf32>
    %c0_1 = arith.constant 0 : index
    %c0_2 = arith.constant 0 : index
    %1 = vector.load %arg2[%c0_1, %c0_2] : memref<8x32xf32, #tpu.memory_space<vmem>>, vector<8x32xf32>
    %2 = tpu.iota {dimensions = array<i32: 0>} : vector<8x8xi32>
    %3 = tpu.iota {dimensions = array<i32: 1>} : vector<8x8xi32>
    %4 = arith.cmpi sgt, %3, %2 : vector<8x8xi32>
    %cst = arith.constant -1.000000e+30 : f32
    %cst_3 = arith.constant 0.000000e+00 : f32
    %5 = vector.broadcast %cst : f32 to vector<8x8xf32>
    %6 = vector.broadcast %cst_3 : f32 to vector<8x8xf32>
    %7 = arith.select %4, %5, %6 : vector<8x8xi1>, vector<8x8xf32>
    %c0_4 = arith.constant 0 : index
    %c0_5 = arith.constant 0 : index
    %c0_6 = arith.constant 0 : index
    %8 = vector.load %arg3[%c0_4, %c0_5, %c0_6] : memref<2x256x96xf32, #tpu.memory_space<vmem>>, vector<1x32x96xf32>
    %9 = vector.shape_cast %8 : vector<1x32x96xf32> to vector<32x96xf32>
    %c0_7 = arith.constant 0 : index
    %c32 = arith.constant 32 : index
    %c0_8 = arith.constant 0 : index
    %10 = vector.load %arg3[%c0_7, %c32, %c0_8] : memref<2x256x96xf32, #tpu.memory_space<vmem>>, vector<1x32x32xf32>
    %11 = vector.shape_cast %10 : vector<1x32x32xf32> to vector<32x32xf32>
    %c0_9 = arith.constant 0 : index
    %c64 = arith.constant 64 : index
    %c0_10 = arith.constant 0 : index
    %12 = vector.load %arg3[%c0_9, %c64, %c0_10] : memref<2x256x96xf32, #tpu.memory_space<vmem>>, vector<1x32x32xf32>
    %13 = vector.shape_cast %12 : vector<1x32x32xf32> to vector<32x32xf32>
    %c0_11 = arith.constant 0 : index
    %c96 = arith.constant 96 : index
    %c0_12 = arith.constant 0 : index
    %14 = vector.load %arg3[%c0_11, %c96, %c0_12] : memref<2x256x96xf32, #tpu.memory_space<vmem>>, vector<1x32x64xf32>
    %15 = vector.shape_cast %14 : vector<1x32x64xf32> to vector<32x64xf32>
    %c0_13 = arith.constant 0 : index
    %c128 = arith.constant 128 : index
    %c0_14 = arith.constant 0 : index
    %16 = vector.load %arg3[%c0_13, %c128, %c0_14] : memref<2x256x96xf32, #tpu.memory_space<vmem>>, vector<1x32x32xf32>
    %17 = vector.shape_cast %16 : vector<1x32x32xf32> to vector<32x32xf32>
    %c0_15 = arith.constant 0 : index
    %c160 = arith.constant 160 : index
    %c0_16 = arith.constant 0 : index
    %18 = vector.load %arg3[%c0_15, %c160, %c0_16] : memref<2x256x96xf32, #tpu.memory_space<vmem>>, vector<1x32x64xf32>
    %19 = vector.shape_cast %18 : vector<1x32x64xf32> to vector<32x64xf32>
    %c0_17 = arith.constant 0 : index
    %c192 = arith.constant 192 : index
    %c0_18 = arith.constant 0 : index
    %20 = vector.load %arg3[%c0_17, %c192, %c0_18] : memref<2x256x96xf32, #tpu.memory_space<vmem>>, vector<1x64x32xf32>
    %21 = vector.shape_cast %20 : vector<1x64x32xf32> to vector<64x32xf32>
    %c0_19 = arith.constant 0 : index
    %c0_20 = arith.constant 0 : index
    %c0_21 = arith.constant 0 : index
    %22 = vector.load %arg4[%c0_19, %c0_20, %c0_21] : memref<2x16x96xf32, #tpu.memory_space<vmem>>, vector<1x1x96xf32>
    %23 = vector.shape_cast %22 : vector<1x1x96xf32> to vector<1x96xf32>
    %c0_22 = arith.constant 0 : index
    %c1 = arith.constant 1 : index
    %c0_23 = arith.constant 0 : index
    %24 = vector.load %arg4[%c0_22, %c1, %c0_23] : memref<2x16x96xf32, #tpu.memory_space<vmem>>, vector<1x1x32xf32>
    %25 = vector.shape_cast %24 : vector<1x1x32xf32> to vector<1x32xf32>
    %c0_24 = arith.constant 0 : index
    %c2 = arith.constant 2 : index
    %c0_25 = arith.constant 0 : index
    %26 = vector.load %arg4[%c0_24, %c2, %c0_25] : memref<2x16x96xf32, #tpu.memory_space<vmem>>, vector<1x1x32xf32>
    %27 = vector.shape_cast %26 : vector<1x1x32xf32> to vector<1x32xf32>
    %c0_26 = arith.constant 0 : index
    %c3 = arith.constant 3 : index
    %c0_27 = arith.constant 0 : index
    %28 = vector.load %arg4[%c0_26, %c3, %c0_27] : memref<2x16x96xf32, #tpu.memory_space<vmem>>, vector<1x1x64xf32>
    %29 = vector.shape_cast %28 : vector<1x1x64xf32> to vector<1x64xf32>
    %c0_28 = arith.constant 0 : index
    %c4 = arith.constant 4 : index
    %c0_29 = arith.constant 0 : index
    %30 = vector.load %arg4[%c0_28, %c4, %c0_29] : memref<2x16x96xf32, #tpu.memory_space<vmem>>, vector<1x1x32xf32>
    %31 = vector.shape_cast %30 : vector<1x1x32xf32> to vector<1x32xf32>
    %c0_30 = arith.constant 0 : index
    %c5 = arith.constant 5 : index
    %c0_31 = arith.constant 0 : index
    %32 = vector.load %arg4[%c0_30, %c5, %c0_31] : memref<2x16x96xf32, #tpu.memory_space<vmem>>, vector<1x1x64xf32>
    %33 = vector.shape_cast %32 : vector<1x1x64xf32> to vector<1x64xf32>
    %c0_32 = arith.constant 0 : index
    %c6 = arith.constant 6 : index
    %c0_33 = arith.constant 0 : index
    %34 = vector.load %arg4[%c0_32, %c6, %c0_33] : memref<2x16x96xf32, #tpu.memory_space<vmem>>, vector<1x1x32xf32>
    %35 = vector.shape_cast %34 : vector<1x1x32xf32> to vector<1x32xf32>
    %c0_34 = arith.constant 0 : index
    %c7 = arith.constant 7 : index
    %c0_35 = arith.constant 0 : index
    %36 = vector.load %arg4[%c0_34, %c7, %c0_35] : memref<2x16x96xf32, #tpu.memory_space<vmem>>, vector<1x1x32xf32>
    %37 = vector.shape_cast %36 : vector<1x1x32xf32> to vector<1x32xf32>
    %c0_36 = arith.constant 0 : index
    %c8 = arith.constant 8 : index
    %c0_37 = arith.constant 0 : index
    %38 = vector.load %arg4[%c0_36, %c8, %c0_37] : memref<2x16x96xf32, #tpu.memory_space<vmem>>, vector<1x1x32xf32>
    %39 = vector.shape_cast %38 : vector<1x1x32xf32> to vector<1x32xf32>
    %c0_38 = arith.constant 0 : index
    %c9 = arith.constant 9 : index
    %c0_39 = arith.constant 0 : index
    %40 = vector.load %arg4[%c0_38, %c9, %c0_39] : memref<2x16x96xf32, #tpu.memory_space<vmem>>, vector<1x1x32xf32>
    %41 = vector.shape_cast %40 : vector<1x1x32xf32> to vector<1x32xf32>
    %c0_40 = arith.constant 0 : index
    %c10 = arith.constant 10 : index
    %c0_41 = arith.constant 0 : index
    %42 = vector.load %arg4[%c0_40, %c10, %c0_41] : memref<2x16x96xf32, #tpu.memory_space<vmem>>, vector<1x1x32xf32>
    %43 = vector.shape_cast %42 : vector<1x1x32xf32> to vector<1x32xf32>
    %c0_42 = arith.constant 0 : index
    %c11 = arith.constant 11 : index
    %c0_43 = arith.constant 0 : index
    %44 = vector.load %arg4[%c0_42, %c11, %c0_43] : memref<2x16x96xf32, #tpu.memory_space<vmem>>, vector<1x1x32xf32>
    %45 = vector.shape_cast %44 : vector<1x1x32xf32> to vector<1x32xf32>
    %c0_44 = arith.constant 0 : index
    %c12 = arith.constant 12 : index
    %c0_45 = arith.constant 0 : index
    %46 = vector.load %arg4[%c0_44, %c12, %c0_45] : memref<2x16x96xf32, #tpu.memory_space<vmem>>, vector<1x1x32xf32>
    %47 = vector.shape_cast %46 : vector<1x1x32xf32> to vector<1x32xf32>
    %48 = arith.truncf %0 : vector<8x32xf32> to vector<8x32xbf16>
    %49 = arith.truncf %9 : vector<32x96xf32> to vector<32x96xbf16>
    %cst_46 = arith.constant dense<0.000000e+00> : vector<8x96xf32>
    %50 = tpu.matmul %48, %49, %cst_46 {dimension_numbers = #tpu.dot_dimension_numbers<[1], [0], [0], [1], [0, 0, 1, 1], [], []>} : vector<8x32xbf16>, vector<32x96xbf16>, vector<8x96xf32> -> vector<8x96xf32>
    %51 = vector.broadcast %23 : vector<1x96xf32> to vector<8x96xf32>
    %52 = arith.addf %50, %51 : vector<8x96xf32>
    %53 = vector.extract_strided_slice %52 {offsets = [0, 0], sizes = [8, 32], strides = [1, 1]} : vector<8x96xf32> to vector<8x32xf32>
    %54 = vector.extract_strided_slice %52 {offsets = [0, 32], sizes = [8, 32], strides = [1, 1]} : vector<8x96xf32> to vector<8x32xf32>
    %55 = vector.extract_strided_slice %52 {offsets = [0, 64], sizes = [8, 32], strides = [1, 1]} : vector<8x96xf32> to vector<8x32xf32>
    %56 = vector.extract_strided_slice %53 {offsets = [0, 0], sizes = [8, 8], strides = [1, 1]} : vector<8x32xf32> to vector<8x8xf32>
    %57 = arith.truncf %56 : vector<8x8xf32> to vector<8x8xbf16>
    %58 = vector.extract_strided_slice %54 {offsets = [0, 0], sizes = [8, 8], strides = [1, 1]} : vector<8x32xf32> to vector<8x8xf32>
    %59 = arith.truncf %58 : vector<8x8xf32> to vector<8x8xbf16>
    %cst_47 = arith.constant dense<0.000000e+00> : vector<8x8xf32>
    %60 = tpu.matmul %57, %59, %cst_47 {dimension_numbers = #tpu.dot_dimension_numbers<[1], [1], [0], [0], [0, 0, 1, 0], [], []>} : vector<8x8xbf16>, vector<8x8xbf16>, vector<8x8xf32> -> vector<8x8xf32>
    %61 = arith.addf %60, %7 : vector<8x8xf32>
    %cst_48 = arith.constant dense<0xFF800000> : vector<8xf32>
    %62 = vector.multi_reduction <maximumf>, %61, %cst_48 [1] : vector<8x8xf32> to vector<8xf32>
    %63 = vector.shape_cast %62 : vector<8xf32> to vector<8x1xf32>
    %64 = vector.broadcast %63 : vector<8x1xf32> to vector<8x8xf32>
    %65 = arith.subf %61, %64 : vector<8x8xf32>
    %66 = math.exp %65 : vector<8x8xf32>
    %cst_49 = arith.constant dense<0.000000e+00> : vector<8xf32>
    %67 = vector.multi_reduction <add>, %66, %cst_49 [1] : vector<8x8xf32> to vector<8xf32>
    %68 = vector.shape_cast %67 : vector<8xf32> to vector<8x1xf32>
    %69 = vector.broadcast %68 : vector<8x1xf32> to vector<8x8xf32>
    %70 = arith.divf %66, %69 : vector<8x8xf32>
    %71 = vector.extract_strided_slice %55 {offsets = [0, 0], sizes = [8, 8], strides = [1, 1]} : vector<8x32xf32> to vector<8x8xf32>
    %72 = arith.truncf %70 : vector<8x8xf32> to vector<8x8xbf16>
    %73 = arith.truncf %71 : vector<8x8xf32> to vector<8x8xbf16>
    %cst_50 = arith.constant dense<0.000000e+00> : vector<8x8xf32>
    %74 = tpu.matmul %72, %73, %cst_50 {dimension_numbers = #tpu.dot_dimension_numbers<[1], [0], [0], [1], [0, 0, 1, 1], [], []>} : vector<8x8xbf16>, vector<8x8xbf16>, vector<8x8xf32> -> vector<8x8xf32>
    %75 = vector.extract_strided_slice %53 {offsets = [0, 8], sizes = [8, 8], strides = [1, 1]} : vector<8x32xf32> to vector<8x8xf32>
    %76 = arith.truncf %75 : vector<8x8xf32> to vector<8x8xbf16>
    %77 = vector.extract_strided_slice %54 {offsets = [0, 8], sizes = [8, 8], strides = [1, 1]} : vector<8x32xf32> to vector<8x8xf32>
    %78 = arith.truncf %77 : vector<8x8xf32> to vector<8x8xbf16>
    %cst_51 = arith.constant dense<0.000000e+00> : vector<8x8xf32>
    %79 = tpu.matmul %76, %78, %cst_51 {dimension_numbers = #tpu.dot_dimension_numbers<[1], [1], [0], [0], [0, 0, 1, 0], [], []>} : vector<8x8xbf16>, vector<8x8xbf16>, vector<8x8xf32> -> vector<8x8xf32>
    %80 = arith.addf %79, %7 : vector<8x8xf32>
    %cst_52 = arith.constant dense<0xFF800000> : vector<8xf32>
    %81 = vector.multi_reduction <maximumf>, %80, %cst_52 [1] : vector<8x8xf32> to vector<8xf32>
    %82 = vector.shape_cast %81 : vector<8xf32> to vector<8x1xf32>
    %83 = vector.broadcast %82 : vector<8x1xf32> to vector<8x8xf32>
    %84 = arith.subf %80, %83 : vector<8x8xf32>
    %85 = math.exp %84 : vector<8x8xf32>
    %cst_53 = arith.constant dense<0.000000e+00> : vector<8xf32>
    %86 = vector.multi_reduction <add>, %85, %cst_53 [1] : vector<8x8xf32> to vector<8xf32>
    %87 = vector.shape_cast %86 : vector<8xf32> to vector<8x1xf32>
    %88 = vector.broadcast %87 : vector<8x1xf32> to vector<8x8xf32>
    %89 = arith.divf %85, %88 : vector<8x8xf32>
    %90 = vector.extract_strided_slice %55 {offsets = [0, 8], sizes = [8, 8], strides = [1, 1]} : vector<8x32xf32> to vector<8x8xf32>
    %91 = arith.truncf %89 : vector<8x8xf32> to vector<8x8xbf16>
    %92 = arith.truncf %90 : vector<8x8xf32> to vector<8x8xbf16>
    %cst_54 = arith.constant dense<0.000000e+00> : vector<8x8xf32>
    %93 = tpu.matmul %91, %92, %cst_54 {dimension_numbers = #tpu.dot_dimension_numbers<[1], [0], [0], [1], [0, 0, 1, 1], [], []>} : vector<8x8xbf16>, vector<8x8xbf16>, vector<8x8xf32> -> vector<8x8xf32>
    %94 = vector.extract_strided_slice %53 {offsets = [0, 16], sizes = [8, 8], strides = [1, 1]} : vector<8x32xf32> to vector<8x8xf32>
    %95 = arith.truncf %94 : vector<8x8xf32> to vector<8x8xbf16>
    %96 = vector.extract_strided_slice %54 {offsets = [0, 16], sizes = [8, 8], strides = [1, 1]} : vector<8x32xf32> to vector<8x8xf32>
    %97 = arith.truncf %96 : vector<8x8xf32> to vector<8x8xbf16>
    %cst_55 = arith.constant dense<0.000000e+00> : vector<8x8xf32>
    %98 = tpu.matmul %95, %97, %cst_55 {dimension_numbers = #tpu.dot_dimension_numbers<[1], [1], [0], [0], [0, 0, 1, 0], [], []>} : vector<8x8xbf16>, vector<8x8xbf16>, vector<8x8xf32> -> vector<8x8xf32>
    %99 = arith.addf %98, %7 : vector<8x8xf32>
    %cst_56 = arith.constant dense<0xFF800000> : vector<8xf32>
    %100 = vector.multi_reduction <maximumf>, %99, %cst_56 [1] : vector<8x8xf32> to vector<8xf32>
    %101 = vector.shape_cast %100 : vector<8xf32> to vector<8x1xf32>
    %102 = vector.broadcast %101 : vector<8x1xf32> to vector<8x8xf32>
    %103 = arith.subf %99, %102 : vector<8x8xf32>
    %104 = math.exp %103 : vector<8x8xf32>
    %cst_57 = arith.constant dense<0.000000e+00> : vector<8xf32>
    %105 = vector.multi_reduction <add>, %104, %cst_57 [1] : vector<8x8xf32> to vector<8xf32>
    %106 = vector.shape_cast %105 : vector<8xf32> to vector<8x1xf32>
    %107 = vector.broadcast %106 : vector<8x1xf32> to vector<8x8xf32>
    %108 = arith.divf %104, %107 : vector<8x8xf32>
    %109 = vector.extract_strided_slice %55 {offsets = [0, 16], sizes = [8, 8], strides = [1, 1]} : vector<8x32xf32> to vector<8x8xf32>
    %110 = arith.truncf %108 : vector<8x8xf32> to vector<8x8xbf16>
    %111 = arith.truncf %109 : vector<8x8xf32> to vector<8x8xbf16>
    %cst_58 = arith.constant dense<0.000000e+00> : vector<8x8xf32>
    %112 = tpu.matmul %110, %111, %cst_58 {dimension_numbers = #tpu.dot_dimension_numbers<[1], [0], [0], [1], [0, 0, 1, 1], [], []>} : vector<8x8xbf16>, vector<8x8xbf16>, vector<8x8xf32> -> vector<8x8xf32>
    %113 = vector.extract_strided_slice %53 {offsets = [0, 24], sizes = [8, 8], strides = [1, 1]} : vector<8x32xf32> to vector<8x8xf32>
    %114 = arith.truncf %113 : vector<8x8xf32> to vector<8x8xbf16>
    %115 = vector.extract_strided_slice %54 {offsets = [0, 24], sizes = [8, 8], strides = [1, 1]} : vector<8x32xf32> to vector<8x8xf32>
    %116 = arith.truncf %115 : vector<8x8xf32> to vector<8x8xbf16>
    %cst_59 = arith.constant dense<0.000000e+00> : vector<8x8xf32>
    %117 = tpu.matmul %114, %116, %cst_59 {dimension_numbers = #tpu.dot_dimension_numbers<[1], [1], [0], [0], [0, 0, 1, 0], [], []>} : vector<8x8xbf16>, vector<8x8xbf16>, vector<8x8xf32> -> vector<8x8xf32>
    %118 = arith.addf %117, %7 : vector<8x8xf32>
    %cst_60 = arith.constant dense<0xFF800000> : vector<8xf32>
    %119 = vector.multi_reduction <maximumf>, %118, %cst_60 [1] : vector<8x8xf32> to vector<8xf32>
    %120 = vector.shape_cast %119 : vector<8xf32> to vector<8x1xf32>
    %121 = vector.broadcast %120 : vector<8x1xf32> to vector<8x8xf32>
    %122 = arith.subf %118, %121 : vector<8x8xf32>
    %123 = math.exp %122 : vector<8x8xf32>
    %cst_61 = arith.constant dense<0.000000e+00> : vector<8xf32>
    %124 = vector.multi_reduction <add>, %123, %cst_61 [1] : vector<8x8xf32> to vector<8xf32>
    %125 = vector.shape_cast %124 : vector<8xf32> to vector<8x1xf32>
    %126 = vector.broadcast %125 : vector<8x1xf32> to vector<8x8xf32>
    %127 = arith.divf %123, %126 : vector<8x8xf32>
    %128 = vector.extract_strided_slice %55 {offsets = [0, 24], sizes = [8, 8], strides = [1, 1]} : vector<8x32xf32> to vector<8x8xf32>
    %129 = arith.truncf %127 : vector<8x8xf32> to vector<8x8xbf16>
    %130 = arith.truncf %128 : vector<8x8xf32> to vector<8x8xbf16>
    %cst_62 = arith.constant dense<0.000000e+00> : vector<8x8xf32>
    %131 = tpu.matmul %129, %130, %cst_62 {dimension_numbers = #tpu.dot_dimension_numbers<[1], [0], [0], [1], [0, 0, 1, 1], [], []>} : vector<8x8xbf16>, vector<8x8xbf16>, vector<8x8xf32> -> vector<8x8xf32>
    %132 = tpu.concatenate %74, %93, %112, %131 in 1 : vector<8x8xf32>, vector<8x8xf32>, vector<8x8xf32>, vector<8x8xf32> -> vector<8x32xf32>
    %133 = arith.truncf %132 : vector<8x32xf32> to vector<8x32xbf16>
    %134 = arith.truncf %11 : vector<32x32xf32> to vector<32x32xbf16>
    %cst_63 = arith.constant dense<0.000000e+00> : vector<8x32xf32>
    %135 = tpu.matmul %133, %134, %cst_63 {dimension_numbers = #tpu.dot_dimension_numbers<[1], [0], [0], [1], [0, 0, 1, 1], [], []>} : vector<8x32xbf16>, vector<32x32xbf16>, vector<8x32xf32> -> vector<8x32xf32>
    %136 = vector.broadcast %25 : vector<1x32xf32> to vector<8x32xf32>
    %137 = arith.addf %135, %136 : vector<8x32xf32>
    %138 = arith.addf %0, %137 : vector<8x32xf32>
    %cst_64 = arith.constant dense<0.000000e+00> : vector<8xf32>
    %139 = vector.multi_reduction <add>, %138, %cst_64 [1] : vector<8x32xf32> to vector<8xf32>
    %140 = vector.shape_cast %139 : vector<8xf32> to vector<8x1xf32>
    %cst_65 = arith.constant 3.200000e+01 : f32
    %141 = vector.broadcast %cst_65 : f32 to vector<8x1xf32>
    %142 = arith.divf %140, %141 : vector<8x1xf32>
    %143 = vector.broadcast %142 : vector<8x1xf32> to vector<8x32xf32>
    %144 = arith.subf %138, %143 : vector<8x32xf32>
    %145 = arith.mulf %144, %144 : vector<8x32xf32>
    %cst_66 = arith.constant dense<0.000000e+00> : vector<8xf32>
    %146 = vector.multi_reduction <add>, %145, %cst_66 [1] : vector<8x32xf32> to vector<8xf32>
    %147 = vector.shape_cast %146 : vector<8xf32> to vector<8x1xf32>
    %cst_67 = arith.constant 3.200000e+01 : f32
    %148 = vector.broadcast %cst_67 : f32 to vector<8x1xf32>
    %149 = arith.divf %147, %148 : vector<8x1xf32>
    %cst_68 = arith.constant 9.99999974E-6 : f32
    %150 = vector.broadcast %cst_68 : f32 to vector<8x1xf32>
    %151 = arith.addf %149, %150 : vector<8x1xf32>
    %152 = math.rsqrt %151 : vector<8x1xf32>
    %153 = vector.broadcast %152 : vector<8x1xf32> to vector<8x32xf32>
    %154 = arith.mulf %144, %153 : vector<8x32xf32>
    %155 = vector.broadcast %37 : vector<1x32xf32> to vector<8x32xf32>
    %156 = arith.mulf %154, %155 : vector<8x32xf32>
    %157 = vector.broadcast %39 : vector<1x32xf32> to vector<8x32xf32>
    %158 = arith.addf %156, %157 : vector<8x32xf32>
    %159 = arith.truncf %158 : vector<8x32xf32> to vector<8x32xbf16>
    %160 = arith.truncf %13 : vector<32x32xf32> to vector<32x32xbf16>
    %cst_69 = arith.constant dense<0.000000e+00> : vector<8x32xf32>
    %161 = tpu.matmul %159, %160, %cst_69 {dimension_numbers = #tpu.dot_dimension_numbers<[1], [0], [0], [1], [0, 0, 1, 1], [], []>} : vector<8x32xbf16>, vector<32x32xbf16>, vector<8x32xf32> -> vector<8x32xf32>
    %162 = vector.broadcast %27 : vector<1x32xf32> to vector<8x32xf32>
    %163 = arith.addf %161, %162 : vector<8x32xf32>
    %164 = arith.truncf %1 : vector<8x32xf32> to vector<8x32xbf16>
    %165 = arith.truncf %15 : vector<32x64xf32> to vector<32x64xbf16>
    %cst_70 = arith.constant dense<0.000000e+00> : vector<8x64xf32>
    %166 = tpu.matmul %164, %165, %cst_70 {dimension_numbers = #tpu.dot_dimension_numbers<[1], [0], [0], [1], [0, 0, 1, 1], [], []>} : vector<8x32xbf16>, vector<32x64xbf16>, vector<8x64xf32> -> vector<8x64xf32>
    %167 = vector.broadcast %29 : vector<1x64xf32> to vector<8x64xf32>
    %168 = arith.addf %166, %167 : vector<8x64xf32>
    %169 = vector.extract_strided_slice %168 {offsets = [0, 0], sizes = [8, 32], strides = [1, 1]} : vector<8x64xf32> to vector<8x32xf32>
    %170 = vector.extract_strided_slice %168 {offsets = [0, 32], sizes = [8, 32], strides = [1, 1]} : vector<8x64xf32> to vector<8x32xf32>
    %171 = vector.extract_strided_slice %163 {offsets = [0, 0], sizes = [8, 8], strides = [1, 1]} : vector<8x32xf32> to vector<8x8xf32>
    %172 = arith.truncf %171 : vector<8x8xf32> to vector<8x8xbf16>
    %173 = vector.extract_strided_slice %169 {offsets = [0, 0], sizes = [8, 8], strides = [1, 1]} : vector<8x32xf32> to vector<8x8xf32>
    %174 = arith.truncf %173 : vector<8x8xf32> to vector<8x8xbf16>
    %cst_71 = arith.constant dense<0.000000e+00> : vector<8x8xf32>
    %175 = tpu.matmul %172, %174, %cst_71 {dimension_numbers = #tpu.dot_dimension_numbers<[1], [1], [0], [0], [0, 0, 1, 0], [], []>} : vector<8x8xbf16>, vector<8x8xbf16>, vector<8x8xf32> -> vector<8x8xf32>
    %cst_72 = arith.constant dense<0xFF800000> : vector<8xf32>
    %176 = vector.multi_reduction <maximumf>, %175, %cst_72 [1] : vector<8x8xf32> to vector<8xf32>
    %177 = vector.shape_cast %176 : vector<8xf32> to vector<8x1xf32>
    %178 = vector.broadcast %177 : vector<8x1xf32> to vector<8x8xf32>
    %179 = arith.subf %175, %178 : vector<8x8xf32>
    %180 = math.exp %179 : vector<8x8xf32>
    %cst_73 = arith.constant dense<0.000000e+00> : vector<8xf32>
    %181 = vector.multi_reduction <add>, %180, %cst_73 [1] : vector<8x8xf32> to vector<8xf32>
    %182 = vector.shape_cast %181 : vector<8xf32> to vector<8x1xf32>
    %183 = vector.broadcast %182 : vector<8x1xf32> to vector<8x8xf32>
    %184 = arith.divf %180, %183 : vector<8x8xf32>
    %185 = vector.extract_strided_slice %170 {offsets = [0, 0], sizes = [8, 8], strides = [1, 1]} : vector<8x32xf32> to vector<8x8xf32>
    %186 = arith.truncf %184 : vector<8x8xf32> to vector<8x8xbf16>
    %187 = arith.truncf %185 : vector<8x8xf32> to vector<8x8xbf16>
    %cst_74 = arith.constant dense<0.000000e+00> : vector<8x8xf32>
    %188 = tpu.matmul %186, %187, %cst_74 {dimension_numbers = #tpu.dot_dimension_numbers<[1], [0], [0], [1], [0, 0, 1, 1], [], []>} : vector<8x8xbf16>, vector<8x8xbf16>, vector<8x8xf32> -> vector<8x8xf32>
    %189 = vector.extract_strided_slice %163 {offsets = [0, 8], sizes = [8, 8], strides = [1, 1]} : vector<8x32xf32> to vector<8x8xf32>
    %190 = arith.truncf %189 : vector<8x8xf32> to vector<8x8xbf16>
    %191 = vector.extract_strided_slice %169 {offsets = [0, 8], sizes = [8, 8], strides = [1, 1]} : vector<8x32xf32> to vector<8x8xf32>
    %192 = arith.truncf %191 : vector<8x8xf32> to vector<8x8xbf16>
    %cst_75 = arith.constant dense<0.000000e+00> : vector<8x8xf32>
    %193 = tpu.matmul %190, %192, %cst_75 {dimension_numbers = #tpu.dot_dimension_numbers<[1], [1], [0], [0], [0, 0, 1, 0], [], []>} : vector<8x8xbf16>, vector<8x8xbf16>, vector<8x8xf32> -> vector<8x8xf32>
    %cst_76 = arith.constant dense<0xFF800000> : vector<8xf32>
    %194 = vector.multi_reduction <maximumf>, %193, %cst_76 [1] : vector<8x8xf32> to vector<8xf32>
    %195 = vector.shape_cast %194 : vector<8xf32> to vector<8x1xf32>
    %196 = vector.broadcast %195 : vector<8x1xf32> to vector<8x8xf32>
    %197 = arith.subf %193, %196 : vector<8x8xf32>
    %198 = math.exp %197 : vector<8x8xf32>
    %cst_77 = arith.constant dense<0.000000e+00> : vector<8xf32>
    %199 = vector.multi_reduction <add>, %198, %cst_77 [1] : vector<8x8xf32> to vector<8xf32>
    %200 = vector.shape_cast %199 : vector<8xf32> to vector<8x1xf32>
    %201 = vector.broadcast %200 : vector<8x1xf32> to vector<8x8xf32>
    %202 = arith.divf %198, %201 : vector<8x8xf32>
    %203 = vector.extract_strided_slice %170 {offsets = [0, 8], sizes = [8, 8], strides = [1, 1]} : vector<8x32xf32> to vector<8x8xf32>
    %204 = arith.truncf %202 : vector<8x8xf32> to vector<8x8xbf16>
    %205 = arith.truncf %203 : vector<8x8xf32> to vector<8x8xbf16>
    %cst_78 = arith.constant dense<0.000000e+00> : vector<8x8xf32>
    %206 = tpu.matmul %204, %205, %cst_78 {dimension_numbers = #tpu.dot_dimension_numbers<[1], [0], [0], [1], [0, 0, 1, 1], [], []>} : vector<8x8xbf16>, vector<8x8xbf16>, vector<8x8xf32> -> vector<8x8xf32>
    %207 = vector.extract_strided_slice %163 {offsets = [0, 16], sizes = [8, 8], strides = [1, 1]} : vector<8x32xf32> to vector<8x8xf32>
    %208 = arith.truncf %207 : vector<8x8xf32> to vector<8x8xbf16>
    %209 = vector.extract_strided_slice %169 {offsets = [0, 16], sizes = [8, 8], strides = [1, 1]} : vector<8x32xf32> to vector<8x8xf32>
    %210 = arith.truncf %209 : vector<8x8xf32> to vector<8x8xbf16>
    %cst_79 = arith.constant dense<0.000000e+00> : vector<8x8xf32>
    %211 = tpu.matmul %208, %210, %cst_79 {dimension_numbers = #tpu.dot_dimension_numbers<[1], [1], [0], [0], [0, 0, 1, 0], [], []>} : vector<8x8xbf16>, vector<8x8xbf16>, vector<8x8xf32> -> vector<8x8xf32>
    %cst_80 = arith.constant dense<0xFF800000> : vector<8xf32>
    %212 = vector.multi_reduction <maximumf>, %211, %cst_80 [1] : vector<8x8xf32> to vector<8xf32>
    %213 = vector.shape_cast %212 : vector<8xf32> to vector<8x1xf32>
    %214 = vector.broadcast %213 : vector<8x1xf32> to vector<8x8xf32>
    %215 = arith.subf %211, %214 : vector<8x8xf32>
    %216 = math.exp %215 : vector<8x8xf32>
    %cst_81 = arith.constant dense<0.000000e+00> : vector<8xf32>
    %217 = vector.multi_reduction <add>, %216, %cst_81 [1] : vector<8x8xf32> to vector<8xf32>
    %218 = vector.shape_cast %217 : vector<8xf32> to vector<8x1xf32>
    %219 = vector.broadcast %218 : vector<8x1xf32> to vector<8x8xf32>
    %220 = arith.divf %216, %219 : vector<8x8xf32>
    %221 = vector.extract_strided_slice %170 {offsets = [0, 16], sizes = [8, 8], strides = [1, 1]} : vector<8x32xf32> to vector<8x8xf32>
    %222 = arith.truncf %220 : vector<8x8xf32> to vector<8x8xbf16>
    %223 = arith.truncf %221 : vector<8x8xf32> to vector<8x8xbf16>
    %cst_82 = arith.constant dense<0.000000e+00> : vector<8x8xf32>
    %224 = tpu.matmul %222, %223, %cst_82 {dimension_numbers = #tpu.dot_dimension_numbers<[1], [0], [0], [1], [0, 0, 1, 1], [], []>} : vector<8x8xbf16>, vector<8x8xbf16>, vector<8x8xf32> -> vector<8x8xf32>
    %225 = vector.extract_strided_slice %163 {offsets = [0, 24], sizes = [8, 8], strides = [1, 1]} : vector<8x32xf32> to vector<8x8xf32>
    %226 = arith.truncf %225 : vector<8x8xf32> to vector<8x8xbf16>
    %227 = vector.extract_strided_slice %169 {offsets = [0, 24], sizes = [8, 8], strides = [1, 1]} : vector<8x32xf32> to vector<8x8xf32>
    %228 = arith.truncf %227 : vector<8x8xf32> to vector<8x8xbf16>
    %cst_83 = arith.constant dense<0.000000e+00> : vector<8x8xf32>
    %229 = tpu.matmul %226, %228, %cst_83 {dimension_numbers = #tpu.dot_dimension_numbers<[1], [1], [0], [0], [0, 0, 1, 0], [], []>} : vector<8x8xbf16>, vector<8x8xbf16>, vector<8x8xf32> -> vector<8x8xf32>
    %cst_84 = arith.constant dense<0xFF800000> : vector<8xf32>
    %230 = vector.multi_reduction <maximumf>, %229, %cst_84 [1] : vector<8x8xf32> to vector<8xf32>
    %231 = vector.shape_cast %230 : vector<8xf32> to vector<8x1xf32>
    %232 = vector.broadcast %231 : vector<8x1xf32> to vector<8x8xf32>
    %233 = arith.subf %229, %232 : vector<8x8xf32>
    %234 = math.exp %233 : vector<8x8xf32>
    %cst_85 = arith.constant dense<0.000000e+00> : vector<8xf32>
    %235 = vector.multi_reduction <add>, %234, %cst_85 [1] : vector<8x8xf32> to vector<8xf32>
    %236 = vector.shape_cast %235 : vector<8xf32> to vector<8x1xf32>
    %237 = vector.broadcast %236 : vector<8x1xf32> to vector<8x8xf32>
    %238 = arith.divf %234, %237 : vector<8x8xf32>
    %239 = vector.extract_strided_slice %170 {offsets = [0, 24], sizes = [8, 8], strides = [1, 1]} : vector<8x32xf32> to vector<8x8xf32>
    %240 = arith.truncf %238 : vector<8x8xf32> to vector<8x8xbf16>
    %241 = arith.truncf %239 : vector<8x8xf32> to vector<8x8xbf16>
    %cst_86 = arith.constant dense<0.000000e+00> : vector<8x8xf32>
    %242 = tpu.matmul %240, %241, %cst_86 {dimension_numbers = #tpu.dot_dimension_numbers<[1], [0], [0], [1], [0, 0, 1, 1], [], []>} : vector<8x8xbf16>, vector<8x8xbf16>, vector<8x8xf32> -> vector<8x8xf32>
    %243 = tpu.concatenate %188, %206, %224, %242 in 1 : vector<8x8xf32>, vector<8x8xf32>, vector<8x8xf32>, vector<8x8xf32> -> vector<8x32xf32>
    %244 = arith.truncf %243 : vector<8x32xf32> to vector<8x32xbf16>
    %245 = arith.truncf %17 : vector<32x32xf32> to vector<32x32xbf16>
    %cst_87 = arith.constant dense<0.000000e+00> : vector<8x32xf32>
    %246 = tpu.matmul %244, %245, %cst_87 {dimension_numbers = #tpu.dot_dimension_numbers<[1], [0], [0], [1], [0, 0, 1, 1], [], []>} : vector<8x32xbf16>, vector<32x32xbf16>, vector<8x32xf32> -> vector<8x32xf32>
    %247 = vector.broadcast %31 : vector<1x32xf32> to vector<8x32xf32>
    %248 = arith.addf %246, %247 : vector<8x32xf32>
    %249 = arith.addf %158, %248 : vector<8x32xf32>
    %cst_88 = arith.constant dense<0.000000e+00> : vector<8xf32>
    %250 = vector.multi_reduction <add>, %249, %cst_88 [1] : vector<8x32xf32> to vector<8xf32>
    %251 = vector.shape_cast %250 : vector<8xf32> to vector<8x1xf32>
    %cst_89 = arith.constant 3.200000e+01 : f32
    %252 = vector.broadcast %cst_89 : f32 to vector<8x1xf32>
    %253 = arith.divf %251, %252 : vector<8x1xf32>
    %254 = vector.broadcast %253 : vector<8x1xf32> to vector<8x32xf32>
    %255 = arith.subf %249, %254 : vector<8x32xf32>
    %256 = arith.mulf %255, %255 : vector<8x32xf32>
    %cst_90 = arith.constant dense<0.000000e+00> : vector<8xf32>
    %257 = vector.multi_reduction <add>, %256, %cst_90 [1] : vector<8x32xf32> to vector<8xf32>
    %258 = vector.shape_cast %257 : vector<8xf32> to vector<8x1xf32>
    %cst_91 = arith.constant 3.200000e+01 : f32
    %259 = vector.broadcast %cst_91 : f32 to vector<8x1xf32>
    %260 = arith.divf %258, %259 : vector<8x1xf32>
    %cst_92 = arith.constant 9.99999974E-6 : f32
    %261 = vector.broadcast %cst_92 : f32 to vector<8x1xf32>
    %262 = arith.addf %260, %261 : vector<8x1xf32>
    %263 = math.rsqrt %262 : vector<8x1xf32>
    %264 = vector.broadcast %263 : vector<8x1xf32> to vector<8x32xf32>
    %265 = arith.mulf %255, %264 : vector<8x32xf32>
    %266 = vector.broadcast %41 : vector<1x32xf32> to vector<8x32xf32>
    %267 = arith.mulf %265, %266 : vector<8x32xf32>
    %268 = vector.broadcast %43 : vector<1x32xf32> to vector<8x32xf32>
    %269 = arith.addf %267, %268 : vector<8x32xf32>
    %270 = arith.truncf %269 : vector<8x32xf32> to vector<8x32xbf16>
    %271 = arith.truncf %19 : vector<32x64xf32> to vector<32x64xbf16>
    %cst_93 = arith.constant dense<0.000000e+00> : vector<8x64xf32>
    %272 = tpu.matmul %270, %271, %cst_93 {dimension_numbers = #tpu.dot_dimension_numbers<[1], [0], [0], [1], [0, 0, 1, 1], [], []>} : vector<8x32xbf16>, vector<32x64xbf16>, vector<8x64xf32> -> vector<8x64xf32>
    %273 = vector.broadcast %33 : vector<1x64xf32> to vector<8x64xf32>
    %274 = arith.addf %272, %273 : vector<8x64xf32>
    %cst_94 = arith.constant 0.000000e+00 : f32
    %275 = vector.broadcast %cst_94 : f32 to vector<8x64xf32>
    %276 = arith.maximumf %274, %275 : vector<8x64xf32>
    %277 = arith.truncf %276 : vector<8x64xf32> to vector<8x64xbf16>
    %278 = arith.truncf %21 : vector<64x32xf32> to vector<64x32xbf16>
    %cst_95 = arith.constant dense<0.000000e+00> : vector<8x32xf32>
    %279 = tpu.matmul %277, %278, %cst_95 {dimension_numbers = #tpu.dot_dimension_numbers<[1], [0], [0], [1], [0, 0, 1, 1], [], []>} : vector<8x64xbf16>, vector<64x32xbf16>, vector<8x32xf32> -> vector<8x32xf32>
    %280 = vector.broadcast %35 : vector<1x32xf32> to vector<8x32xf32>
    %281 = arith.addf %279, %280 : vector<8x32xf32>
    %282 = arith.addf %269, %281 : vector<8x32xf32>
    %cst_96 = arith.constant dense<0.000000e+00> : vector<8xf32>
    %283 = vector.multi_reduction <add>, %282, %cst_96 [1] : vector<8x32xf32> to vector<8xf32>
    %284 = vector.shape_cast %283 : vector<8xf32> to vector<8x1xf32>
    %cst_97 = arith.constant 3.200000e+01 : f32
    %285 = vector.broadcast %cst_97 : f32 to vector<8x1xf32>
    %286 = arith.divf %284, %285 : vector<8x1xf32>
    %287 = vector.broadcast %286 : vector<8x1xf32> to vector<8x32xf32>
    %288 = arith.subf %282, %287 : vector<8x32xf32>
    %289 = arith.mulf %288, %288 : vector<8x32xf32>
    %cst_98 = arith.constant dense<0.000000e+00> : vector<8xf32>
    %290 = vector.multi_reduction <add>, %289, %cst_98 [1] : vector<8x32xf32> to vector<8xf32>
    %291 = vector.shape_cast %290 : vector<8xf32> to vector<8x1xf32>
    %cst_99 = arith.constant 3.200000e+01 : f32
    %292 = vector.broadcast %cst_99 : f32 to vector<8x1xf32>
    %293 = arith.divf %291, %292 : vector<8x1xf32>
    %cst_100 = arith.constant 9.99999974E-6 : f32
    %294 = vector.broadcast %cst_100 : f32 to vector<8x1xf32>
    %295 = arith.addf %293, %294 : vector<8x1xf32>
    %296 = math.rsqrt %295 : vector<8x1xf32>
    %297 = vector.broadcast %296 : vector<8x1xf32> to vector<8x32xf32>
    %298 = arith.mulf %288, %297 : vector<8x32xf32>
    %299 = vector.broadcast %45 : vector<1x32xf32> to vector<8x32xf32>
    %300 = arith.mulf %298, %299 : vector<8x32xf32>
    %301 = vector.broadcast %47 : vector<1x32xf32> to vector<8x32xf32>
    %302 = arith.addf %300, %301 : vector<8x32xf32>
    %c1_101 = arith.constant 1 : index
    %c0_102 = arith.constant 0 : index
    %c0_103 = arith.constant 0 : index
    %303 = vector.load %arg3[%c1_101, %c0_102, %c0_103] : memref<2x256x96xf32, #tpu.memory_space<vmem>>, vector<1x32x96xf32>
    %304 = vector.shape_cast %303 : vector<1x32x96xf32> to vector<32x96xf32>
    %c1_104 = arith.constant 1 : index
    %c32_105 = arith.constant 32 : index
    %c0_106 = arith.constant 0 : index
    %305 = vector.load %arg3[%c1_104, %c32_105, %c0_106] : memref<2x256x96xf32, #tpu.memory_space<vmem>>, vector<1x32x32xf32>
    %306 = vector.shape_cast %305 : vector<1x32x32xf32> to vector<32x32xf32>
    %c1_107 = arith.constant 1 : index
    %c64_108 = arith.constant 64 : index
    %c0_109 = arith.constant 0 : index
    %307 = vector.load %arg3[%c1_107, %c64_108, %c0_109] : memref<2x256x96xf32, #tpu.memory_space<vmem>>, vector<1x32x32xf32>
    %308 = vector.shape_cast %307 : vector<1x32x32xf32> to vector<32x32xf32>
    %c1_110 = arith.constant 1 : index
    %c96_111 = arith.constant 96 : index
    %c0_112 = arith.constant 0 : index
    %309 = vector.load %arg3[%c1_110, %c96_111, %c0_112] : memref<2x256x96xf32, #tpu.memory_space<vmem>>, vector<1x32x64xf32>
    %310 = vector.shape_cast %309 : vector<1x32x64xf32> to vector<32x64xf32>
    %c1_113 = arith.constant 1 : index
    %c128_114 = arith.constant 128 : index
    %c0_115 = arith.constant 0 : index
    %311 = vector.load %arg3[%c1_113, %c128_114, %c0_115] : memref<2x256x96xf32, #tpu.memory_space<vmem>>, vector<1x32x32xf32>
    %312 = vector.shape_cast %311 : vector<1x32x32xf32> to vector<32x32xf32>
    %c1_116 = arith.constant 1 : index
    %c160_117 = arith.constant 160 : index
    %c0_118 = arith.constant 0 : index
    %313 = vector.load %arg3[%c1_116, %c160_117, %c0_118] : memref<2x256x96xf32, #tpu.memory_space<vmem>>, vector<1x32x64xf32>
    %314 = vector.shape_cast %313 : vector<1x32x64xf32> to vector<32x64xf32>
    %c1_119 = arith.constant 1 : index
    %c192_120 = arith.constant 192 : index
    %c0_121 = arith.constant 0 : index
    %315 = vector.load %arg3[%c1_119, %c192_120, %c0_121] : memref<2x256x96xf32, #tpu.memory_space<vmem>>, vector<1x64x32xf32>
    %316 = vector.shape_cast %315 : vector<1x64x32xf32> to vector<64x32xf32>
    %c1_122 = arith.constant 1 : index
    %c0_123 = arith.constant 0 : index
    %c0_124 = arith.constant 0 : index
    %317 = vector.load %arg4[%c1_122, %c0_123, %c0_124] : memref<2x16x96xf32, #tpu.memory_space<vmem>>, vector<1x1x96xf32>
    %318 = vector.shape_cast %317 : vector<1x1x96xf32> to vector<1x96xf32>
    %c1_125 = arith.constant 1 : index
    %c1_126 = arith.constant 1 : index
    %c0_127 = arith.constant 0 : index
    %319 = vector.load %arg4[%c1_125, %c1_126, %c0_127] : memref<2x16x96xf32, #tpu.memory_space<vmem>>, vector<1x1x32xf32>
    %320 = vector.shape_cast %319 : vector<1x1x32xf32> to vector<1x32xf32>
    %c1_128 = arith.constant 1 : index
    %c2_129 = arith.constant 2 : index
    %c0_130 = arith.constant 0 : index
    %321 = vector.load %arg4[%c1_128, %c2_129, %c0_130] : memref<2x16x96xf32, #tpu.memory_space<vmem>>, vector<1x1x32xf32>
    %322 = vector.shape_cast %321 : vector<1x1x32xf32> to vector<1x32xf32>
    %c1_131 = arith.constant 1 : index
    %c3_132 = arith.constant 3 : index
    %c0_133 = arith.constant 0 : index
    %323 = vector.load %arg4[%c1_131, %c3_132, %c0_133] : memref<2x16x96xf32, #tpu.memory_space<vmem>>, vector<1x1x64xf32>
    %324 = vector.shape_cast %323 : vector<1x1x64xf32> to vector<1x64xf32>
    %c1_134 = arith.constant 1 : index
    %c4_135 = arith.constant 4 : index
    %c0_136 = arith.constant 0 : index
    %325 = vector.load %arg4[%c1_134, %c4_135, %c0_136] : memref<2x16x96xf32, #tpu.memory_space<vmem>>, vector<1x1x32xf32>
    %326 = vector.shape_cast %325 : vector<1x1x32xf32> to vector<1x32xf32>
    %c1_137 = arith.constant 1 : index
    %c5_138 = arith.constant 5 : index
    %c0_139 = arith.constant 0 : index
    %327 = vector.load %arg4[%c1_137, %c5_138, %c0_139] : memref<2x16x96xf32, #tpu.memory_space<vmem>>, vector<1x1x64xf32>
    %328 = vector.shape_cast %327 : vector<1x1x64xf32> to vector<1x64xf32>
    %c1_140 = arith.constant 1 : index
    %c6_141 = arith.constant 6 : index
    %c0_142 = arith.constant 0 : index
    %329 = vector.load %arg4[%c1_140, %c6_141, %c0_142] : memref<2x16x96xf32, #tpu.memory_space<vmem>>, vector<1x1x32xf32>
    %330 = vector.shape_cast %329 : vector<1x1x32xf32> to vector<1x32xf32>
    %c1_143 = arith.constant 1 : index
    %c7_144 = arith.constant 7 : index
    %c0_145 = arith.constant 0 : index
    %331 = vector.load %arg4[%c1_143, %c7_144, %c0_145] : memref<2x16x96xf32, #tpu.memory_space<vmem>>, vector<1x1x32xf32>
    %332 = vector.shape_cast %331 : vector<1x1x32xf32> to vector<1x32xf32>
    %c1_146 = arith.constant 1 : index
    %c8_147 = arith.constant 8 : index
    %c0_148 = arith.constant 0 : index
    %333 = vector.load %arg4[%c1_146, %c8_147, %c0_148] : memref<2x16x96xf32, #tpu.memory_space<vmem>>, vector<1x1x32xf32>
    %334 = vector.shape_cast %333 : vector<1x1x32xf32> to vector<1x32xf32>
    %c1_149 = arith.constant 1 : index
    %c9_150 = arith.constant 9 : index
    %c0_151 = arith.constant 0 : index
    %335 = vector.load %arg4[%c1_149, %c9_150, %c0_151] : memref<2x16x96xf32, #tpu.memory_space<vmem>>, vector<1x1x32xf32>
    %336 = vector.shape_cast %335 : vector<1x1x32xf32> to vector<1x32xf32>
    %c1_152 = arith.constant 1 : index
    %c10_153 = arith.constant 10 : index
    %c0_154 = arith.constant 0 : index
    %337 = vector.load %arg4[%c1_152, %c10_153, %c0_154] : memref<2x16x96xf32, #tpu.memory_space<vmem>>, vector<1x1x32xf32>
    %338 = vector.shape_cast %337 : vector<1x1x32xf32> to vector<1x32xf32>
    %c1_155 = arith.constant 1 : index
    %c11_156 = arith.constant 11 : index
    %c0_157 = arith.constant 0 : index
    %339 = vector.load %arg4[%c1_155, %c11_156, %c0_157] : memref<2x16x96xf32, #tpu.memory_space<vmem>>, vector<1x1x32xf32>
    %340 = vector.shape_cast %339 : vector<1x1x32xf32> to vector<1x32xf32>
    %c1_158 = arith.constant 1 : index
    %c12_159 = arith.constant 12 : index
    %c0_160 = arith.constant 0 : index
    %341 = vector.load %arg4[%c1_158, %c12_159, %c0_160] : memref<2x16x96xf32, #tpu.memory_space<vmem>>, vector<1x1x32xf32>
    %342 = vector.shape_cast %341 : vector<1x1x32xf32> to vector<1x32xf32>
    %343 = arith.truncf %302 : vector<8x32xf32> to vector<8x32xbf16>
    %344 = arith.truncf %304 : vector<32x96xf32> to vector<32x96xbf16>
    %cst_161 = arith.constant dense<0.000000e+00> : vector<8x96xf32>
    %345 = tpu.matmul %343, %344, %cst_161 {dimension_numbers = #tpu.dot_dimension_numbers<[1], [0], [0], [1], [0, 0, 1, 1], [], []>} : vector<8x32xbf16>, vector<32x96xbf16>, vector<8x96xf32> -> vector<8x96xf32>
    %346 = vector.broadcast %318 : vector<1x96xf32> to vector<8x96xf32>
    %347 = arith.addf %345, %346 : vector<8x96xf32>
    %348 = vector.extract_strided_slice %347 {offsets = [0, 0], sizes = [8, 32], strides = [1, 1]} : vector<8x96xf32> to vector<8x32xf32>
    %349 = vector.extract_strided_slice %347 {offsets = [0, 32], sizes = [8, 32], strides = [1, 1]} : vector<8x96xf32> to vector<8x32xf32>
    %350 = vector.extract_strided_slice %347 {offsets = [0, 64], sizes = [8, 32], strides = [1, 1]} : vector<8x96xf32> to vector<8x32xf32>
    %351 = vector.extract_strided_slice %348 {offsets = [0, 0], sizes = [8, 8], strides = [1, 1]} : vector<8x32xf32> to vector<8x8xf32>
    %352 = arith.truncf %351 : vector<8x8xf32> to vector<8x8xbf16>
    %353 = vector.extract_strided_slice %349 {offsets = [0, 0], sizes = [8, 8], strides = [1, 1]} : vector<8x32xf32> to vector<8x8xf32>
    %354 = arith.truncf %353 : vector<8x8xf32> to vector<8x8xbf16>
    %cst_162 = arith.constant dense<0.000000e+00> : vector<8x8xf32>
    %355 = tpu.matmul %352, %354, %cst_162 {dimension_numbers = #tpu.dot_dimension_numbers<[1], [1], [0], [0], [0, 0, 1, 0], [], []>} : vector<8x8xbf16>, vector<8x8xbf16>, vector<8x8xf32> -> vector<8x8xf32>
    %356 = arith.addf %355, %7 : vector<8x8xf32>
    %cst_163 = arith.constant dense<0xFF800000> : vector<8xf32>
    %357 = vector.multi_reduction <maximumf>, %356, %cst_163 [1] : vector<8x8xf32> to vector<8xf32>
    %358 = vector.shape_cast %357 : vector<8xf32> to vector<8x1xf32>
    %359 = vector.broadcast %358 : vector<8x1xf32> to vector<8x8xf32>
    %360 = arith.subf %356, %359 : vector<8x8xf32>
    %361 = math.exp %360 : vector<8x8xf32>
    %cst_164 = arith.constant dense<0.000000e+00> : vector<8xf32>
    %362 = vector.multi_reduction <add>, %361, %cst_164 [1] : vector<8x8xf32> to vector<8xf32>
    %363 = vector.shape_cast %362 : vector<8xf32> to vector<8x1xf32>
    %364 = vector.broadcast %363 : vector<8x1xf32> to vector<8x8xf32>
    %365 = arith.divf %361, %364 : vector<8x8xf32>
    %366 = vector.extract_strided_slice %350 {offsets = [0, 0], sizes = [8, 8], strides = [1, 1]} : vector<8x32xf32> to vector<8x8xf32>
    %367 = arith.truncf %365 : vector<8x8xf32> to vector<8x8xbf16>
    %368 = arith.truncf %366 : vector<8x8xf32> to vector<8x8xbf16>
    %cst_165 = arith.constant dense<0.000000e+00> : vector<8x8xf32>
    %369 = tpu.matmul %367, %368, %cst_165 {dimension_numbers = #tpu.dot_dimension_numbers<[1], [0], [0], [1], [0, 0, 1, 1], [], []>} : vector<8x8xbf16>, vector<8x8xbf16>, vector<8x8xf32> -> vector<8x8xf32>
    %370 = vector.extract_strided_slice %348 {offsets = [0, 8], sizes = [8, 8], strides = [1, 1]} : vector<8x32xf32> to vector<8x8xf32>
    %371 = arith.truncf %370 : vector<8x8xf32> to vector<8x8xbf16>
    %372 = vector.extract_strided_slice %349 {offsets = [0, 8], sizes = [8, 8], strides = [1, 1]} : vector<8x32xf32> to vector<8x8xf32>
    %373 = arith.truncf %372 : vector<8x8xf32> to vector<8x8xbf16>
    %cst_166 = arith.constant dense<0.000000e+00> : vector<8x8xf32>
    %374 = tpu.matmul %371, %373, %cst_166 {dimension_numbers = #tpu.dot_dimension_numbers<[1], [1], [0], [0], [0, 0, 1, 0], [], []>} : vector<8x8xbf16>, vector<8x8xbf16>, vector<8x8xf32> -> vector<8x8xf32>
    %375 = arith.addf %374, %7 : vector<8x8xf32>
    %cst_167 = arith.constant dense<0xFF800000> : vector<8xf32>
    %376 = vector.multi_reduction <maximumf>, %375, %cst_167 [1] : vector<8x8xf32> to vector<8xf32>
    %377 = vector.shape_cast %376 : vector<8xf32> to vector<8x1xf32>
    %378 = vector.broadcast %377 : vector<8x1xf32> to vector<8x8xf32>
    %379 = arith.subf %375, %378 : vector<8x8xf32>
    %380 = math.exp %379 : vector<8x8xf32>
    %cst_168 = arith.constant dense<0.000000e+00> : vector<8xf32>
    %381 = vector.multi_reduction <add>, %380, %cst_168 [1] : vector<8x8xf32> to vector<8xf32>
    %382 = vector.shape_cast %381 : vector<8xf32> to vector<8x1xf32>
    %383 = vector.broadcast %382 : vector<8x1xf32> to vector<8x8xf32>
    %384 = arith.divf %380, %383 : vector<8x8xf32>
    %385 = vector.extract_strided_slice %350 {offsets = [0, 8], sizes = [8, 8], strides = [1, 1]} : vector<8x32xf32> to vector<8x8xf32>
    %386 = arith.truncf %384 : vector<8x8xf32> to vector<8x8xbf16>
    %387 = arith.truncf %385 : vector<8x8xf32> to vector<8x8xbf16>
    %cst_169 = arith.constant dense<0.000000e+00> : vector<8x8xf32>
    %388 = tpu.matmul %386, %387, %cst_169 {dimension_numbers = #tpu.dot_dimension_numbers<[1], [0], [0], [1], [0, 0, 1, 1], [], []>} : vector<8x8xbf16>, vector<8x8xbf16>, vector<8x8xf32> -> vector<8x8xf32>
    %389 = vector.extract_strided_slice %348 {offsets = [0, 16], sizes = [8, 8], strides = [1, 1]} : vector<8x32xf32> to vector<8x8xf32>
    %390 = arith.truncf %389 : vector<8x8xf32> to vector<8x8xbf16>
    %391 = vector.extract_strided_slice %349 {offsets = [0, 16], sizes = [8, 8], strides = [1, 1]} : vector<8x32xf32> to vector<8x8xf32>
    %392 = arith.truncf %391 : vector<8x8xf32> to vector<8x8xbf16>
    %cst_170 = arith.constant dense<0.000000e+00> : vector<8x8xf32>
    %393 = tpu.matmul %390, %392, %cst_170 {dimension_numbers = #tpu.dot_dimension_numbers<[1], [1], [0], [0], [0, 0, 1, 0], [], []>} : vector<8x8xbf16>, vector<8x8xbf16>, vector<8x8xf32> -> vector<8x8xf32>
    %394 = arith.addf %393, %7 : vector<8x8xf32>
    %cst_171 = arith.constant dense<0xFF800000> : vector<8xf32>
    %395 = vector.multi_reduction <maximumf>, %394, %cst_171 [1] : vector<8x8xf32> to vector<8xf32>
    %396 = vector.shape_cast %395 : vector<8xf32> to vector<8x1xf32>
    %397 = vector.broadcast %396 : vector<8x1xf32> to vector<8x8xf32>
    %398 = arith.subf %394, %397 : vector<8x8xf32>
    %399 = math.exp %398 : vector<8x8xf32>
    %cst_172 = arith.constant dense<0.000000e+00> : vector<8xf32>
    %400 = vector.multi_reduction <add>, %399, %cst_172 [1] : vector<8x8xf32> to vector<8xf32>
    %401 = vector.shape_cast %400 : vector<8xf32> to vector<8x1xf32>
    %402 = vector.broadcast %401 : vector<8x1xf32> to vector<8x8xf32>
    %403 = arith.divf %399, %402 : vector<8x8xf32>
    %404 = vector.extract_strided_slice %350 {offsets = [0, 16], sizes = [8, 8], strides = [1, 1]} : vector<8x32xf32> to vector<8x8xf32>
    %405 = arith.truncf %403 : vector<8x8xf32> to vector<8x8xbf16>
    %406 = arith.truncf %404 : vector<8x8xf32> to vector<8x8xbf16>
    %cst_173 = arith.constant dense<0.000000e+00> : vector<8x8xf32>
    %407 = tpu.matmul %405, %406, %cst_173 {dimension_numbers = #tpu.dot_dimension_numbers<[1], [0], [0], [1], [0, 0, 1, 1], [], []>} : vector<8x8xbf16>, vector<8x8xbf16>, vector<8x8xf32> -> vector<8x8xf32>
    %408 = vector.extract_strided_slice %348 {offsets = [0, 24], sizes = [8, 8], strides = [1, 1]} : vector<8x32xf32> to vector<8x8xf32>
    %409 = arith.truncf %408 : vector<8x8xf32> to vector<8x8xbf16>
    %410 = vector.extract_strided_slice %349 {offsets = [0, 24], sizes = [8, 8], strides = [1, 1]} : vector<8x32xf32> to vector<8x8xf32>
    %411 = arith.truncf %410 : vector<8x8xf32> to vector<8x8xbf16>
    %cst_174 = arith.constant dense<0.000000e+00> : vector<8x8xf32>
    %412 = tpu.matmul %409, %411, %cst_174 {dimension_numbers = #tpu.dot_dimension_numbers<[1], [1], [0], [0], [0, 0, 1, 0], [], []>} : vector<8x8xbf16>, vector<8x8xbf16>, vector<8x8xf32> -> vector<8x8xf32>
    %413 = arith.addf %412, %7 : vector<8x8xf32>
    %cst_175 = arith.constant dense<0xFF800000> : vector<8xf32>
    %414 = vector.multi_reduction <maximumf>, %413, %cst_175 [1] : vector<8x8xf32> to vector<8xf32>
    %415 = vector.shape_cast %414 : vector<8xf32> to vector<8x1xf32>
    %416 = vector.broadcast %415 : vector<8x1xf32> to vector<8x8xf32>
    %417 = arith.subf %413, %416 : vector<8x8xf32>
    %418 = math.exp %417 : vector<8x8xf32>
    %cst_176 = arith.constant dense<0.000000e+00> : vector<8xf32>
    %419 = vector.multi_reduction <add>, %418, %cst_176 [1] : vector<8x8xf32> to vector<8xf32>
    %420 = vector.shape_cast %419 : vector<8xf32> to vector<8x1xf32>
    %421 = vector.broadcast %420 : vector<8x1xf32> to vector<8x8xf32>
    %422 = arith.divf %418, %421 : vector<8x8xf32>
    %423 = vector.extract_strided_slice %350 {offsets = [0, 24], sizes = [8, 8], strides = [1, 1]} : vector<8x32xf32> to vector<8x8xf32>
    %424 = arith.truncf %422 : vector<8x8xf32> to vector<8x8xbf16>
    %425 = arith.truncf %423 : vector<8x8xf32> to vector<8x8xbf16>
    %cst_177 = arith.constant dense<0.000000e+00> : vector<8x8xf32>
    %426 = tpu.matmul %424, %425, %cst_177 {dimension_numbers = #tpu.dot_dimension_numbers<[1], [0], [0], [1], [0, 0, 1, 1], [], []>} : vector<8x8xbf16>, vector<8x8xbf16>, vector<8x8xf32> -> vector<8x8xf32>
    %427 = tpu.concatenate %369, %388, %407, %426 in 1 : vector<8x8xf32>, vector<8x8xf32>, vector<8x8xf32>, vector<8x8xf32> -> vector<8x32xf32>
    %428 = arith.truncf %427 : vector<8x32xf32> to vector<8x32xbf16>
    %429 = arith.truncf %306 : vector<32x32xf32> to vector<32x32xbf16>
    %cst_178 = arith.constant dense<0.000000e+00> : vector<8x32xf32>
    %430 = tpu.matmul %428, %429, %cst_178 {dimension_numbers = #tpu.dot_dimension_numbers<[1], [0], [0], [1], [0, 0, 1, 1], [], []>} : vector<8x32xbf16>, vector<32x32xbf16>, vector<8x32xf32> -> vector<8x32xf32>
    %431 = vector.broadcast %320 : vector<1x32xf32> to vector<8x32xf32>
    %432 = arith.addf %430, %431 : vector<8x32xf32>
    %433 = arith.addf %302, %432 : vector<8x32xf32>
    %cst_179 = arith.constant dense<0.000000e+00> : vector<8xf32>
    %434 = vector.multi_reduction <add>, %433, %cst_179 [1] : vector<8x32xf32> to vector<8xf32>
    %435 = vector.shape_cast %434 : vector<8xf32> to vector<8x1xf32>
    %cst_180 = arith.constant 3.200000e+01 : f32
    %436 = vector.broadcast %cst_180 : f32 to vector<8x1xf32>
    %437 = arith.divf %435, %436 : vector<8x1xf32>
    %438 = vector.broadcast %437 : vector<8x1xf32> to vector<8x32xf32>
    %439 = arith.subf %433, %438 : vector<8x32xf32>
    %440 = arith.mulf %439, %439 : vector<8x32xf32>
    %cst_181 = arith.constant dense<0.000000e+00> : vector<8xf32>
    %441 = vector.multi_reduction <add>, %440, %cst_181 [1] : vector<8x32xf32> to vector<8xf32>
    %442 = vector.shape_cast %441 : vector<8xf32> to vector<8x1xf32>
    %cst_182 = arith.constant 3.200000e+01 : f32
    %443 = vector.broadcast %cst_182 : f32 to vector<8x1xf32>
    %444 = arith.divf %442, %443 : vector<8x1xf32>
    %cst_183 = arith.constant 9.99999974E-6 : f32
    %445 = vector.broadcast %cst_183 : f32 to vector<8x1xf32>
    %446 = arith.addf %444, %445 : vector<8x1xf32>
    %447 = math.rsqrt %446 : vector<8x1xf32>
    %448 = vector.broadcast %447 : vector<8x1xf32> to vector<8x32xf32>
    %449 = arith.mulf %439, %448 : vector<8x32xf32>
    %450 = vector.broadcast %332 : vector<1x32xf32> to vector<8x32xf32>
    %451 = arith.mulf %449, %450 : vector<8x32xf32>
    %452 = vector.broadcast %334 : vector<1x32xf32> to vector<8x32xf32>
    %453 = arith.addf %451, %452 : vector<8x32xf32>
    %454 = arith.truncf %453 : vector<8x32xf32> to vector<8x32xbf16>
    %455 = arith.truncf %308 : vector<32x32xf32> to vector<32x32xbf16>
    %cst_184 = arith.constant dense<0.000000e+00> : vector<8x32xf32>
    %456 = tpu.matmul %454, %455, %cst_184 {dimension_numbers = #tpu.dot_dimension_numbers<[1], [0], [0], [1], [0, 0, 1, 1], [], []>} : vector<8x32xbf16>, vector<32x32xbf16>, vector<8x32xf32> -> vector<8x32xf32>
    %457 = vector.broadcast %322 : vector<1x32xf32> to vector<8x32xf32>
    %458 = arith.addf %456, %457 : vector<8x32xf32>
    %459 = arith.truncf %1 : vector<8x32xf32> to vector<8x32xbf16>
    %460 = arith.truncf %310 : vector<32x64xf32> to vector<32x64xbf16>
    %cst_185 = arith.constant dense<0.000000e+00> : vector<8x64xf32>
    %461 = tpu.matmul %459, %460, %cst_185 {dimension_numbers = #tpu.dot_dimension_numbers<[1], [0], [0], [1], [0, 0, 1, 1], [], []>} : vector<8x32xbf16>, vector<32x64xbf16>, vector<8x64xf32> -> vector<8x64xf32>
    %462 = vector.broadcast %324 : vector<1x64xf32> to vector<8x64xf32>
    %463 = arith.addf %461, %462 : vector<8x64xf32>
    %464 = vector.extract_strided_slice %463 {offsets = [0, 0], sizes = [8, 32], strides = [1, 1]} : vector<8x64xf32> to vector<8x32xf32>
    %465 = vector.extract_strided_slice %463 {offsets = [0, 32], sizes = [8, 32], strides = [1, 1]} : vector<8x64xf32> to vector<8x32xf32>
    %466 = vector.extract_strided_slice %458 {offsets = [0, 0], sizes = [8, 8], strides = [1, 1]} : vector<8x32xf32> to vector<8x8xf32>
    %467 = arith.truncf %466 : vector<8x8xf32> to vector<8x8xbf16>
    %468 = vector.extract_strided_slice %464 {offsets = [0, 0], sizes = [8, 8], strides = [1, 1]} : vector<8x32xf32> to vector<8x8xf32>
    %469 = arith.truncf %468 : vector<8x8xf32> to vector<8x8xbf16>
    %cst_186 = arith.constant dense<0.000000e+00> : vector<8x8xf32>
    %470 = tpu.matmul %467, %469, %cst_186 {dimension_numbers = #tpu.dot_dimension_numbers<[1], [1], [0], [0], [0, 0, 1, 0], [], []>} : vector<8x8xbf16>, vector<8x8xbf16>, vector<8x8xf32> -> vector<8x8xf32>
    %cst_187 = arith.constant dense<0xFF800000> : vector<8xf32>
    %471 = vector.multi_reduction <maximumf>, %470, %cst_187 [1] : vector<8x8xf32> to vector<8xf32>
    %472 = vector.shape_cast %471 : vector<8xf32> to vector<8x1xf32>
    %473 = vector.broadcast %472 : vector<8x1xf32> to vector<8x8xf32>
    %474 = arith.subf %470, %473 : vector<8x8xf32>
    %475 = math.exp %474 : vector<8x8xf32>
    %cst_188 = arith.constant dense<0.000000e+00> : vector<8xf32>
    %476 = vector.multi_reduction <add>, %475, %cst_188 [1] : vector<8x8xf32> to vector<8xf32>
    %477 = vector.shape_cast %476 : vector<8xf32> to vector<8x1xf32>
    %478 = vector.broadcast %477 : vector<8x1xf32> to vector<8x8xf32>
    %479 = arith.divf %475, %478 : vector<8x8xf32>
    %480 = vector.extract_strided_slice %465 {offsets = [0, 0], sizes = [8, 8], strides = [1, 1]} : vector<8x32xf32> to vector<8x8xf32>
    %481 = arith.truncf %479 : vector<8x8xf32> to vector<8x8xbf16>
    %482 = arith.truncf %480 : vector<8x8xf32> to vector<8x8xbf16>
    %cst_189 = arith.constant dense<0.000000e+00> : vector<8x8xf32>
    %483 = tpu.matmul %481, %482, %cst_189 {dimension_numbers = #tpu.dot_dimension_numbers<[1], [0], [0], [1], [0, 0, 1, 1], [], []>} : vector<8x8xbf16>, vector<8x8xbf16>, vector<8x8xf32> -> vector<8x8xf32>
    %484 = vector.extract_strided_slice %458 {offsets = [0, 8], sizes = [8, 8], strides = [1, 1]} : vector<8x32xf32> to vector<8x8xf32>
    %485 = arith.truncf %484 : vector<8x8xf32> to vector<8x8xbf16>
    %486 = vector.extract_strided_slice %464 {offsets = [0, 8], sizes = [8, 8], strides = [1, 1]} : vector<8x32xf32> to vector<8x8xf32>
    %487 = arith.truncf %486 : vector<8x8xf32> to vector<8x8xbf16>
    %cst_190 = arith.constant dense<0.000000e+00> : vector<8x8xf32>
    %488 = tpu.matmul %485, %487, %cst_190 {dimension_numbers = #tpu.dot_dimension_numbers<[1], [1], [0], [0], [0, 0, 1, 0], [], []>} : vector<8x8xbf16>, vector<8x8xbf16>, vector<8x8xf32> -> vector<8x8xf32>
    %cst_191 = arith.constant dense<0xFF800000> : vector<8xf32>
    %489 = vector.multi_reduction <maximumf>, %488, %cst_191 [1] : vector<8x8xf32> to vector<8xf32>
    %490 = vector.shape_cast %489 : vector<8xf32> to vector<8x1xf32>
    %491 = vector.broadcast %490 : vector<8x1xf32> to vector<8x8xf32>
    %492 = arith.subf %488, %491 : vector<8x8xf32>
    %493 = math.exp %492 : vector<8x8xf32>
    %cst_192 = arith.constant dense<0.000000e+00> : vector<8xf32>
    %494 = vector.multi_reduction <add>, %493, %cst_192 [1] : vector<8x8xf32> to vector<8xf32>
    %495 = vector.shape_cast %494 : vector<8xf32> to vector<8x1xf32>
    %496 = vector.broadcast %495 : vector<8x1xf32> to vector<8x8xf32>
    %497 = arith.divf %493, %496 : vector<8x8xf32>
    %498 = vector.extract_strided_slice %465 {offsets = [0, 8], sizes = [8, 8], strides = [1, 1]} : vector<8x32xf32> to vector<8x8xf32>
    %499 = arith.truncf %497 : vector<8x8xf32> to vector<8x8xbf16>
    %500 = arith.truncf %498 : vector<8x8xf32> to vector<8x8xbf16>
    %cst_193 = arith.constant dense<0.000000e+00> : vector<8x8xf32>
    %501 = tpu.matmul %499, %500, %cst_193 {dimension_numbers = #tpu.dot_dimension_numbers<[1], [0], [0], [1], [0, 0, 1, 1], [], []>} : vector<8x8xbf16>, vector<8x8xbf16>, vector<8x8xf32> -> vector<8x8xf32>
    %502 = vector.extract_strided_slice %458 {offsets = [0, 16], sizes = [8, 8], strides = [1, 1]} : vector<8x32xf32> to vector<8x8xf32>
    %503 = arith.truncf %502 : vector<8x8xf32> to vector<8x8xbf16>
    %504 = vector.extract_strided_slice %464 {offsets = [0, 16], sizes = [8, 8], strides = [1, 1]} : vector<8x32xf32> to vector<8x8xf32>
    %505 = arith.truncf %504 : vector<8x8xf32> to vector<8x8xbf16>
    %cst_194 = arith.constant dense<0.000000e+00> : vector<8x8xf32>
    %506 = tpu.matmul %503, %505, %cst_194 {dimension_numbers = #tpu.dot_dimension_numbers<[1], [1], [0], [0], [0, 0, 1, 0], [], []>} : vector<8x8xbf16>, vector<8x8xbf16>, vector<8x8xf32> -> vector<8x8xf32>
    %cst_195 = arith.constant dense<0xFF800000> : vector<8xf32>
    %507 = vector.multi_reduction <maximumf>, %506, %cst_195 [1] : vector<8x8xf32> to vector<8xf32>
    %508 = vector.shape_cast %507 : vector<8xf32> to vector<8x1xf32>
    %509 = vector.broadcast %508 : vector<8x1xf32> to vector<8x8xf32>
    %510 = arith.subf %506, %509 : vector<8x8xf32>
    %511 = math.exp %510 : vector<8x8xf32>
    %cst_196 = arith.constant dense<0.000000e+00> : vector<8xf32>
    %512 = vector.multi_reduction <add>, %511, %cst_196 [1] : vector<8x8xf32> to vector<8xf32>
    %513 = vector.shape_cast %512 : vector<8xf32> to vector<8x1xf32>
    %514 = vector.broadcast %513 : vector<8x1xf32> to vector<8x8xf32>
    %515 = arith.divf %511, %514 : vector<8x8xf32>
    %516 = vector.extract_strided_slice %465 {offsets = [0, 16], sizes = [8, 8], strides = [1, 1]} : vector<8x32xf32> to vector<8x8xf32>
    %517 = arith.truncf %515 : vector<8x8xf32> to vector<8x8xbf16>
    %518 = arith.truncf %516 : vector<8x8xf32> to vector<8x8xbf16>
    %cst_197 = arith.constant dense<0.000000e+00> : vector<8x8xf32>
    %519 = tpu.matmul %517, %518, %cst_197 {dimension_numbers = #tpu.dot_dimension_numbers<[1], [0], [0], [1], [0, 0, 1, 1], [], []>} : vector<8x8xbf16>, vector<8x8xbf16>, vector<8x8xf32> -> vector<8x8xf32>
    %520 = vector.extract_strided_slice %458 {offsets = [0, 24], sizes = [8, 8], strides = [1, 1]} : vector<8x32xf32> to vector<8x8xf32>
    %521 = arith.truncf %520 : vector<8x8xf32> to vector<8x8xbf16>
    %522 = vector.extract_strided_slice %464 {offsets = [0, 24], sizes = [8, 8], strides = [1, 1]} : vector<8x32xf32> to vector<8x8xf32>
    %523 = arith.truncf %522 : vector<8x8xf32> to vector<8x8xbf16>
    %cst_198 = arith.constant dense<0.000000e+00> : vector<8x8xf32>
    %524 = tpu.matmul %521, %523, %cst_198 {dimension_numbers = #tpu.dot_dimension_numbers<[1], [1], [0], [0], [0, 0, 1, 0], [], []>} : vector<8x8xbf16>, vector<8x8xbf16>, vector<8x8xf32> -> vector<8x8xf32>
    %cst_199 = arith.constant dense<0xFF800000> : vector<8xf32>
    %525 = vector.multi_reduction <maximumf>, %524, %cst_199 [1] : vector<8x8xf32> to vector<8xf32>
    %526 = vector.shape_cast %525 : vector<8xf32> to vector<8x1xf32>
    %527 = vector.broadcast %526 : vector<8x1xf32> to vector<8x8xf32>
    %528 = arith.subf %524, %527 : vector<8x8xf32>
    %529 = math.exp %528 : vector<8x8xf32>
    %cst_200 = arith.constant dense<0.000000e+00> : vector<8xf32>
    %530 = vector.multi_reduction <add>, %529, %cst_200 [1] : vector<8x8xf32> to vector<8xf32>
    %531 = vector.shape_cast %530 : vector<8xf32> to vector<8x1xf32>
    %532 = vector.broadcast %531 : vector<8x1xf32> to vector<8x8xf32>
    %533 = arith.divf %529, %532 : vector<8x8xf32>
    %534 = vector.extract_strided_slice %465 {offsets = [0, 24], sizes = [8, 8], strides = [1, 1]} : vector<8x32xf32> to vector<8x8xf32>
    %535 = arith.truncf %533 : vector<8x8xf32> to vector<8x8xbf16>
    %536 = arith.truncf %534 : vector<8x8xf32> to vector<8x8xbf16>
    %cst_201 = arith.constant dense<0.000000e+00> : vector<8x8xf32>
    %537 = tpu.matmul %535, %536, %cst_201 {dimension_numbers = #tpu.dot_dimension_numbers<[1], [0], [0], [1], [0, 0, 1, 1], [], []>} : vector<8x8xbf16>, vector<8x8xbf16>, vector<8x8xf32> -> vector<8x8xf32>
    %538 = tpu.concatenate %483, %501, %519, %537 in 1 : vector<8x8xf32>, vector<8x8xf32>, vector<8x8xf32>, vector<8x8xf32> -> vector<8x32xf32>
    %539 = arith.truncf %538 : vector<8x32xf32> to vector<8x32xbf16>
    %540 = arith.truncf %312 : vector<32x32xf32> to vector<32x32xbf16>
    %cst_202 = arith.constant dense<0.000000e+00> : vector<8x32xf32>
    %541 = tpu.matmul %539, %540, %cst_202 {dimension_numbers = #tpu.dot_dimension_numbers<[1], [0], [0], [1], [0, 0, 1, 1], [], []>} : vector<8x32xbf16>, vector<32x32xbf16>, vector<8x32xf32> -> vector<8x32xf32>
    %542 = vector.broadcast %326 : vector<1x32xf32> to vector<8x32xf32>
    %543 = arith.addf %541, %542 : vector<8x32xf32>
    %544 = arith.addf %453, %543 : vector<8x32xf32>
    %cst_203 = arith.constant dense<0.000000e+00> : vector<8xf32>
    %545 = vector.multi_reduction <add>, %544, %cst_203 [1] : vector<8x32xf32> to vector<8xf32>
    %546 = vector.shape_cast %545 : vector<8xf32> to vector<8x1xf32>
    %cst_204 = arith.constant 3.200000e+01 : f32
    %547 = vector.broadcast %cst_204 : f32 to vector<8x1xf32>
    %548 = arith.divf %546, %547 : vector<8x1xf32>
    %549 = vector.broadcast %548 : vector<8x1xf32> to vector<8x32xf32>
    %550 = arith.subf %544, %549 : vector<8x32xf32>
    %551 = arith.mulf %550, %550 : vector<8x32xf32>
    %cst_205 = arith.constant dense<0.000000e+00> : vector<8xf32>
    %552 = vector.multi_reduction <add>, %551, %cst_205 [1] : vector<8x32xf32> to vector<8xf32>
    %553 = vector.shape_cast %552 : vector<8xf32> to vector<8x1xf32>
    %cst_206 = arith.constant 3.200000e+01 : f32
    %554 = vector.broadcast %cst_206 : f32 to vector<8x1xf32>
    %555 = arith.divf %553, %554 : vector<8x1xf32>
    %cst_207 = arith.constant 9.99999974E-6 : f32
    %556 = vector.broadcast %cst_207 : f32 to vector<8x1xf32>
    %557 = arith.addf %555, %556 : vector<8x1xf32>
    %558 = math.rsqrt %557 : vector<8x1xf32>
    %559 = vector.broadcast %558 : vector<8x1xf32> to vector<8x32xf32>
    %560 = arith.mulf %550, %559 : vector<8x32xf32>
    %561 = vector.broadcast %336 : vector<1x32xf32> to vector<8x32xf32>
    %562 = arith.mulf %560, %561 : vector<8x32xf32>
    %563 = vector.broadcast %338 : vector<1x32xf32> to vector<8x32xf32>
    %564 = arith.addf %562, %563 : vector<8x32xf32>
    %565 = arith.truncf %564 : vector<8x32xf32> to vector<8x32xbf16>
    %566 = arith.truncf %314 : vector<32x64xf32> to vector<32x64xbf16>
    %cst_208 = arith.constant dense<0.000000e+00> : vector<8x64xf32>
    %567 = tpu.matmul %565, %566, %cst_208 {dimension_numbers = #tpu.dot_dimension_numbers<[1], [0], [0], [1], [0, 0, 1, 1], [], []>} : vector<8x32xbf16>, vector<32x64xbf16>, vector<8x64xf32> -> vector<8x64xf32>
    %568 = vector.broadcast %328 : vector<1x64xf32> to vector<8x64xf32>
    %569 = arith.addf %567, %568 : vector<8x64xf32>
    %cst_209 = arith.constant 0.000000e+00 : f32
    %570 = vector.broadcast %cst_209 : f32 to vector<8x64xf32>
    %571 = arith.maximumf %569, %570 : vector<8x64xf32>
    %572 = arith.truncf %571 : vector<8x64xf32> to vector<8x64xbf16>
    %573 = arith.truncf %316 : vector<64x32xf32> to vector<64x32xbf16>
    %cst_210 = arith.constant dense<0.000000e+00> : vector<8x32xf32>
    %574 = tpu.matmul %572, %573, %cst_210 {dimension_numbers = #tpu.dot_dimension_numbers<[1], [0], [0], [1], [0, 0, 1, 1], [], []>} : vector<8x64xbf16>, vector<64x32xbf16>, vector<8x32xf32> -> vector<8x32xf32>
    %575 = vector.broadcast %330 : vector<1x32xf32> to vector<8x32xf32>
    %576 = arith.addf %574, %575 : vector<8x32xf32>
    %577 = arith.addf %564, %576 : vector<8x32xf32>
    %cst_211 = arith.constant dense<0.000000e+00> : vector<8xf32>
    %578 = vector.multi_reduction <add>, %577, %cst_211 [1] : vector<8x32xf32> to vector<8xf32>
    %579 = vector.shape_cast %578 : vector<8xf32> to vector<8x1xf32>
    %cst_212 = arith.constant 3.200000e+01 : f32
    %580 = vector.broadcast %cst_212 : f32 to vector<8x1xf32>
    %581 = arith.divf %579, %580 : vector<8x1xf32>
    %582 = vector.broadcast %581 : vector<8x1xf32> to vector<8x32xf32>
    %583 = arith.subf %577, %582 : vector<8x32xf32>
    %584 = arith.mulf %583, %583 : vector<8x32xf32>
    %cst_213 = arith.constant dense<0.000000e+00> : vector<8xf32>
    %585 = vector.multi_reduction <add>, %584, %cst_213 [1] : vector<8x32xf32> to vector<8xf32>
    %586 = vector.shape_cast %585 : vector<8xf32> to vector<8x1xf32>
    %cst_214 = arith.constant 3.200000e+01 : f32
    %587 = vector.broadcast %cst_214 : f32 to vector<8x1xf32>
    %588 = arith.divf %586, %587 : vector<8x1xf32>
    %cst_215 = arith.constant 9.99999974E-6 : f32
    %589 = vector.broadcast %cst_215 : f32 to vector<8x1xf32>
    %590 = arith.addf %588, %589 : vector<8x1xf32>
    %591 = math.rsqrt %590 : vector<8x1xf32>
    %592 = vector.broadcast %591 : vector<8x1xf32> to vector<8x32xf32>
    %593 = arith.mulf %583, %592 : vector<8x32xf32>
    %594 = vector.broadcast %340 : vector<1x32xf32> to vector<8x32xf32>
    %595 = arith.mulf %593, %594 : vector<8x32xf32>
    %596 = vector.broadcast %342 : vector<1x32xf32> to vector<8x32xf32>
    %597 = arith.addf %595, %596 : vector<8x32xf32>
    %c0_216 = arith.constant 0 : index
    %c0_217 = arith.constant 0 : index
    %598 = vector.load %arg5[%c0_216, %c0_217] : memref<40x128xf32, #tpu.memory_space<vmem>>, vector<32x128xf32>
    %c32_218 = arith.constant 32 : index
    %c0_219 = arith.constant 0 : index
    %599 = vector.load %arg5[%c32_218, %c0_219] : memref<40x128xf32, #tpu.memory_space<vmem>>, vector<1x128xf32>
    %600 = arith.truncf %597 : vector<8x32xf32> to vector<8x32xbf16>
    %601 = arith.truncf %598 : vector<32x128xf32> to vector<32x128xbf16>
    %cst_220 = arith.constant dense<0.000000e+00> : vector<8x128xf32>
    %602 = tpu.matmul %600, %601, %cst_220 {dimension_numbers = #tpu.dot_dimension_numbers<[1], [0], [0], [1], [0, 0, 1, 1], [], []>} : vector<8x32xbf16>, vector<32x128xbf16>, vector<8x128xf32> -> vector<8x128xf32>
    %603 = vector.broadcast %599 : vector<1x128xf32> to vector<8x128xf32>
    %604 = arith.addf %602, %603 : vector<8x128xf32>
    %c0_221 = arith.constant 0 : index
    %c0_222 = arith.constant 0 : index
    %605 = vector.load %arg6[%c0_221, %c0_222] : memref<8x128xf32, #tpu.memory_space<vmem>>, vector<8x128xf32>
    tpu.vector_store %arg6[%c0_221, %c0_222], %604 {strides = array<i32>} : memref<8x128xf32, #tpu.memory_space<vmem>>, vector<8x128xf32>,
    return
  }
  func.func @transform_0(%arg0: i32) -> (i32, i32) {
    %c0_i32 = arith.constant 0 : i32
    %c0_i32_0 = arith.constant 0 : i32
    return %arg0, %c0_i32 : i32, i32
  }
  func.func @transform_1(%arg0: i32) -> (i32, i32) {
    %c0_i32 = arith.constant 0 : i32
    %c0_i32_0 = arith.constant 0 : i32
    return %arg0, %c0_i32 : i32, i32
  }
  func.func @transform_2(%arg0: i32) -> (i32, i32, i32) {
    %c0_i32 = arith.constant 0 : i32
    %c0_i32_0 = arith.constant 0 : i32
    %c0_i32_1 = arith.constant 0 : i32
    %c0_i32_2 = arith.constant 0 : i32
    return %c0_i32, %c0_i32_0, %c0_i32_1 : i32, i32, i32
  }
  func.func @transform_3(%arg0: i32) -> (i32, i32, i32) {
    %c0_i32 = arith.constant 0 : i32
    %c0_i32_0 = arith.constant 0 : i32
    %c0_i32_1 = arith.constant 0 : i32
    %c0_i32_2 = arith.constant 0 : i32
    return %c0_i32, %c0_i32_0, %c0_i32_1 : i32, i32, i32
  }
  func.func @transform_4(%arg0: i32) -> (i32, i32) {
    %c0_i32 = arith.constant 0 : i32
    %c0_i32_0 = arith.constant 0 : i32
    %c0_i32_1 = arith.constant 0 : i32
    return %c0_i32, %c0_i32_0 : i32, i32
  }
  func.func @transform_5(%arg0: i32) -> (i32, i32) {
    %c0_i32 = arith.constant 0 : i32
    %c0_i32_0 = arith.constant 0 : i32
    return %arg0, %c0_i32 : i32, i32
  }
}

</mosaic_0001>

<llo_original>
// kernel: decoder_transformer_forward.1
$region0: #{decoder_transformer_forward.1}
  #allocation0 [shape = 'u32[]', space=smem, size = 0x4, offset = 0x4, fixed_abs, tag = 'smem constant byte address 0x4 - core index']
  #allocation1 [shape = 'u32[144,128]{1,0:T(1,128)}', space=vmem, size = 0x12000, scoped, tag = 'internal scratch']
  %s0 = inlined_call_operand.vmem [shape: f32[16,32], index: 0, kind: input, shape index: {}]
  %s1 = inlined_call_operand.vmem [shape: f32[16,32], index: 1, kind: input, shape index: {}]
  %s2 = inlined_call_operand.vmem [shape: f32[2,256,96], index: 2, kind: input, shape index: {}]
  %s3 = inlined_call_operand.vmem [shape: f32[2,16,96], index: 3, kind: input, shape index: {}]
  %s4 = inlined_call_operand.vmem [shape: f32[40,128], index: 4, kind: input, shape index: {}]
  %s5 = inlined_call_operand.vmem [shape: f32[16,128], index: 5, kind: output, shape index: {}]
  %s6 = sld [smem:[#allocation0]]
  $region53: #{decoder_transformer_forward.1} parent=0
    _
  %s8 = ssub.s32 1, %s6
  %s9 = scalar_select 0, %s8, %s6
  loop: start=0, step=1, limit=4
  $region2: #{decoder_transformer_forward.1} parent=0 // loop_pre_header
    _
  $region3: #{decoder_transformer_forward.1} parent=0 // loop_header
    %s11 = sphi 0, %s15
    %p12 = scmp.ge.s32.totalorder %s11, 4
    %s21 = sphi 0, %s23
    %s24 = sphi 0, %s21
    %s25 = sphi 0, %s24
    %s41 = sphi 0, %s25
    %s47 = sphi 0, %s49
    %s50 = sphi 0, %s47
    %s51 = sphi 0, %s50
    %s67 = sphi 0, %s51
    %s71 = sphi 0, %s71
    %s73 = sphi 0, %s71
    %s74 = sphi 0, %s73
    %s88 = sphi 0, %s74
    %s92 = sphi 0, %s92
    %s94 = sphi 0, %s92
    %s95 = sphi 0, %s94
    %s109 = sphi 0, %s95
    %s113 = sphi 0, %s113
    %s115 = sphi 0, %s113
    %s116 = sphi 0, %s115
    %s130 = sphi 0, %s116
    %s136 = sphi 0, %s138
    %s139 = sphi 0, %s136
    %s140 = sphi 0, %s139
    %s156 = sphi 0, %s140
  $region4: #{decoder_transformer_forward.1} parent=0 // loop_header_branch
    %14 = sbr.rel (%p12) target = $region8
  $region5: #{decoder_transformer_forward.1} parent=0 // loop_body
    %s16 = ssub.s32 %s11, 1
    %s17 = ssub.s32 %s11, 2
    %s18 = sadd.s32 %s11, 1
    %s19 = ssub.s32 %s11, %s18
    %p20 = scmp.eq.s32.totalorder %s19, 0
    %s22 = sadd.s32 %s21, 1
    %s23 = scalar_select %p20, %s21, %s22
    %p26 = pneg %p20
    %p27 = scmp.eq.s32.totalorder %s11, 1
    %p28 = por %p26, %p27
    %p29 = scmp.ne.s32.totalorder %s21, %s24
    %p30 = scmp.eq.s32.totalorder %s11, 0
    %p31 = por %p29, %p30
    %p32 = scmp.ne.s32.totalorder %s21, %s24
    %p33 = scmp.eq.s32.totalorder %s16, 1
    %p34 = por %p32, %p33
    %p35 = scmp.ne.s32.totalorder %s24, %s25
    %p36 = scmp.eq.s32.totalorder %s16, 0
    %p37 = por %p35, %p36
    %p38 = scmp.ne.s32.totalorder %s24, %s25
    %p39 = scmp.eq.s32.totalorder %s17, 1
    %p40 = por %p38, %p39
    %p42 = scmp.ne.s32.totalorder %s25, %s41
    %p43 = scmp.eq.s32.totalorder %s17, 0
    %p44 = por %p42, %p43
    %s45 = ssub.s32 %s11, %s18
    %p46 = scmp.eq.s32.totalorder %s45, 0
    %s48 = sadd.s32 %s47, 1
    %s49 = scalar_select %p46, %s47, %s48
    %p52 = pneg %p46
    %p53 = scmp.eq.s32.totalorder %s11, 1
    %p54 = por %p52, %p53
    %p55 = scmp.ne.s32.totalorder %s47, %s50
    %p56 = scmp.eq.s32.totalorder %s11, 0
    %p57 = por %p55, %p56
    %p58 = scmp.ne.s32.totalorder %s47, %s50
    %p59 = scmp.eq.s32.totalorder %s16, 1
    %p60 = por %p58, %p59
    %p61 = scmp.ne.s32.totalorder %s50, %s51
    %p62 = scmp.eq.s32.totalorder %s16, 0
    %p63 = por %p61, %p62
    %p64 = scmp.ne.s32.totalorder %s50, %s51
    %p65 = scmp.eq.s32.totalorder %s17, 1
    %p66 = por %p64, %p65
    %p68 = scmp.ne.s32.totalorder %s51, %s67
    %p69 = scmp.eq.s32.totalorder %s17, 0
    %p70 = por %p68, %p69
    %s72 = sadd.s32 %s71, 1
    %p75 = scmp.eq.s32.totalorder %s11, 1
    %p76 = scmp.ne.s32.totalorder %s71, %s73
    %p77 = scmp.eq.s32.totalorder %s11, 0
    %p78 = por %p76, %p77
    %p79 = scmp.ne.s32.totalorder %s71, %s73
    %p80 = scmp.eq.s32.totalorder %s16, 1
    %p81 = por %p79, %p80
    %p82 = scmp.ne.s32.totalorder %s73, %s74
    %p83 = scmp.eq.s32.totalorder %s16, 0
    %p84 = por %p82, %p83
    %p85 = scmp.ne.s32.totalorder %s73, %s74
    %p86 = scmp.eq.s32.totalorder %s17, 1
    %p87 = por %p85, %p86
    %p89 = scmp.ne.s32.totalorder %s74, %s88
    %p90 = scmp.eq.s32.totalorder %s17, 0
    %p91 = por %p89, %p90
    %s93 = sadd.s32 %s92, 1
    %p96 = scmp.eq.s32.totalorder %s11, 1
    %p97 = scmp.ne.s32.totalorder %s92, %s94
    %p98 = scmp.eq.s32.totalorder %s11, 0
    %p99 = por %p97, %p98
    %p100 = scmp.ne.s32.totalorder %s92, %s94
    %p101 = scmp.eq.s32.totalorder %s16, 1
    %p102 = por %p100, %p101
    %p103 = scmp.ne.s32.totalorder %s94, %s95
    %p104 = scmp.eq.s32.totalorder %s16, 0
    %p105 = por %p103, %p104
    %p106 = scmp.ne.s32.totalorder %s94, %s95
    %p107 = scmp.eq.s32.totalorder %s17, 1
    %p108 = por %p106, %p107
    %p110 = scmp.ne.s32.totalorder %s95, %s109
    %p111 = scmp.eq.s32.totalorder %s17, 0
    %p112 = por %p110, %p111
    %s114 = sadd.s32 %s113, 1
    %p117 = scmp.eq.s32.totalorder %s11, 1
    %p118 = scmp.ne.s32.totalorder %s113, %s115
    %p119 = scmp.eq.s32.totalorder %s11, 0
    %p120 = por %p118, %p119
    %p121 = scmp.ne.s32.totalorder %s113, %s115
    %p122 = scmp.eq.s32.totalorder %s16, 1
    %p123 = por %p121, %p122
    %p124 = scmp.ne.s32.totalorder %s115, %s116
    %p125 = scmp.eq.s32.totalorder %s16, 0
    %p126 = por %p124, %p125
    %p127 = scmp.ne.s32.totalorder %s115, %s116
    %p128 = scmp.eq.s32.totalorder %s17, 1
    %p129 = por %p127, %p128
    %p131 = scmp.ne.s32.totalorder %s116, %s130
    %p132 = scmp.eq.s32.totalorder %s17, 0
    %p133 = por %p131, %p132
    %s134 = ssub.s32 %s11, %s18
    %p135 = scmp.eq.s32.totalorder %s134, 0
    %s137 = sadd.s32 %s136, 1
    %s138 = scalar_select %p135, %s136, %s137
    %p141 = pneg %p135
    %p142 = scmp.eq.s32.totalorder %s11, 1
    %p143 = por %p141, %p142
    %p144 = scmp.ne.s32.totalorder %s136, %s139
    %p145 = scmp.eq.s32.totalorder %s11, 0
    %p146 = por %p144, %p145
    %p147 = scmp.ne.s32.totalorder %s136, %s139
    %p148 = scmp.eq.s32.totalorder %s16, 1
    %p149 = por %p147, %p148
    %p150 = scmp.ne.s32.totalorder %s139, %s140
    %p151 = scmp.eq.s32.totalorder %s16, 0
    %p152 = por %p150, %p151
    %p153 = scmp.ne.s32.totalorder %s139, %s140
    %p154 = scmp.eq.s32.totalorder %s17, 1
    %p155 = por %p153, %p154
    %p157 = scmp.ne.s32.totalorder %s140, %s156
    %p158 = scmp.eq.s32.totalorder %s17, 0
    %p159 = por %p157, %p158
    %p160 = scmp.le.s32.totalorder 1, %s11
    %p161 = scmp.lt.s32.totalorder %s11, 3
    %p162 = pnand %p160, %p161
    %p163 = pneg %p162
    // Predicated region
    $region9: #{decoder_transformer_forward.1} parent=5 // pred_check
      _
    $region10: #{decoder_transformer_forward.1} parent=5 // pred_check_branch
      %165 = sbr.rel (%p162) target = $region12
    $region11: #{decoder_transformer_forward.1} parent=5 // pred_region
      %s166 = ssub.s32 %s11, 1
      // Predicated region
      $region13: #{decoder_transformer_forward.1} parent=11 // pred_check
        %p167 = pneg %p84
      $region14: #{decoder_transformer_forward.1} parent=11 // pred_check_branch
        %169 = sbr.rel (%p167) target = $region16
      $region15: #{decoder_transformer_forward.1} parent=11 // pred_region
        _
      $region16: #{decoder_transformer_forward.1} parent=11 // pred_fallthru
        _
      // Predicated region
      $region17: #{decoder_transformer_forward.1} parent=11 // pred_check
        %p170 = pneg %p105
      $region18: #{decoder_transformer_forward.1} parent=11 // pred_check_branch
        %172 = sbr.rel (%p170) target = $region20
      $region19: #{decoder_transformer_forward.1} parent=11 // pred_region
        _
      $region20: #{decoder_transformer_forward.1} parent=11 // pred_fallthru
        _
      // Predicated region
      $region21: #{decoder_transformer_forward.1} parent=11 // pred_check
        %p173 = pneg %p126
      $region22: #{decoder_transformer_forward.1} parent=11 // pred_check_branch
        %175 = sbr.rel (%p173) target = $region24
      $region23: #{decoder_transformer_forward.1} parent=11 // pred_region
        _
      $region24: #{decoder_transformer_forward.1} parent=11 // pred_fallthru
        _
    $region12: #{decoder_transformer_forward.1} parent=5 // pred_fallthru
      _
    %p176 = scmp.lt.s32.totalorder %s11, 2
    // Predicated region
    $region25: #{decoder_transformer_forward.1} parent=5 // pred_check
      %p177 = pneg %p176
    $region26: #{decoder_transformer_forward.1} parent=5 // pred_check_branch
      %179 = sbr.rel (%p177) target = $region28
    $region27: #{decoder_transformer_forward.1} parent=5 // pred_region
      // Predicated region
      $region29: #{decoder_transformer_forward.1} parent=27 // pred_check
        %p180 = pneg %p31
      $region30: #{decoder_transformer_forward.1} parent=27 // pred_check_branch
        %182 = sbr.rel (%p180) target = $region32
      $region31: #{decoder_transformer_forward.1} parent=27 // pred_region
        %p183 = scmp.lt.s32.totalorder %s11, 1
        %s184 = scalar_select %p183, %s11, 1
        %s185 = smul.addr %s184, 8
        %s186 = scalar_lea.vmem %s0, %s185
      $region32: #{decoder_transformer_forward.1} parent=27 // pred_fallthru
        _
      // Predicated region
      $region33: #{decoder_transformer_forward.1} parent=27 // pred_check
        %p187 = pneg %p57
      $region34: #{decoder_transformer_forward.1} parent=27 // pred_check_branch
        %189 = sbr.rel (%p187) target = $region36
      $region35: #{decoder_transformer_forward.1} parent=27 // pred_region
        %p190 = scmp.lt.s32.totalorder %s11, 1
        %s191 = scalar_select %p190, %s11, 1
        %s192 = smul.addr %s191, 8
        %s193 = scalar_lea.vmem %s1, %s192
      $region36: #{decoder_transformer_forward.1} parent=27 // pred_fallthru
        _
    $region28: #{decoder_transformer_forward.1} parent=5 // pred_fallthru
      _
    %p194 = scmp.le.s32.totalorder 1, %s11
    %p195 = scmp.lt.s32.totalorder %s11, 3
    %p196 = pnand %p194, %p195
    %p197 = pneg %p196
    // Predicated region
    $region37: #{decoder_transformer_forward.1} parent=5 // pred_check
      _
    $region38: #{decoder_transformer_forward.1} parent=5 // pred_check_branch
      %199 = sbr.rel (%p196) target = $region40
    $region39: #{decoder_transformer_forward.1} parent=5 // pred_region
      %s200 = ssub.s32 %s11, 1
      %p201 = scmp.lt.s32.totalorder %s16, 1
      %s202 = scalar_select %p201, %s16, 1
      %s203 = smul.addr %s202, 8
      %s204 = scalar_lea.vmem %s0, %s203
      %p205 = pneg %p37
      %p206 = pneg %p34
      %p207 = scmp.lt.s32.totalorder %s16, 1
      %s208 = scalar_select %p207, %s16, 1
      %s209 = smul.addr %s208, 8
      %s210 = scalar_lea.vmem %s1, %s209
      %p211 = pneg %p63
      %p212 = pneg %p60
      %p213 = pneg %p84
      %p214 = pneg %p81
      %p215 = pneg %p105
      %p216 = pneg %p102
      %p217 = pneg %p126
      %p218 = pneg %p123
      %p219 = pneg %p152
      %p220 = pneg %p149
      %p221 = scmp.lt.s32.totalorder %s16, 1
      %s222 = scalar_select %p221, %s16, 1
      %s223 = smul.addr %s222, 8
      %s224 = scalar_lea.vmem %s5, %s223
      %p225 = scmp.lt.s32.totalorder %s16, 1
      %s226 = scalar_select %p225, %s16, 1
      %s227 = smul.addr %s226, 8
      %s228 = scalar_lea.vmem %s0, %s227
      %p229 = scmp.lt.s32.totalorder %s16, 1
      %s230 = scalar_select %p229, %s16, 1
      %s231 = smul.addr %s230, 8
      %s232 = scalar_lea.vmem %s1, %s231
      %p233 = scmp.lt.s32.totalorder %s16, 1
      %s234 = scalar_select %p233, %s16, 1
      %s235 = smul.addr %s234, 8
      %s236 = scalar_lea.vmem %s5, %s235
      %v238 = vld [vmem:[%s228] sm:$0xff]
      %v239 = vld [vmem:[%s232] sm:$0xff]
      %v240 = vlaneseq
      %v241 = vshrl.u32 %v240, 7
      %v242 = vlaneseq
      %v243 = vand.u32 %v242, 127
      %vm244 = vcmp.gt.s32.totalorder %v243, %v241
      %v245 = vsel %vm244, -1e+30, 0.0
      %v246 = vld [vmem:[%s2] sm:$0xff]
      %v247 = vld [vmem:[%s2 + $0x8] sm:$0xff]
      %v248 = vld [vmem:[%s2 + $0x10] sm:$0xff]
      %v249 = vld [vmem:[%s2 + $0x18] sm:$0xff]
      %v250 = vld [vmem:[%s2 + $0x20] sm:$0xff]
      %v251 = vld [vmem:[%s2 + $0x28] sm:$0xff]
      %v252 = vld [vmem:[%s2 + $0x30] sm:$0xff]
      %v253 = vld [vmem:[%s2 + $0x38] sm:$0xff]
      %v254 = vld [vmem:[%s2 + $0x40] sm:$0xff]
      %v255 = vld [vmem:[%s2 + $0x48] sm:$0xff]
      %v256 = vld [vmem:[%s2 + $0x50] sm:$0xff]
      %v257 = vld [vmem:[%s2 + $0x58] sm:$0xff]
      %v258 = vld [vmem:[%s2 + $0x60] sm:$0xff]
      %v259 = vld [vmem:[%s2 + $0x68] sm:$0xff]
      %v260 = vld [vmem:[%s2 + $0x70] sm:$0xff]
      %v261 = vld [vmem:[%s2 + $0x78] sm:$0xff]
      %v262 = vld [vmem:[%s2 + $0x80] sm:$0xff]
      %v263 = vld [vmem:[%s2 + $0x88] sm:$0xff]
      %v264 = vld [vmem:[%s2 + $0x90] sm:$0xff]
      %v265 = vld [vmem:[%s2 + $0x98] sm:$0xff]
      %v266 = vld [vmem:[%s2 + $0xa0] sm:$0xff]
      %v267 = vld [vmem:[%s2 + $0xa8] sm:$0xff]
      %v268 = vld [vmem:[%s2 + $0xb0] sm:$0xff]
      %v269 = vld [vmem:[%s2 + $0xb8] sm:$0xff]
      %v270 = vld [vmem:[%s2 + $0xc0] sm:$0xff]
      %v271 = vld [vmem:[%s2 + $0xc8] sm:$0xff]
      %v272 = vld [vmem:[%s2 + $0xd0] sm:$0xff]
      %v273 = vld [vmem:[%s2 + $0xd8] sm:$0xff]
      %v274 = vld [vmem:[%s2 + $0xe0] sm:$0xff]
      %v275 = vld [vmem:[%s2 + $0xe8] sm:$0xff]
      %v276 = vld [vmem:[%s2 + $0xf0] sm:$0xff]
      %v277 = vld [vmem:[%s2 + $0xf8] sm:$0xff]
      %v278 = vld [vmem:[%s3] sm:$0x1]
      %v279 = vld [vmem:[%s3 + $0x1] sm:$0x1]
      %v280 = vld [vmem:[%s3 + $0x2] sm:$0x1]
      %v281 = vld [vmem:[%s3 + $0x3] sm:$0x1]
      %v282 = vld [vmem:[%s3 + $0x4] sm:$0x1]
      %v283 = vld [vmem:[%s3 + $0x5] sm:$0x1]
      %v284 = vld [vmem:[%s3 + $0x6] sm:$0x1]
      %v285 = vld [vmem:[%s3 + $0x7] sm:$0x1]
      %v286 = vld [vmem:[%s3 + $0x8] sm:$0x1]
      %v287 = vld [vmem:[%s3 + $0x9] sm:$0x1]
      %v288 = vld [vmem:[%s3 + $0xa] sm:$0x1]
      %v289 = vld [vmem:[%s3 + $0xb] sm:$0x1]
      %v290 = vld [vmem:[%s3 + $0xc] sm:$0x1]
      %v291 = vpack.c.bf16 %v238, %v238
      %v292 = vpack.c.bf16 %v247, %v246
      %v293 = vpack.c.bf16 %v249, %v248
      %v294 = vlaneseq
      %v295 = vshrl.u32 %v294, 7
      %v296 = vsub.s32 0, %v295
      %v297 = vrot.slane %v278, %v296
      %vm298 = vcmask 261120
      %v300 = vsel %vm298, %v291, 0
      %302 = vmatprep.subr.bf16.mxu0 0
      %303 = vmatpush1.bf16.msra.mxu0 0
      %304 = vmatprep.subr.bf16.mxu0 0
      %305 = vmatpush1.bf16.msra.mxu0 0
      %306 = vmatprep.subr.bf16.mxu0 0
      %307 = vmatpush1.bf16.msra.mxu0 0
      %308 = vmatprep.subr.bf16.mxu0 0
      %309 = vmatpush1.bf16.msra.mxu0 0
      %310 = vmatprep.subr.bf16.mxu0 0
      %311 = vmatpush1.bf16.msra.mxu0 0
      %312 = vmatprep.subr.bf16.mxu0 0
      %313 = vmatpush1.bf16.msra.mxu0 0
      %314 = vmatprep.subr.bf16.mxu0 0
      %315 = vmatpush1.bf16.msra.mxu0 %v293
      %316 = vmatprep.subr.bf16.mxu0 0
      %317 = vmatpush1.bf16.msra.mxu0 %v292
      %318 = vmatprep.subr.bf16.mxu0 0
      %319 = vmatpush2.bf16.msra.mxu0 0
      %320 = vmatprep.subr.bf16.mxu0 0
      %321 = vmatpush2.bf16.msra.mxu0 0
      %322 = vmatprep.subr.bf16.mxu0 0
      %323 = vmatpush2.bf16.msra.mxu0 0
      %324 = vmatprep.subr.bf16.mxu0 0
      %325 = vmatpush2.bf16.msra.mxu0 0
      %326 = vmatprep.subr.bf16.mxu0 0
      %327 = vmatpush2.bf16.msra.mxu0 0
      %328 = vmatprep.subr.bf16.mxu0 0
      %329 = vmatpush2.bf16.msra.mxu0 0
      %330 = vmatprep.subr.bf16.mxu0 0
      %331 = vmatpush2.bf16.msra.mxu0 0
      %332 = vmatprep.subr.bf16.mxu0 0
      %333 = vmatpush2.bf16.msra.mxu0 0
      %334 = vmatprep.mubr.bf16.mxu0 0
      %335 = vmatmul.mubr.bf16.gmra.mxu0 %v300
      %v336 = vpop.f32.mrf.mxu0
      %v337 = vadd.f32 %v297, %v336
      %v338 = vpop.f32.mrf.mxu0
      %v339 = vpop.f32.mrf.mxu0
      %v340 = vpop.f32.mrf.mxu0
      %341 = vdwg.mxu0
      %v342 = vpack.c.bf16 %v337, %v337
      %344 = vrot.lane.b32.xlu0 %v342, 96
      %v345 = vpop.permute.xlu0 %344
      %vm346 = vcmask 64512
      %v348 = vsel %vm346, %v342, 0
      %v351 = vsel %vm346, %v345, 0
      %353 = vmatprep.subr.bf16.mxu0 0
      %354 = vmatpush1.bf16.xpose.msra.mxu0 0
      %355 = vmatprep.subr.bf16.mxu0 0
      %356 = vmatpush1.bf16.xpose.msra.mxu0 0
      %357 = vmatprep.subr.bf16.mxu0 0
      %358 = vmatpush1.bf16.xpose.msra.mxu0 0
      %359 = vmatprep.subr.bf16.mxu0 0
      %360 = vmatpush1.bf16.xpose.msra.mxu0 0
      %361 = vmatprep.subr.bf16.mxu0 0
      %362 = vmatpush1.bf16.xpose.msra.mxu0 0
      %363 = vmatprep.subr.bf16.mxu0 0
      %364 = vmatpush1.bf16.xpose.msra.mxu0 0
      %365 = vmatprep.subr.bf16.mxu0 0
      %366 = vmatpush1.bf16.xpose.msra.mxu0 0
      %367 = vmatprep.subr.bf16.mxu0 0
      %368 = vmatpush1.bf16.xpose.msra.mxu0 %v351
      %369 = vmatprep.subr.bf16.mxu0 0
      %370 = vmatpush2.bf16.xpose.msra.mxu0 0
      %371 = vmatprep.subr.bf16.mxu0 0
      %372 = vmatpush2.bf16.xpose.msra.mxu0 0
      %373 = vmatprep.subr.bf16.mxu0 0
      %374 = vmatpush2.bf16.xpose.msra.mxu0 0
      %375 = vmatprep.subr.bf16.mxu0 0
      %376 = vmatpush2.bf16.xpose.msra.mxu0 0
      %377 = vmatprep.subr.bf16.mxu0 0
      %378 = vmatpush2.bf16.xpose.msra.mxu0 0
      %379 = vmatprep.subr.bf16.mxu0 0
      %380 = vmatpush2.bf16.xpose.msra.mxu0 0
      %381 = vmatprep.subr.bf16.mxu0 0
      %382 = vmatpush2.bf16.xpose.msra.mxu0 0
      %383 = vmatprep.subr.bf16.mxu0 0
      %384 = vmatpush2.bf16.xpose.msra.mxu0 0
      %385 = vmatprep.mubr.bf16.mxu0 0
      %386 = vmatmul.mubr.bf16.gmra.mxu0 %v348
      %v387 = vpop.f32.mrf.mxu0
      %v388 = vadd.f32 %v245, %v387
      %v389 = vpop.f32.mrf.mxu0
      %v390 = vpop.f32.mrf.mxu0
      %v391 = vpop.f32.mrf.mxu0
      %392 = vdwg.mxu0
      %v393 = vsel %vm346, %v388, -inf
      %394 = vmax.xlane.f32.xlu0 %v393
      %v395 = vpop.xlane.xlu0 %394
      %v396 = vsub.f32 %v388, %v395
      %v397 = vmul.f32 %v396, 1.442695
      %v398 = vpow.pop %v397
      %v399 = vsel %vm346, %v398, 0.0
      %400 = vadd.xlane.f32.xlu0 %v399
      %v401 = vpop.xlane.xlu0 %400
      %v402 = vrcp.pop %v401
      %v403 = vmul.f32 %v398, %v402
      %v404 = vpack.c.bf16 %v403, %v403
      %405 = vrot.lane.b32.xlu0 %v342, 64
      %v406 = vpop.permute.xlu0 %405
      %v408 = vsel %vm346, %v404, 0
      %vm410 = vcmask 1043456
      %v412 = vsel %vm410, %v406, 0
      %414 = vmatprep.subr.bf16.mxu0 0
      %415 = vmatpush1.bf16.msra.mxu0 0
      %416 = vmatprep.subr.bf16.mxu0 0
      %417 = vmatpush1.bf16.msra.mxu0 0
      %418 = vmatprep.subr.bf16.mxu0 0
      %419 = vmatpush1.bf16.msra.mxu0 0
      %420 = vmatprep.subr.bf16.mxu0 0
      %421 = vmatpush1.bf16.msra.mxu0 0
      %422 = vmatprep.subr.bf16.mxu0 0
      %423 = vmatpush1.bf16.msra.mxu0 0
      %424 = vmatprep.subr.bf16.mxu0 0
      %425 = vmatpush1.bf16.msra.mxu0 0
      %426 = vmatprep.subr.bf16.mxu0 0
      %427 = vmatpush1.bf16.msra.mxu0 0
      %428 = vmatprep.subr.bf16.mxu0 0
      %429 = vmatpush1.bf16.msra.mxu0 %v412
      %430 = vmatprep.subr.bf16.mxu0 0
      %431 = vmatpush2.bf16.msra.mxu0 0
      %432 = vmatprep.subr.bf16.mxu0 0
      %433 = vmatpush2.bf16.msra.mxu0 0
      %434 = vmatprep.subr.bf16.mxu0 0
      %435 = vmatpush2.bf16.msra.mxu0 0
      %436 = vmatprep.subr.bf16.mxu0 0
      %437 = vmatpush2.bf16.msra.mxu0 0
      %438 = vmatprep.subr.bf16.mxu0 0
      %439 = vmatpush2.bf16.msra.mxu0 0
      %440 = vmatprep.subr.bf16.mxu0 0
      %441 = vmatpush2.bf16.msra.mxu0 0
      %442 = vmatprep.subr.bf16.mxu0 0
      %443 = vmatpush2.bf16.msra.mxu0 0
      %444 = vmatprep.subr.bf16.mxu0 0
      %445 = vmatpush2.bf16.msra.mxu0 0
      %446 = vmatprep.mubr.bf16.mxu0 0
      %447 = vmatmul.mubr.bf16.gmra.mxu0 %v408
      %v448 = vpop.f32.mrf.mxu0
      %v449 = vadd.f32 0.0, %v448
      %v450 = vpop.f32.mrf.mxu0
      %v451 = vpop.f32.mrf.mxu0
      %v452 = vpop.f32.mrf.mxu0
      %453 = vdwg.mxu0
      %454 = vrot.lane.b32.xlu0 %v342, 120
      %v455 = vpop.permute.xlu0 %454
      %456 = vrot.lane.b32.xlu0 %v342, 88
      %v457 = vpop.permute.xlu0 %456
      %v459 = vsel %vm346, %v455, 0
      %v462 = vsel %vm346, %v457, 0
      %464 = vmatprep.subr.bf16.mxu0 0
      %465 = vmatpush1.bf16.xpose.msra.mxu0 0
      %466 = vmatprep.subr.bf16.mxu0 0
      %467 = vmatpush1.bf16.xpose.msra.mxu0 0
      %468 = vmatprep.subr.bf16.mxu0 0
      %469 = vmatpush1.bf16.xpose.msra.mxu0 0
      %470 = vmatprep.subr.bf16.mxu0 0
      %471 = vmatpush1.bf16.xpose.msra.mxu0 0
      %472 = vmatprep.subr.bf16.mxu0 0
      %473 = vmatpush1.bf16.xpose.msra.mxu0 0
      %474 = vmatprep.subr.bf16.mxu0 0
      %475 = vmatpush1.bf16.xpose.msra.mxu0 0
      %476 = vmatprep.subr.bf16.mxu0 0
      %477 = vmatpush1.bf16.xpose.msra.mxu0 0
      %478 = vmatprep.subr.bf16.mxu0 0
      %479 = vmatpush1.bf16.xpose.msra.mxu0 %v462
      %480 = vmatprep.subr.bf16.mxu0 0
      %481 = vmatpush2.bf16.xpose.msra.mxu0 0
      %482 = vmatprep.subr.bf16.mxu0 0
      %483 = vmatpush2.bf16.xpose.msra.mxu0 0
      %484 = vmatprep.subr.bf16.mxu0 0
      %485 = vmatpush2.bf16.xpose.msra.mxu0 0
      %486 = vmatprep.subr.bf16.mxu0 0
      %487 = vmatpush2.bf16.xpose.msra.mxu0 0
      %488 = vmatprep.subr.bf16.mxu0 0
      %489 = vmatpush2.bf16.xpose.msra.mxu0 0
      %490 = vmatprep.subr.bf16.mxu0 0
      %491 = vmatpush2.bf16.xpose.msra.mxu0 0
      %492 = vmatprep.subr.bf16.mxu0 0
      %493 = vmatpush2.bf16.xpose.msra.mxu0 0
      %494 = vmatprep.subr.bf16.mxu0 0
      %495 = vmatpush2.bf16.xpose.msra.mxu0 0
      %496 = vmatprep.mubr.bf16.mxu0 0
      %497 = vmatmul.mubr.bf16.gmra.mxu0 %v459
      %v498 = vpop.f32.mrf.mxu0
      %v499 = vadd.f32 %v245, %v498
      %v500 = vpop.f32.mrf.mxu0
      %v501 = vpop.f32.mrf.mxu0
      %v502 = vpop.f32.mrf.mxu0
      %503 = vdwg.mxu0
      %v504 = vsel %vm346, %v499, -inf
      %505 = vmax.xlane.f32.xlu0 %v504
      %v506 = vpop.xlane.xlu0 %505
      %v507 = vsub.f32 %v499, %v506
      %v508 = vmul.f32 %v507, 1.442695
      %v509 = vpow.pop %v508
      %v510 = vsel %vm346, %v509, 0.0
      %511 = vadd.xlane.f32.xlu0 %v510
      %v512 = vpop.xlane.xlu0 %511
      %v513 = vrcp.pop %v512
      %v514 = vmul.f32 %v509, %v513
      %v515 = vpack.c.bf16 %v514, %v514
      %516 = vrot.lane.b32.xlu0 %v342, 56
      %v517 = vpop.permute.xlu0 %516
      %v519 = vsel %vm346, %v515, 0
      %v522 = vsel %vm410, %v517, 0
      %524 = vmatprep.subr.bf16.mxu0 0
      %525 = vmatpush1.bf16.msra.mxu0 0
      %526 = vmatprep.subr.bf16.mxu0 0
      %527 = vmatpush1.bf16.msra.mxu0 0
      %528 = vmatprep.subr.bf16.mxu0 0
      %529 = vmatpush1.bf16.msra.mxu0 0
      %530 = vmatprep.subr.bf16.mxu0 0
      %531 = vmatpush1.bf16.msra.mxu0 0
      %532 = vmatprep.subr.bf16.mxu0 0
      %533 = vmatpush1.bf16.msra.mxu0 0
      %534 = vmatprep.subr.bf16.mxu0 0
      %535 = vmatpush1.bf16.msra.mxu0 0
      %536 = vmatprep.subr.bf16.mxu0 0
      %537 = vmatpush1.bf16.msra.mxu0 0
      %538 = vmatprep.subr.bf16.mxu0 0
      %539 = vmatpush1.bf16.msra.mxu0 %v522
      %540 = vmatprep.subr.bf16.mxu0 0
      %541 = vmatpush2.bf16.msra.mxu0 0
      %542 = vmatprep.subr.bf16.mxu0 0
      %543 = vmatpush2.bf16.msra.mxu0 0
      %544 = vmatprep.subr.bf16.mxu0 0
      %545 = vmatpush2.bf16.msra.mxu0 0
      %546 = vmatprep.subr.bf16.mxu0 0
      %547 = vmatpush2.bf16.msra.mxu0 0
      %548 = vmatprep.subr.bf16.mxu0 0
      %549 = vmatpush2.bf16.msra.mxu0 0
      %550 = vmatprep.subr.bf16.mxu0 0
      %551 = vmatpush2.bf16.msra.mxu0 0
      %552 = vmatprep.subr.bf16.mxu0 0
      %553 = vmatpush2.bf16.msra.mxu0 0
      %554 = vmatprep.subr.bf16.mxu0 0
      %555 = vmatpush2.bf16.msra.mxu0 0
      %556 = vmatprep.mubr.bf16.mxu0 0
      %557 = vmatmul.mubr.bf16.gmra.mxu0 %v519
      %v558 = vpop.f32.mrf.mxu0
      %v559 = vadd.f32 0.0, %v558
      %v560 = vpop.f32.mrf.mxu0
      %v561 = vpop.f32.mrf.mxu0
      %v562 = vpop.f32.mrf.mxu0
      %563 = vdwg.mxu0
      %564 = vrot.lane.b32.xlu0 %v342, 112
      %v565 = vpop.permute.xlu0 %564
      %566 = vrot.lane.b32.xlu0 %v342, 80
      %v567 = vpop.permute.xlu0 %566
      %v569 = vsel %vm346, %v565, 0
      %v572 = vsel %vm346, %v567, 0
      %574 = vmatprep.subr.bf16.mxu0 0
      %575 = vmatpush1.bf16.xpose.msra.mxu0 0
      %576 = vmatprep.subr.bf16.mxu0 0
      %577 = vmatpush1.bf16.xpose.msra.mxu0 0
      %578 = vmatprep.subr.bf16.mxu0 0
      %579 = vmatpush1.bf16.xpose.msra.mxu0 0
      %580 = vmatprep.subr.bf16.mxu0 0
      %581 = vmatpush1.bf16.xpose.msra.mxu0 0
      %582 = vmatprep.subr.bf16.mxu0 0
      %583 = vmatpush1.bf16.xpose.msra.mxu0 0
      %584 = vmatprep.subr.bf16.mxu0 0
      %585 = vmatpush1.bf16.xpose.msra.mxu0 0
      %586 = vmatprep.subr.bf16.mxu0 0
      %587 = vmatpush1.bf16.xpose.msra.mxu0 0
      %588 = vmatprep.subr.bf16.mxu0 0
      %589 = vmatpush1.bf16.xpose.msra.mxu0 %v572
      %590 = vmatprep.subr.bf16.mxu0 0
      %591 = vmatpush2.bf16.xpose.msra.mxu0 0
      %592 = vmatprep.subr.bf16.mxu0 0
      %593 = vmatpush2.bf16.xpose.msra.mxu0 0
      %594 = vmatprep.subr.bf16.mxu0 0
      %595 = vmatpush2.bf16.xpose.msra.mxu0 0
      %596 = vmatprep.subr.bf16.mxu0 0
      %597 = vmatpush2.bf16.xpose.msra.mxu0 0
      %598 = vmatprep.subr.bf16.mxu0 0
      %599 = vmatpush2.bf16.xpose.msra.mxu0 0
      %600 = vmatprep.subr.bf16.mxu0 0
      %601 = vmatpush2.bf16.xpose.msra.mxu0 0
      %602 = vmatprep.subr.bf16.mxu0 0
      %603 = vmatpush2.bf16.xpose.msra.mxu0 0
      %604 = vmatprep.subr.bf16.mxu0 0
      %605 = vmatpush2.bf16.xpose.msra.mxu0 0
      %606 = vmatprep.mubr.bf16.mxu0 0
      %607 = vmatmul.mubr.bf16.gmra.mxu0 %v569
      %v608 = vpop.f32.mrf.mxu0
      %v609 = vadd.f32 %v245, %v608
      %v610 = vpop.f32.mrf.mxu0
      %v611 = vpop.f32.mrf.mxu0
      %v612 = vpop.f32.mrf.mxu0
      %613 = vdwg.mxu0
      %v614 = vsel %vm346, %v609, -inf
      %615 = vmax.xlane.f32.xlu0 %v614
      %v616 = vpop.xlane.xlu0 %615
      %v617 = vsub.f32 %v609, %v616
      %v618 = vmul.f32 %v617, 1.442695
      %v619 = vpow.pop %v618
      %v620 = vsel %vm346, %v619, 0.0
      %621 = vadd.xlane.f32.xlu0 %v620
      %v622 = vpop.xlane.xlu0 %621
      %v623 = vrcp.pop %v622
      %v624 = vmul.f32 %v619, %v623
      %v625 = vpack.c.bf16 %v624, %v624
      %626 = vrot.lane.b32.xlu0 %v342, 48
      %v627 = vpop.permute.xlu0 %626
      %v629 = vsel %vm346, %v625, 0
      %v632 = vsel %vm410, %v627, 0
      %634 = vmatprep.subr.bf16.mxu0 0
      %635 = vmatpush1.bf16.msra.mxu0 0
      %636 = vmatprep.subr.bf16.mxu0 0
      %637 = vmatpush1.bf16.msra.mxu0 0
      %638 = vmatprep.subr.bf16.mxu0 0
      %639 = vmatpush1.bf16.msra.mxu0 0
      %640 = vmatprep.subr.bf16.mxu0 0
      %641 = vmatpush1.bf16.msra.mxu0 0
      %642 = vmatprep.subr.bf16.mxu0 0
      %643 = vmatpush1.bf16.msra.mxu0 0
      %644 = vmatprep.subr.bf16.mxu0 0
      %645 = vmatpush1.bf16.msra.mxu0 0
      %646 = vmatprep.subr.bf16.mxu0 0
      %647 = vmatpush1.bf16.msra.mxu0 0
      %648 = vmatprep.subr.bf16.mxu0 0
      %649 = vmatpush1.bf16.msra.mxu0 %v632
      %650 = vmatprep.subr.bf16.mxu0 0
      %651 = vmatpush2.bf16.msra.mxu0 0
      %652 = vmatprep.subr.bf16.mxu0 0
      %653 = vmatpush2.bf16.msra.mxu0 0
      %654 = vmatprep.subr.bf16.mxu0 0
      %655 = vmatpush2.bf16.msra.mxu0 0
      %656 = vmatprep.subr.bf16.mxu0 0
      %657 = vmatpush2.bf16.msra.mxu0 0
      %658 = vmatprep.subr.bf16.mxu0 0
      %659 = vmatpush2.bf16.msra.mxu0 0
      %660 = vmatprep.subr.bf16.mxu0 0
      %661 = vmatpush2.bf16.msra.mxu0 0
      %662 = vmatprep.subr.bf16.mxu0 0
      %663 = vmatpush2.bf16.msra.mxu0 0
      %664 = vmatprep.subr.bf16.mxu0 0
      %665 = vmatpush2.bf16.msra.mxu0 0
      %666 = vmatprep.mubr.bf16.mxu0 0
      %667 = vmatmul.mubr.bf16.gmra.mxu0 %v629
      %v668 = vpop.f32.mrf.mxu0
      %v669 = vadd.f32 0.0, %v668
      %v670 = vpop.f32.mrf.mxu0
      %v671 = vpop.f32.mrf.mxu0
      %v672 = vpop.f32.mrf.mxu0
      %673 = vdwg.mxu0
      %674 = vrot.lane.b32.xlu0 %v342, 104
      %v675 = vpop.permute.xlu0 %674
      %676 = vrot.lane.b32.xlu0 %v342, 72
      %v677 = vpop.permute.xlu0 %676
      %v679 = vsel %vm346, %v675, 0
      %v682 = vsel %vm346, %v677, 0
      %684 = vmatprep.subr.bf16.mxu0 0
      %685 = vmatpush1.bf16.xpose.msra.mxu0 0
      %686 = vmatprep.subr.bf16.mxu0 0
      %687 = vmatpush1.bf16.xpose.msra.mxu0 0
      %688 = vmatprep.subr.bf16.mxu0 0
      %689 = vmatpush1.bf16.xpose.msra.mxu0 0
      %690 = vmatprep.subr.bf16.mxu0 0
      %691 = vmatpush1.bf16.xpose.msra.mxu0 0
      %692 = vmatprep.subr.bf16.mxu0 0
      %693 = vmatpush1.bf16.xpose.msra.mxu0 0
      %694 = vmatprep.subr.bf16.mxu0 0
      %695 = vmatpush1.bf16.xpose.msra.mxu0 0
      %696 = vmatprep.subr.bf16.mxu0 0
      %697 = vmatpush1.bf16.xpose.msra.mxu0 0
      %698 = vmatprep.subr.bf16.mxu0 0
      %699 = vmatpush1.bf16.xpose.msra.mxu0 %v682
      %700 = vmatprep.subr.bf16.mxu0 0
      %701 = vmatpush2.bf16.xpose.msra.mxu0 0
      %702 = vmatprep.subr.bf16.mxu0 0
      %703 = vmatpush2.bf16.xpose.msra.mxu0 0
      %704 = vmatprep.subr.bf16.mxu0 0
      %705 = vmatpush2.bf16.xpose.msra.mxu0 0
      %706 = vmatprep.subr.bf16.mxu0 0
      %707 = vmatpush2.bf16.xpose.msra.mxu0 0
      %708 = vmatprep.subr.bf16.mxu0 0
      %709 = vmatpush2.bf16.xpose.msra.mxu0 0
      %710 = vmatprep.subr.bf16.mxu0 0
      %711 = vmatpush2.bf16.xpose.msra.mxu0 0
      %712 = vmatprep.subr.bf16.mxu0 0
      %713 = vmatpush2.bf16.xpose.msra.mxu0 0
      %714 = vmatprep.subr.bf16.mxu0 0
      %715 = vmatpush2.bf16.xpose.msra.mxu0 0
      %716 = vmatprep.mubr.bf16.mxu0 0
      %717 = vmatmul.mubr.bf16.gmra.mxu0 %v679
      %v718 = vpop.f32.mrf.mxu0
      %v719 = vadd.f32 %v245, %v718
      %v720 = vpop.f32.mrf.mxu0
      %v721 = vpop.f32.mrf.mxu0
      %v722 = vpop.f32.mrf.mxu0
      %723 = vdwg.mxu0
      %v724 = vsel %vm346, %v719, -inf
      %725 = vmax.xlane.f32.xlu0 %v724
      %v726 = vpop.xlane.xlu0 %725
      %v727 = vsub.f32 %v719, %v726
      %v728 = vmul.f32 %v727, 1.442695
      %v729 = vpow.pop %v728
      %v730 = vsel %vm346, %v729, 0.0
      %731 = vadd.xlane.f32.xlu0 %v730
      %v732 = vpop.xlane.xlu0 %731
      %v733 = vrcp.pop %v732
      %v734 = vmul.f32 %v729, %v733
      %v735 = vpack.c.bf16 %v734, %v734
      %736 = vrot.lane.b32.xlu0 %v342, 40
      %v737 = vpop.permute.xlu0 %736
      %v739 = vsel %vm346, %v735, 0
      %v742 = vsel %vm410, %v737, 0
      %744 = vmatprep.subr.bf16.mxu0 0
      %745 = vmatpush1.bf16.msra.mxu0 0
      %746 = vmatprep.subr.bf16.mxu0 0
      %747 = vmatpush1.bf16.msra.mxu0 0
      %748 = vmatprep.subr.bf16.mxu0 0
      %749 = vmatpush1.bf16.msra.mxu0 0
      %750 = vmatprep.subr.bf16.mxu0 0
      %751 = vmatpush1.bf16.msra.mxu0 0
      %752 = vmatprep.subr.bf16.mxu0 0
      %753 = vmatpush1.bf16.msra.mxu0 0
      %754 = vmatprep.subr.bf16.mxu0 0
      %755 = vmatpush1.bf16.msra.mxu0 0
      %756 = vmatprep.subr.bf16.mxu0 0
      %757 = vmatpush1.bf16.msra.mxu0 0
      %758 = vmatprep.subr.bf16.mxu0 0
      %759 = vmatpush1.bf16.msra.mxu0 %v742
      %760 = vmatprep.subr.bf16.mxu0 0
      %761 = vmatpush2.bf16.msra.mxu0 0
      %762 = vmatprep.subr.bf16.mxu0 0
      %763 = vmatpush2.bf16.msra.mxu0 0
      %764 = vmatprep.subr.bf16.mxu0 0
      %765 = vmatpush2.bf16.msra.mxu0 0
      %766 = vmatprep.subr.bf16.mxu0 0
      %767 = vmatpush2.bf16.msra.mxu0 0
      %768 = vmatprep.subr.bf16.mxu0 0
      %769 = vmatpush2.bf16.msra.mxu0 0
      %770 = vmatprep.subr.bf16.mxu0 0
      %771 = vmatpush2.bf16.msra.mxu0 0
      %772 = vmatprep.subr.bf16.mxu0 0
      %773 = vmatpush2.bf16.msra.mxu0 0
      %774 = vmatprep.subr.bf16.mxu0 0
      %775 = vmatpush2.bf16.msra.mxu0 0
      %776 = vmatprep.mubr.bf16.mxu0 0
      %777 = vmatmul.mubr.bf16.gmra.mxu0 %v739
      %v778 = vpop.f32.mrf.mxu0
      %v779 = vadd.f32 0.0, %v778
      %v780 = vpop.f32.mrf.mxu0
      %v781 = vpop.f32.mrf.mxu0
      %v782 = vpop.f32.mrf.mxu0
      %783 = vdwg.mxu0
      %785 = vrot.lane.b32.xlu0 %v559, 8
      %v786 = vpop.permute.xlu0 %785
      %789 = vrot.lane.b32.xlu0 %v669, 16
      %v790 = vpop.permute.xlu0 %789
      %793 = vrot.lane.b32.xlu0 %v779, 24
      %v794 = vpop.permute.xlu0 %793
      %v796 = vsel %vm346, %v449, %v786
      %vm797 = vcmask 130048
      %v798 = vsel %vm797, %v796, %v790
      %vm799 = vcmask 195584
      %v800 = vsel %vm799, %v798, %v794
      %v801 = vpack.c.bf16 %v800, %v800
      %v802 = vpack.c.bf16 %v251, %v250
      %v803 = vpack.c.bf16 %v253, %v252
      %v804 = vlaneseq
      %v805 = vshrl.u32 %v804, 7
      %v806 = vsub.s32 0, %v805
      %v807 = vrot.slane %v279, %v806
      %v809 = vsel %vm298, %v801, 0
      %811 = vmatprep.subr.bf16.mxu0 0
      %812 = vmatpush1.bf16.msra.mxu0 0
      %813 = vmatprep.subr.bf16.mxu0 0
      %814 = vmatpush1.bf16.msra.mxu0 0
      %815 = vmatprep.subr.bf16.mxu0 0
      %816 = vmatpush1.bf16.msra.mxu0 0
      %817 = vmatprep.subr.bf16.mxu0 0
      %818 = vmatpush1.bf16.msra.mxu0 0
      %819 = vmatprep.subr.bf16.mxu0 0
      %820 = vmatpush1.bf16.msra.mxu0 0
      %821 = vmatprep.subr.bf16.mxu0 0
      %822 = vmatpush1.bf16.msra.mxu0 0
      %823 = vmatprep.subr.bf16.mxu0 0
      %824 = vmatpush1.bf16.msra.mxu0 %v803
      %825 = vmatprep.subr.bf16.mxu0 0
      %826 = vmatpush1.bf16.msra.mxu0 %v802
      %827 = vmatprep.subr.bf16.mxu0 0
      %828 = vmatpush2.bf16.msra.mxu0 0
      %829 = vmatprep.subr.bf16.mxu0 0
      %830 = vmatpush2.bf16.msra.mxu0 0
      %831 = vmatprep.subr.bf16.mxu0 0
      %832 = vmatpush2.bf16.msra.mxu0 0
      %833 = vmatprep.subr.bf16.mxu0 0
      %834 = vmatpush2.bf16.msra.mxu0 0
      %835 = vmatprep.subr.bf16.mxu0 0
      %836 = vmatpush2.bf16.msra.mxu0 0
      %837 = vmatprep.subr.bf16.mxu0 0
      %838 = vmatpush2.bf16.msra.mxu0 0
      %839 = vmatprep.subr.bf16.mxu0 0
      %840 = vmatpush2.bf16.msra.mxu0 0
      %841 = vmatprep.subr.bf16.mxu0 0
      %842 = vmatpush2.bf16.msra.mxu0 0
      %843 = vmatprep.mubr.bf16.mxu0 0
      %844 = vmatmul.mubr.bf16.gmra.mxu0 %v809
      %v845 = vpop.f32.mrf.mxu0
      %v846 = vadd.f32 %v807, %v845
      %v847 = vpop.f32.mrf.mxu0
      %v848 = vpop.f32.mrf.mxu0
      %v849 = vpop.f32.mrf.mxu0
      %850 = vdwg.mxu0
      %v851 = vadd.f32 %v238, %v846
      %v852 = vsel %vm298, %v851, 0.0
      %853 = vadd.xlane.f32.xlu0 %v852
      %v854 = vpop.xlane.xlu0 %853
      %v855 = vrcp.pop 32.0
      %v856 = vmul.f32 %v854, %v855
      %v857 = vsub.f32 %v851, %v856
      %v858 = vmul.f32 %v857, %v857
      %v859 = vsel %vm298, %v858, 0.0
      %860 = vadd.xlane.f32.xlu0 %v859
      %v861 = vpop.xlane.xlu0 %860
      %v862 = vmul.f32 %v861, %v855
      %v863 = vadd.f32 %v862, 1e-05
      %v864 = vrsqrt.pop %v863
      %v865 = vmul.f32 %v857, %v864
      %v866 = vlaneseq
      %v867 = vshrl.u32 %v866, 7
      %v868 = vsub.s32 0, %v867
      %v869 = vrot.slane %v285, %v868
      %v870 = vmul.f32 %v865, %v869
      %v871 = vlaneseq
      %v872 = vshrl.u32 %v871, 7
      %v873 = vsub.s32 0, %v872
      %v874 = vrot.slane %v286, %v873
      %v875 = vadd.f32 %v870, %v874
      %v876 = vpack.c.bf16 %v875, %v875
      %v877 = vpack.c.bf16 %v255, %v254
      %v878 = vpack.c.bf16 %v257, %v256
      %v879 = vlaneseq
      %v880 = vshrl.u32 %v879, 7
      %v881 = vsub.s32 0, %v880
      %v882 = vrot.slane %v280, %v881
      %v884 = vsel %vm298, %v876, 0
      %886 = vmatprep.subr.bf16.mxu0 0
      %887 = vmatpush1.bf16.msra.mxu0 0
      %888 = vmatprep.subr.bf16.mxu0 0
      %889 = vmatpush1.bf16.msra.mxu0 0
      %890 = vmatprep.subr.bf16.mxu0 0
      %891 = vmatpush1.bf16.msra.mxu0 0
      %892 = vmatprep.subr.bf16.mxu0 0
      %893 = vmatpush1.bf16.msra.mxu0 0
      %894 = vmatprep.subr.bf16.mxu0 0
      %895 = vmatpush1.bf16.msra.mxu0 0
      %896 = vmatprep.subr.bf16.mxu0 0
      %897 = vmatpush1.bf16.msra.mxu0 0
      %898 = vmatprep.subr.bf16.mxu0 0
      %899 = vmatpush1.bf16.msra.mxu0 %v878
      %900 = vmatprep.subr.bf16.mxu0 0
      %901 = vmatpush1.bf16.msra.mxu0 %v877
      %902 = vmatprep.subr.bf16.mxu0 0
      %903 = vmatpush2.bf16.msra.mxu0 0
      %904 = vmatprep.subr.bf16.mxu0 0
      %905 = vmatpush2.bf16.msra.mxu0 0
      %906 = vmatprep.subr.bf16.mxu0 0
      %907 = vmatpush2.bf16.msra.mxu0 0
      %908 = vmatprep.subr.bf16.mxu0 0
      %909 = vmatpush2.bf16.msra.mxu0 0
      %910 = vmatprep.subr.bf16.mxu0 0
      %911 = vmatpush2.bf16.msra.mxu0 0
      %912 = vmatprep.subr.bf16.mxu0 0
      %913 = vmatpush2.bf16.msra.mxu0 0
      %914 = vmatprep.subr.bf16.mxu0 0
      %915 = vmatpush2.bf16.msra.mxu0 0
      %916 = vmatprep.subr.bf16.mxu0 0
      %917 = vmatpush2.bf16.msra.mxu0 0
      %918 = vmatprep.mubr.bf16.mxu0 0
      %919 = vmatmul.mubr.bf16.gmra.mxu0 %v884
      %v920 = vpop.f32.mrf.mxu0
      %v921 = vadd.f32 %v882, %v920
      %v922 = vpop.f32.mrf.mxu0
      %v923 = vpop.f32.mrf.mxu0
      %v924 = vpop.f32.mrf.mxu0
      %925 = vdwg.mxu0
      %v926 = vpack.c.bf16 %v239, %v239
      %v927 = vpack.c.bf16 %v259, %v258
      %v928 = vpack.c.bf16 %v261, %v260
      %v929 = vlaneseq
      %v930 = vshrl.u32 %v929, 7
      %v931 = vsub.s32 0, %v930
      %v932 = vrot.slane %v281, %v931
      %v934 = vsel %vm298, %v926, 0
      %936 = vmatprep.subr.bf16.mxu0 0
      %937 = vmatpush1.bf16.msra.mxu0 0
      %938 = vmatprep.subr.bf16.mxu0 0
      %939 = vmatpush1.bf16.msra.mxu0 0
      %940 = vmatprep.subr.bf16.mxu0 0
      %941 = vmatpush1.bf16.msra.mxu0 0
      %942 = vmatprep.subr.bf16.mxu0 0
      %943 = vmatpush1.bf16.msra.mxu0 0
      %944 = vmatprep.subr.bf16.mxu0 0
      %945 = vmatpush1.bf16.msra.mxu0 0
      %946 = vmatprep.subr.bf16.mxu0 0
      %947 = vmatpush1.bf16.msra.mxu0 0
      %948 = vmatprep.subr.bf16.mxu0 0
      %949 = vmatpush1.bf16.msra.mxu0 %v928
      %950 = vmatprep.subr.bf16.mxu0 0
      %951 = vmatpush1.bf16.msra.mxu0 %v927
      %952 = vmatprep.subr.bf16.mxu0 0
      %953 = vmatpush2.bf16.msra.mxu0 0
      %954 = vmatprep.subr.bf16.mxu0 0
      %955 = vmatpush2.bf16.msra.mxu0 0
      %956 = vmatprep.subr.bf16.mxu0 0
      %957 = vmatpush2.bf16.msra.mxu0 0
      %958 = vmatprep.subr.bf16.mxu0 0
      %959 = vmatpush2.bf16.msra.mxu0 0
      %960 = vmatprep.subr.bf16.mxu0 0
      %961 = vmatpush2.bf16.msra.mxu0 0
      %962 = vmatprep.subr.bf16.mxu0 0
      %963 = vmatpush2.bf16.msra.mxu0 0
      %964 = vmatprep.subr.bf16.mxu0 0
      %965 = vmatpush2.bf16.msra.mxu0 0
      %966 = vmatprep.subr.bf16.mxu0 0
      %967 = vmatpush2.bf16.msra.mxu0 0
      %968 = vmatprep.mubr.bf16.mxu0 0
      %969 = vmatmul.mubr.bf16.gmra.mxu0 %v934
      %v970 = vpop.f32.mrf.mxu0
      %v971 = vadd.f32 %v932, %v970
      %v972 = vpop.f32.mrf.mxu0
      %v973 = vpop.f32.mrf.mxu0
      %v974 = vpop.f32.mrf.mxu0
      %975 = vdwg.mxu0
      %v976 = vpack.c.bf16 %v921, %v921
      %v977 = vpack.c.bf16 %v971, %v971
      %v979 = vsel %vm346, %v976, 0
      %v982 = vsel %vm346, %v977, 0
      %984 = vmatprep.subr.bf16.mxu0 0
      %985 = vmatpush1.bf16.xpose.msra.mxu0 0
      %986 = vmatprep.subr.bf16.mxu0 0
      %987 = vmatpush1.bf16.xpose.msra.mxu0 0
      %988 = vmatprep.subr.bf16.mxu0 0
      %989 = vmatpush1.bf16.xpose.msra.mxu0 0
      %990 = vmatprep.subr.bf16.mxu0 0
      %991 = vmatpush1.bf16.xpose.msra.mxu0 0
      %992 = vmatprep.subr.bf16.mxu0 0
      %993 = vmatpush1.bf16.xpose.msra.mxu0 0
      %994 = vmatprep.subr.bf16.mxu0 0
      %995 = vmatpush1.bf16.xpose.msra.mxu0 0
      %996 = vmatprep.subr.bf16.mxu0 0
      %997 = vmatpush1.bf16.xpose.msra.mxu0 0
      %998 = vmatprep.subr.bf16.mxu0 0
      %999 = vmatpush1.bf16.xpose.msra.mxu0 %v982
      %1000 = vmatprep.subr.bf16.mxu0 0
      %1001 = vmatpush2.bf16.xpose.msra.mxu0 0
      %1002 = vmatprep.subr.bf16.mxu0 0
      %1003 = vmatpush2.bf16.xpose.msra.mxu0 0
      %1004 = vmatprep.subr.bf16.mxu0 0
      %1005 = vmatpush2.bf16.xpose.msra.mxu0 0
      %1006 = vmatprep.subr.bf16.mxu0 0
      %1007 = vmatpush2.bf16.xpose.msra.mxu0 0
      %1008 = vmatprep.subr.bf16.mxu0 0
      %1009 = vmatpush2.bf16.xpose.msra.mxu0 0
      %1010 = vmatprep.subr.bf16.mxu0 0
      %1011 = vmatpush2.bf16.xpose.msra.mxu0 0
      %1012 = vmatprep.subr.bf16.mxu0 0
      %1013 = vmatpush2.bf16.xpose.msra.mxu0 0
      %1014 = vmatprep.subr.bf16.mxu0 0
      %1015 = vmatpush2.bf16.xpose.msra.mxu0 0
      %1016 = vmatprep.mubr.bf16.mxu0 0
      %1017 = vmatmul.mubr.bf16.gmra.mxu0 %v979
      %v1018 = vpop.f32.mrf.mxu0
      %v1019 = vadd.f32 0.0, %v1018
      %v1020 = vpop.f32.mrf.mxu0
      %v1021 = vpop.f32.mrf.mxu0
      %v1022 = vpop.f32.mrf.mxu0
      %1023 = vdwg.mxu0
      %v1024 = vsel %vm346, %v1019, -inf
      %1025 = vmax.xlane.f32.xlu0 %v1024
      %v1026 = vpop.xlane.xlu0 %1025
      %v1027 = vsub.f32 %v1019, %v1026
      %v1028 = vmul.f32 %v1027, 1.442695
      %v1029 = vpow.pop %v1028
      %v1030 = vsel %vm346, %v1029, 0.0
      %1031 = vadd.xlane.f32.xlu0 %v1030
      %v1032 = vpop.xlane.xlu0 %1031
      %v1033 = vrcp.pop %v1032
      %v1034 = vmul.f32 %v1029, %v1033
      %v1035 = vpack.c.bf16 %v1034, %v1034
      %1037 = vrot.lane.b32.xlu0 %v977, 96
      %v1038 = vpop.permute.xlu0 %1037
      %v1040 = vsel %vm346, %v1035, 0
      %v1043 = vsel %vm410, %v1038, 0
      %1045 = vmatprep.subr.bf16.mxu0 0
      %1046 = vmatpush1.bf16.msra.mxu0 0
      %1047 = vmatprep.subr.bf16.mxu0 0
      %1048 = vmatpush1.bf16.msra.mxu0 0
      %1049 = vmatprep.subr.bf16.mxu0 0
      %1050 = vmatpush1.bf16.msra.mxu0 0
      %1051 = vmatprep.subr.bf16.mxu0 0
      %1052 = vmatpush1.bf16.msra.mxu0 0
      %1053 = vmatprep.subr.bf16.mxu0 0
      %1054 = vmatpush1.bf16.msra.mxu0 0
      %1055 = vmatprep.subr.bf16.mxu0 0
      %1056 = vmatpush1.bf16.msra.mxu0 0
      %1057 = vmatprep.subr.bf16.mxu0 0
      %1058 = vmatpush1.bf16.msra.mxu0 0
      %1059 = vmatprep.subr.bf16.mxu0 0
      %1060 = vmatpush1.bf16.msra.mxu0 %v1043
      %1061 = vmatprep.subr.bf16.mxu0 0
      %1062 = vmatpush2.bf16.msra.mxu0 0
      %1063 = vmatprep.subr.bf16.mxu0 0
      %1064 = vmatpush2.bf16.msra.mxu0 0
      %1065 = vmatprep.subr.bf16.mxu0 0
      %1066 = vmatpush2.bf16.msra.mxu0 0
      %1067 = vmatprep.subr.bf16.mxu0 0
      %1068 = vmatpush2.bf16.msra.mxu0 0
      %1069 = vmatprep.subr.bf16.mxu0 0
      %1070 = vmatpush2.bf16.msra.mxu0 0
      %1071 = vmatprep.subr.bf16.mxu0 0
      %1072 = vmatpush2.bf16.msra.mxu0 0
      %1073 = vmatprep.subr.bf16.mxu0 0
      %1074 = vmatpush2.bf16.msra.mxu0 0
      %1075 = vmatprep.subr.bf16.mxu0 0
      %1076 = vmatpush2.bf16.msra.mxu0 0
      %1077 = vmatprep.mubr.bf16.mxu0 0
      %1078 = vmatmul.mubr.bf16.gmra.mxu0 %v1040
      %v1079 = vpop.f32.mrf.mxu0
      %v1080 = vadd.f32 0.0, %v1079
      %v1081 = vpop.f32.mrf.mxu0
      %v1082 = vpop.f32.mrf.mxu0
      %v1083 = vpop.f32.mrf.mxu0
      %1084 = vdwg.mxu0
      %1086 = vrot.lane.b32.xlu0 %v976, 120
      %v1087 = vpop.permute.xlu0 %1086
      %1088 = vrot.lane.b32.xlu0 %v977, 120
      %v1089 = vpop.permute.xlu0 %1088
      %v1091 = vsel %vm346, %v1087, 0
      %v1094 = vsel %vm346, %v1089, 0
      %1096 = vmatprep.subr.bf16.mxu0 0
      %1097 = vmatpush1.bf16.xpose.msra.mxu0 0
      %1098 = vmatprep.subr.bf16.mxu0 0
      %1099 = vmatpush1.bf16.xpose.msra.mxu0 0
      %1100 = vmatprep.subr.bf16.mxu0 0
      %1101 = vmatpush1.bf16.xpose.msra.mxu0 0
      %1102 = vmatprep.subr.bf16.mxu0 0
      %1103 = vmatpush1.bf16.xpose.msra.mxu0 0
      %1104 = vmatprep.subr.bf16.mxu0 0
      %1105 = vmatpush1.bf16.xpose.msra.mxu0 0
      %1106 = vmatprep.subr.bf16.mxu0 0
      %1107 = vmatpush1.bf16.xpose.msra.mxu0 0
      %1108 = vmatprep.subr.bf16.mxu0 0
      %1109 = vmatpush1.bf16.xpose.msra.mxu0 0
      %1110 = vmatprep.subr.bf16.mxu0 0
      %1111 = vmatpush1.bf16.xpose.msra.mxu0 %v1094
      %1112 = vmatprep.subr.bf16.mxu0 0
      %1113 = vmatpush2.bf16.xpose.msra.mxu0 0
      %1114 = vmatprep.subr.bf16.mxu0 0
      %1115 = vmatpush2.bf16.xpose.msra.mxu0 0
      %1116 = vmatprep.subr.bf16.mxu0 0
      %1117 = vmatpush2.bf16.xpose.msra.mxu0 0
      %1118 = vmatprep.subr.bf16.mxu0 0
      %1119 = vmatpush2.bf16.xpose.msra.mxu0 0
      %1120 = vmatprep.subr.bf16.mxu0 0
      %1121 = vmatpush2.bf16.xpose.msra.mxu0 0
      %1122 = vmatprep.subr.bf16.mxu0 0
      %1123 = vmatpush2.bf16.xpose.msra.mxu0 0
      %1124 = vmatprep.subr.bf16.mxu0 0
      %1125 = vmatpush2.bf16.xpose.msra.mxu0 0
      %1126 = vmatprep.subr.bf16.mxu0 0
      %1127 = vmatpush2.bf16.xpose.msra.mxu0 0
      %1128 = vmatprep.mubr.bf16.mxu0 0
      %1129 = vmatmul.mubr.bf16.gmra.mxu0 %v1091
      %v1130 = vpop.f32.mrf.mxu0
      %v1131 = vadd.f32 0.0, %v1130
      %v1132 = vpop.f32.mrf.mxu0
      %v1133 = vpop.f32.mrf.mxu0
      %v1134 = vpop.f32.mrf.mxu0
      %1135 = vdwg.mxu0
      %v1136 = vsel %vm346, %v1131, -inf
      %1137 = vmax.xlane.f32.xlu0 %v1136
      %v1138 = vpop.xlane.xlu0 %1137
      %v1139 = vsub.f32 %v1131, %v1138
      %v1140 = vmul.f32 %v1139, 1.442695
      %v1141 = vpow.pop %v1140
      %v1142 = vsel %vm346, %v1141, 0.0
      %1143 = vadd.xlane.f32.xlu0 %v1142
      %v1144 = vpop.xlane.xlu0 %1143
      %v1145 = vrcp.pop %v1144
      %v1146 = vmul.f32 %v1141, %v1145
      %v1147 = vpack.c.bf16 %v1146, %v1146
      %1148 = vrot.lane.b32.xlu0 %v977, 88
      %v1149 = vpop.permute.xlu0 %1148
      %v1151 = vsel %vm346, %v1147, 0
      %v1154 = vsel %vm410, %v1149, 0
      %1156 = vmatprep.subr.bf16.mxu0 0
      %1157 = vmatpush1.bf16.msra.mxu0 0
      %1158 = vmatprep.subr.bf16.mxu0 0
      %1159 = vmatpush1.bf16.msra.mxu0 0
      %1160 = vmatprep.subr.bf16.mxu0 0
      %1161 = vmatpush1.bf16.msra.mxu0 0
      %1162 = vmatprep.subr.bf16.mxu0 0
      %1163 = vmatpush1.bf16.msra.mxu0 0
      %1164 = vmatprep.subr.bf16.mxu0 0
      %1165 = vmatpush1.bf16.msra.mxu0 0
      %1166 = vmatprep.subr.bf16.mxu0 0
      %1167 = vmatpush1.bf16.msra.mxu0 0
      %1168 = vmatprep.subr.bf16.mxu0 0
      %1169 = vmatpush1.bf16.msra.mxu0 0
      %1170 = vmatprep.subr.bf16.mxu0 0
      %1171 = vmatpush1.bf16.msra.mxu0 %v1154
      %1172 = vmatprep.subr.bf16.mxu0 0
      %1173 = vmatpush2.bf16.msra.mxu0 0
      %1174 = vmatprep.subr.bf16.mxu0 0
      %1175 = vmatpush2.bf16.msra.mxu0 0
      %1176 = vmatprep.subr.bf16.mxu0 0
      %1177 = vmatpush2.bf16.msra.mxu0 0
      %1178 = vmatprep.subr.bf16.mxu0 0
      %1179 = vmatpush2.bf16.msra.mxu0 0
      %1180 = vmatprep.subr.bf16.mxu0 0
      %1181 = vmatpush2.bf16.msra.mxu0 0
      %1182 = vmatprep.subr.bf16.mxu0 0
      %1183 = vmatpush2.bf16.msra.mxu0 0
      %1184 = vmatprep.subr.bf16.mxu0 0
      %1185 = vmatpush2.bf16.msra.mxu0 0
      %1186 = vmatprep.subr.bf16.mxu0 0
      %1187 = vmatpush2.bf16.msra.mxu0 0
      %1188 = vmatprep.mubr.bf16.mxu0 0
      %1189 = vmatmul.mubr.bf16.gmra.mxu0 %v1151
      %v1190 = vpop.f32.mrf.mxu0
      %v1191 = vadd.f32 0.0, %v1190
      %v1192 = vpop.f32.mrf.mxu0
      %v1193 = vpop.f32.mrf.mxu0
      %v1194 = vpop.f32.mrf.mxu0
      %1195 = vdwg.mxu0
      %1196 = vrot.lane.b32.xlu0 %v976, 112
      %v1197 = vpop.permute.xlu0 %1196
      %1198 = vrot.lane.b32.xlu0 %v977, 112
      %v1199 = vpop.permute.xlu0 %1198
      %v1201 = vsel %vm346, %v1197, 0
      %v1204 = vsel %vm346, %v1199, 0
      %1206 = vmatprep.subr.bf16.mxu0 0
      %1207 = vmatpush1.bf16.xpose.msra.mxu0 0
      %1208 = vmatprep.subr.bf16.mxu0 0
      %1209 = vmatpush1.bf16.xpose.msra.mxu0 0
      %1210 = vmatprep.subr.bf16.mxu0 0
      %1211 = vmatpush1.bf16.xpose.msra.mxu0 0
      %1212 = vmatprep.subr.bf16.mxu0 0
      %1213 = vmatpush1.bf16.xpose.msra.mxu0 0
      %1214 = vmatprep.subr.bf16.mxu0 0
      %1215 = vmatpush1.bf16.xpose.msra.mxu0 0
      %1216 = vmatprep.subr.bf16.mxu0 0
      %1217 = vmatpush1.bf16.xpose.msra.mxu0 0
      %1218 = vmatprep.subr.bf16.mxu0 0
      %1219 = vmatpush1.bf16.xpose.msra.mxu0 0
      %1220 = vmatprep.subr.bf16.mxu0 0
      %1221 = vmatpush1.bf16.xpose.msra.mxu0 %v1204
      %1222 = vmatprep.subr.bf16.mxu0 0
      %1223 = vmatpush2.bf16.xpose.msra.mxu0 0
      %1224 = vmatprep.subr.bf16.mxu0 0
      %1225 = vmatpush2.bf16.xpose.msra.mxu0 0
      %1226 = vmatprep.subr.bf16.mxu0 0
      %1227 = vmatpush2.bf16.xpose.msra.mxu0 0
      %1228 = vmatprep.subr.bf16.mxu0 0
      %1229 = vmatpush2.bf16.xpose.msra.mxu0 0
      %1230 = vmatprep.subr.bf16.mxu0 0
      %1231 = vmatpush2.bf16.xpose.msra.mxu0 0
      %1232 = vmatprep.subr.bf16.mxu0 0
      %1233 = vmatpush2.bf16.xpose.msra.mxu0 0
      %1234 = vmatprep.subr.bf16.mxu0 0
      %1235 = vmatpush2.bf16.xpose.msra.mxu0 0
      %1236 = vmatprep.subr.bf16.mxu0 0
      %1237 = vmatpush2.bf16.xpose.msra.mxu0 0
      %1238 = vmatprep.mubr.bf16.mxu0 0
      %1239 = vmatmul.mubr.bf16.gmra.mxu0 %v1201
      %v1240 = vpop.f32.mrf.mxu0
      %v1241 = vadd.f32 0.0, %v1240
      %v1242 = vpop.f32.mrf.mxu0
      %v1243 = vpop.f32.mrf.mxu0
      %v1244 = vpop.f32.mrf.mxu0
      %1245 = vdwg.mxu0
      %v1246 = vsel %vm346, %v1241, -inf
      %1247 = vmax.xlane.f32.xlu0 %v1246
      %v1248 = vpop.xlane.xlu0 %1247
      %v1249 = vsub.f32 %v1241, %v1248
      %v1250 = vmul.f32 %v1249, 1.442695
      %v1251 = vpow.pop %v1250
      %v1252 = vsel %vm346, %v1251, 0.0
      %1253 = vadd.xlane.f32.xlu0 %v1252
      %v1254 = vpop.xlane.xlu0 %1253
      %v1255 = vrcp.pop %v1254
      %v1256 = vmul.f32 %v1251, %v1255
      %v1257 = vpack.c.bf16 %v1256, %v1256
      %1258 = vrot.lane.b32.xlu0 %v977, 80
      %v1259 = vpop.permute.xlu0 %1258
      %v1261 = vsel %vm346, %v1257, 0
      %v1264 = vsel %vm410, %v1259, 0
      %1266 = vmatprep.subr.bf16.mxu0 0
      %1267 = vmatpush1.bf16.msra.mxu0 0
      %1268 = vmatprep.subr.bf16.mxu0 0
      %1269 = vmatpush1.bf16.msra.mxu0 0
      %1270 = vmatprep.subr.bf16.mxu0 0
      %1271 = vmatpush1.bf16.msra.mxu0 0
      %1272 = vmatprep.subr.bf16.mxu0 0
      %1273 = vmatpush1.bf16.msra.mxu0 0
      %1274 = vmatprep.subr.bf16.mxu0 0
      %1275 = vmatpush1.bf16.msra.mxu0 0
      %1276 = vmatprep.subr.bf16.mxu0 0
      %1277 = vmatpush1.bf16.msra.mxu0 0
      %1278 = vmatprep.subr.bf16.mxu0 0
      %1279 = vmatpush1.bf16.msra.mxu0 0
      %1280 = vmatprep.subr.bf16.mxu0 0
      %1281 = vmatpush1.bf16.msra.mxu0 %v1264
      %1282 = vmatprep.subr.bf16.mxu0 0
      %1283 = vmatpush2.bf16.msra.mxu0 0
      %1284 = vmatprep.subr.bf16.mxu0 0
      %1285 = vmatpush2.bf16.msra.mxu0 0
      %1286 = vmatprep.subr.bf16.mxu0 0
      %1287 = vmatpush2.bf16.msra.mxu0 0
      %1288 = vmatprep.subr.bf16.mxu0 0
      %1289 = vmatpush2.bf16.msra.mxu0 0
      %1290 = vmatprep.subr.bf16.mxu0 0
      %1291 = vmatpush2.bf16.msra.mxu0 0
      %1292 = vmatprep.subr.bf16.mxu0 0
      %1293 = vmatpush2.bf16.msra.mxu0 0
      %1294 = vmatprep.subr.bf16.mxu0 0
      %1295 = vmatpush2.bf16.msra.mxu0 0
      %1296 = vmatprep.subr.bf16.mxu0 0
      %1297 = vmatpush2.bf16.msra.mxu0 0
      %1298 = vmatprep.mubr.bf16.mxu0 0
      %1299 = vmatmul.mubr.bf16.gmra.mxu0 %v1261
      %v1300 = vpop.f32.mrf.mxu0
      %v1301 = vadd.f32 0.0, %v1300
      %v1302 = vpop.f32.mrf.mxu0
      %v1303 = vpop.f32.mrf.mxu0
      %v1304 = vpop.f32.mrf.mxu0
      %1305 = vdwg.mxu0
      %1306 = vrot.lane.b32.xlu0 %v976, 104
      %v1307 = vpop.permute.xlu0 %1306
      %1308 = vrot.lane.b32.xlu0 %v977, 104
      %v1309 = vpop.permute.xlu0 %1308
      %v1311 = vsel %vm346, %v1307, 0
      %v1314 = vsel %vm346, %v1309, 0
      %1316 = vmatprep.subr.bf16.mxu0 0
      %1317 = vmatpush1.bf16.xpose.msra.mxu0 0
      %1318 = vmatprep.subr.bf16.mxu0 0
      %1319 = vmatpush1.bf16.xpose.msra.mxu0 0
      %1320 = vmatprep.subr.bf16.mxu0 0
      %1321 = vmatpush1.bf16.xpose.msra.mxu0 0
      %1322 = vmatprep.subr.bf16.mxu0 0
      %1323 = vmatpush1.bf16.xpose.msra.mxu0 0
      %1324 = vmatprep.subr.bf16.mxu0 0
      %1325 = vmatpush1.bf16.xpose.msra.mxu0 0
      %1326 = vmatprep.subr.bf16.mxu0 0
      %1327 = vmatpush1.bf16.xpose.msra.mxu0 0
      %1328 = vmatprep.subr.bf16.mxu0 0
      %1329 = vmatpush1.bf16.xpose.msra.mxu0 0
      %1330 = vmatprep.subr.bf16.mxu0 0
      %1331 = vmatpush1.bf16.xpose.msra.mxu0 %v1314
      %1332 = vmatprep.subr.bf16.mxu0 0
      %1333 = vmatpush2.bf16.xpose.msra.mxu0 0
      %1334 = vmatprep.subr.bf16.mxu0 0
      %1335 = vmatpush2.bf16.xpose.msra.mxu0 0
      %1336 = vmatprep.subr.bf16.mxu0 0
      %1337 = vmatpush2.bf16.xpose.msra.mxu0 0
      %1338 = vmatprep.subr.bf16.mxu0 0
      %1339 = vmatpush2.bf16.xpose.msra.mxu0 0
      %1340 = vmatprep.subr.bf16.mxu0 0
      %1341 = vmatpush2.bf16.xpose.msra.mxu0 0
      %1342 = vmatprep.subr.bf16.mxu0 0
      %1343 = vmatpush2.bf16.xpose.msra.mxu0 0
      %1344 = vmatprep.subr.bf16.mxu0 0
      %1345 = vmatpush2.bf16.xpose.msra.mxu0 0
      %1346 = vmatprep.subr.bf16.mxu0 0
      %1347 = vmatpush2.bf16.xpose.msra.mxu0 0
      %1348 = vmatprep.mubr.bf16.mxu0 0
      %1349 = vmatmul.mubr.bf16.gmra.mxu0 %v1311
      %v1350 = vpop.f32.mrf.mxu0
      %v1351 = vadd.f32 0.0, %v1350
      %v1352 = vpop.f32.mrf.mxu0
      %v1353 = vpop.f32.mrf.mxu0
      %v1354 = vpop.f32.mrf.mxu0
      %1355 = vdwg.mxu0
      %v1356 = vsel %vm346, %v1351, -inf
      %1357 = vmax.xlane.f32.xlu0 %v1356
      %v1358 = vpop.xlane.xlu0 %1357
      %v1359 = vsub.f32 %v1351, %v1358
      %v1360 = vmul.f32 %v1359, 1.442695
      %v1361 = vpow.pop %v1360
      %v1362 = vsel %vm346, %v1361, 0.0
      %1363 = vadd.xlane.f32.xlu0 %v1362
      %v1364 = vpop.xlane.xlu0 %1363
      %v1365 = vrcp.pop %v1364
      %v1366 = vmul.f32 %v1361, %v1365
      %v1367 = vpack.c.bf16 %v1366, %v1366
      %1368 = vrot.lane.b32.xlu0 %v977, 72
      %v1369 = vpop.permute.xlu0 %1368
      %v1371 = vsel %vm346, %v1367, 0
      %v1374 = vsel %vm410, %v1369, 0
      %1376 = vmatprep.subr.bf16.mxu0 0
      %1377 = vmatpush1.bf16.msra.mxu0 0
      %1378 = vmatprep.subr.bf16.mxu0 0
      %1379 = vmatpush1.bf16.msra.mxu0 0
      %1380 = vmatprep.subr.bf16.mxu0 0
      %1381 = vmatpush1.bf16.msra.mxu0 0
      %1382 = vmatprep.subr.bf16.mxu0 0
      %1383 = vmatpush1.bf16.msra.mxu0 0
      %1384 = vmatprep.subr.bf16.mxu0 0
      %1385 = vmatpush1.bf16.msra.mxu0 0
      %1386 = vmatprep.subr.bf16.mxu0 0
      %1387 = vmatpush1.bf16.msra.mxu0 0
      %1388 = vmatprep.subr.bf16.mxu0 0
      %1389 = vmatpush1.bf16.msra.mxu0 0
      %1390 = vmatprep.subr.bf16.mxu0 0
      %1391 = vmatpush1.bf16.msra.mxu0 %v1374
      %1392 = vmatprep.subr.bf16.mxu0 0
      %1393 = vmatpush2.bf16.msra.mxu0 0
      %1394 = vmatprep.subr.bf16.mxu0 0
      %1395 = vmatpush2.bf16.msra.mxu0 0
      %1396 = vmatprep.subr.bf16.mxu0 0
      %1397 = vmatpush2.bf16.msra.mxu0 0
      %1398 = vmatprep.subr.bf16.mxu0 0
      %1399 = vmatpush2.bf16.msra.mxu0 0
      %1400 = vmatprep.subr.bf16.mxu0 0
      %1401 = vmatpush2.bf16.msra.mxu0 0
      %1402 = vmatprep.subr.bf16.mxu0 0
      %1403 = vmatpush2.bf16.msra.mxu0 0
      %1404 = vmatprep.subr.bf16.mxu0 0
      %1405 = vmatpush2.bf16.msra.mxu0 0
      %1406 = vmatprep.subr.bf16.mxu0 0
      %1407 = vmatpush2.bf16.msra.mxu0 0
      %1408 = vmatprep.mubr.bf16.mxu0 0
      %1409 = vmatmul.mubr.bf16.gmra.mxu0 %v1371
      %v1410 = vpop.f32.mrf.mxu0
      %v1411 = vadd.f32 0.0, %v1410
      %v1412 = vpop.f32.mrf.mxu0
      %v1413 = vpop.f32.mrf.mxu0
      %v1414 = vpop.f32.mrf.mxu0
      %1415 = vdwg.mxu0
      %1417 = vrot.lane.b32.xlu0 %v1191, 8
      %v1418 = vpop.permute.xlu0 %1417
      %1421 = vrot.lane.b32.xlu0 %v1301, 16
      %v1422 = vpop.permute.xlu0 %1421
      %1425 = vrot.lane.b32.xlu0 %v1411, 24
      %v1426 = vpop.permute.xlu0 %1425
      %v1428 = vsel %vm346, %v1080, %v1418
      %v1429 = vsel %vm797, %v1428, %v1422
      %v1430 = vsel %vm799, %v1429, %v1426
      %v1431 = vpack.c.bf16 %v1430, %v1430
      %v1432 = vpack.c.bf16 %v263, %v262
      %v1433 = vpack.c.bf16 %v265, %v264
      %v1434 = vlaneseq
      %v1435 = vshrl.u32 %v1434, 7
      %v1436 = vsub.s32 0, %v1435
      %v1437 = vrot.slane %v282, %v1436
      %v1439 = vsel %vm298, %v1431, 0
      %1441 = vmatprep.subr.bf16.mxu0 0
      %1442 = vmatpush1.bf16.msra.mxu0 0
      %1443 = vmatprep.subr.bf16.mxu0 0
      %1444 = vmatpush1.bf16.msra.mxu0 0
      %1445 = vmatprep.subr.bf16.mxu0 0
      %1446 = vmatpush1.bf16.msra.mxu0 0
      %1447 = vmatprep.subr.bf16.mxu0 0
      %1448 = vmatpush1.bf16.msra.mxu0 0
      %1449 = vmatprep.subr.bf16.mxu0 0
      %1450 = vmatpush1.bf16.msra.mxu0 0
      %1451 = vmatprep.subr.bf16.mxu0 0
      %1452 = vmatpush1.bf16.msra.mxu0 0
      %1453 = vmatprep.subr.bf16.mxu0 0
      %1454 = vmatpush1.bf16.msra.mxu0 %v1433
      %1455 = vmatprep.subr.bf16.mxu0 0
      %1456 = vmatpush1.bf16.msra.mxu0 %v1432
      %1457 = vmatprep.subr.bf16.mxu0 0
      %1458 = vmatpush2.bf16.msra.mxu0 0
      %1459 = vmatprep.subr.bf16.mxu0 0
      %1460 = vmatpush2.bf16.msra.mxu0 0
      %1461 = vmatprep.subr.bf16.mxu0 0
      %1462 = vmatpush2.bf16.msra.mxu0 0
      %1463 = vmatprep.subr.bf16.mxu0 0
      %1464 = vmatpush2.bf16.msra.mxu0 0
      %1465 = vmatprep.subr.bf16.mxu0 0
      %1466 = vmatpush2.bf16.msra.mxu0 0
      %1467 = vmatprep.subr.bf16.mxu0 0
      %1468 = vmatpush2.bf16.msra.mxu0 0
      %1469 = vmatprep.subr.bf16.mxu0 0
      %1470 = vmatpush2.bf16.msra.mxu0 0
      %1471 = vmatprep.subr.bf16.mxu0 0
      %1472 = vmatpush2.bf16.msra.mxu0 0
      %1473 = vmatprep.mubr.bf16.mxu0 0
      %1474 = vmatmul.mubr.bf16.gmra.mxu0 %v1439
      %v1475 = vpop.f32.mrf.mxu0
      %v1476 = vadd.f32 %v1437, %v1475
      %v1477 = vpop.f32.mrf.mxu0
      %v1478 = vpop.f32.mrf.mxu0
      %v1479 = vpop.f32.mrf.mxu0
      %1480 = vdwg.mxu0
      %v1481 = vadd.f32 %v875, %v1476
      %v1482 = vsel %vm298, %v1481, 0.0
      %1483 = vadd.xlane.f32.xlu0 %v1482
      %v1484 = vpop.xlane.xlu0 %1483
      %v1485 = vmul.f32 %v1484, %v855
      %v1486 = vsub.f32 %v1481, %v1485
      %v1487 = vmul.f32 %v1486, %v1486
      %v1488 = vsel %vm298, %v1487, 0.0
      %1489 = vadd.xlane.f32.xlu0 %v1488
      %v1490 = vpop.xlane.xlu0 %1489
      %v1491 = vmul.f32 %v1490, %v855
      %v1492 = vadd.f32 %v1491, 1e-05
      %v1493 = vrsqrt.pop %v1492
      %v1494 = vmul.f32 %v1486, %v1493
      %v1495 = vlaneseq
      %v1496 = vshrl.u32 %v1495, 7
      %v1497 = vsub.s32 0, %v1496
      %v1498 = vrot.slane %v287, %v1497
      %v1499 = vmul.f32 %v1494, %v1498
      %v1500 = vlaneseq
      %v1501 = vshrl.u32 %v1500, 7
      %v1502 = vsub.s32 0, %v1501
      %v1503 = vrot.slane %v288, %v1502
      %v1504 = vadd.f32 %v1499, %v1503
      %v1505 = vpack.c.bf16 %v1504, %v1504
      %v1506 = vpack.c.bf16 %v267, %v266
      %v1507 = vpack.c.bf16 %v269, %v268
      %v1508 = vlaneseq
      %v1509 = vshrl.u32 %v1508, 7
      %v1510 = vsub.s32 0, %v1509
      %v1511 = vrot.slane %v283, %v1510
      %v1513 = vsel %vm298, %v1505, 0
      %1515 = vmatprep.subr.bf16.mxu0 0
      %1516 = vmatpush1.bf16.msra.mxu0 0
      %1517 = vmatprep.subr.bf16.mxu0 0
      %1518 = vmatpush1.bf16.msra.mxu0 0
      %1519 = vmatprep.subr.bf16.mxu0 0
      %1520 = vmatpush1.bf16.msra.mxu0 0
      %1521 = vmatprep.subr.bf16.mxu0 0
      %1522 = vmatpush1.bf16.msra.mxu0 0
      %1523 = vmatprep.subr.bf16.mxu0 0
      %1524 = vmatpush1.bf16.msra.mxu0 0
      %1525 = vmatprep.subr.bf16.mxu0 0
      %1526 = vmatpush1.bf16.msra.mxu0 0
      %1527 = vmatprep.subr.bf16.mxu0 0
      %1528 = vmatpush1.bf16.msra.mxu0 %v1507
      %1529 = vmatprep.subr.bf16.mxu0 0
      %1530 = vmatpush1.bf16.msra.mxu0 %v1506
      %1531 = vmatprep.subr.bf16.mxu0 0
      %1532 = vmatpush2.bf16.msra.mxu0 0
      %1533 = vmatprep.subr.bf16.mxu0 0
      %1534 = vmatpush2.bf16.msra.mxu0 0
      %1535 = vmatprep.subr.bf16.mxu0 0
      %1536 = vmatpush2.bf16.msra.mxu0 0
      %1537 = vmatprep.subr.bf16.mxu0 0
      %1538 = vmatpush2.bf16.msra.mxu0 0
      %1539 = vmatprep.subr.bf16.mxu0 0
      %1540 = vmatpush2.bf16.msra.mxu0 0
      %1541 = vmatprep.subr.bf16.mxu0 0
      %1542 = vmatpush2.bf16.msra.mxu0 0
      %1543 = vmatprep.subr.bf16.mxu0 0
      %1544 = vmatpush2.bf16.msra.mxu0 0
      %1545 = vmatprep.subr.bf16.mxu0 0
      %1546 = vmatpush2.bf16.msra.mxu0 0
      %1547 = vmatprep.mubr.bf16.mxu0 0
      %1548 = vmatmul.mubr.bf16.gmra.mxu0 %v1513
      %v1549 = vpop.f32.mrf.mxu0
      %v1550 = vadd.f32 %v1511, %v1549
      %v1551 = vpop.f32.mrf.mxu0
      %v1552 = vpop.f32.mrf.mxu0
      %v1553 = vpop.f32.mrf.mxu0
      %1554 = vdwg.mxu0
      %v1555 = vmax.f32 %v1550, 0.0
      %v1556 = vpack.c.bf16 %v1555, %v1555
      %v1557 = vpack.c.bf16 %v271, %v270
      %v1558 = vpack.c.bf16 %v273, %v272
      %v1559 = vpack.c.bf16 %v275, %v274
      %v1560 = vpack.c.bf16 %v277, %v276
      %v1561 = vlaneseq
      %v1562 = vshrl.u32 %v1561, 7
      %v1563 = vsub.s32 0, %v1562
      %v1564 = vrot.slane %v284, %v1563
      %vm1565 = vcmask 523264
      %v1567 = vsel %vm1565, %v1556, 0
      %1569 = vmatprep.subr.bf16.mxu0 0
      %1570 = vmatpush1.bf16.msra.mxu0 0
      %1571 = vmatprep.subr.bf16.mxu0 0
      %1572 = vmatpush1.bf16.msra.mxu0 0
      %1573 = vmatprep.subr.bf16.mxu0 0
      %1574 = vmatpush1.bf16.msra.mxu0 0
      %1575 = vmatprep.subr.bf16.mxu0 0
      %1576 = vmatpush1.bf16.msra.mxu0 0
      %1577 = vmatprep.subr.bf16.mxu0 0
      %1578 = vmatpush1.bf16.msra.mxu0 %v1560
      %1579 = vmatprep.subr.bf16.mxu0 0
      %1580 = vmatpush1.bf16.msra.mxu0 %v1559
      %1581 = vmatprep.subr.bf16.mxu0 0
      %1582 = vmatpush1.bf16.msra.mxu0 %v1558
      %1583 = vmatprep.subr.bf16.mxu0 0
      %1584 = vmatpush1.bf16.msra.mxu0 %v1557
      %1585 = vmatprep.subr.bf16.mxu0 0
      %1586 = vmatpush2.bf16.msra.mxu0 0
      %1587 = vmatprep.subr.bf16.mxu0 0
      %1588 = vmatpush2.bf16.msra.mxu0 0
      %1589 = vmatprep.subr.bf16.mxu0 0
      %1590 = vmatpush2.bf16.msra.mxu0 0
      %1591 = vmatprep.subr.bf16.mxu0 0
      %1592 = vmatpush2.bf16.msra.mxu0 0
      %1593 = vmatprep.subr.bf16.mxu0 0
      %1594 = vmatpush2.bf16.msra.mxu0 0
      %1595 = vmatprep.subr.bf16.mxu0 0
      %1596 = vmatpush2.bf16.msra.mxu0 0
      %1597 = vmatprep.subr.bf16.mxu0 0
      %1598 = vmatpush2.bf16.msra.mxu0 0
      %1599 = vmatprep.subr.bf16.mxu0 0
      %1600 = vmatpush2.bf16.msra.mxu0 0
      %1601 = vmatprep.mubr.bf16.mxu0 0
      %1602 = vmatmul.mubr.bf16.gmra.mxu0 %v1567
      %v1603 = vpop.f32.mrf.mxu0
      %v1604 = vadd.f32 %v1564, %v1603
      %v1605 = vpop.f32.mrf.mxu0
      %v1606 = vpop.f32.mrf.mxu0
      %v1607 = vpop.f32.mrf.mxu0
      %1608 = vdwg.mxu0
      %v1609 = vadd.f32 %v1504, %v1604
      %v1610 = vsel %vm298, %v1609, 0.0
      %1611 = vadd.xlane.f32.xlu0 %v1610
      %v1612 = vpop.xlane.xlu0 %1611
      %v1613 = vmul.f32 %v1612, %v855
      %v1614 = vsub.f32 %v1609, %v1613
      %v1615 = vmul.f32 %v1614, %v1614
      %v1616 = vsel %vm298, %v1615, 0.0
      %1617 = vadd.xlane.f32.xlu0 %v1616
      %v1618 = vpop.xlane.xlu0 %1617
      %v1619 = vmul.f32 %v1618, %v855
      %v1620 = vadd.f32 %v1619, 1e-05
      %v1621 = vrsqrt.pop %v1620
      %v1622 = vmul.f32 %v1614, %v1621
      %v1623 = vlaneseq
      %v1624 = vshrl.u32 %v1623, 7
      %v1625 = vsub.s32 0, %v1624
      %v1626 = vrot.slane %v289, %v1625
      %v1627 = vmul.f32 %v1622, %v1626
      %v1628 = vlaneseq
      %v1629 = vshrl.u32 %v1628, 7
      %v1630 = vsub.s32 0, %v1629
      %v1631 = vrot.slane %v290, %v1630
      %v1632 = vadd.f32 %v1627, %v1631
      %s1633 = scalar_lea.vmem %s2, 256
      %v1634 = vld [vmem:[%s1633] sm:$0xff]
      %v1635 = vld [vmem:[%s1633 + $0x8] sm:$0xff]
      %v1636 = vld [vmem:[%s1633 + $0x10] sm:$0xff]
      %v1637 = vld [vmem:[%s1633 + $0x18] sm:$0xff]
      %v1638 = vld [vmem:[%s1633 + $0x20] sm:$0xff]
      %v1639 = vld [vmem:[%s1633 + $0x28] sm:$0xff]
      %v1640 = vld [vmem:[%s1633 + $0x30] sm:$0xff]
      %v1641 = vld [vmem:[%s1633 + $0x38] sm:$0xff]
      %v1642 = vld [vmem:[%s1633 + $0x40] sm:$0xff]
      %v1643 = vld [vmem:[%s1633 + $0x48] sm:$0xff]
      %v1644 = vld [vmem:[%s1633 + $0x50] sm:$0xff]
      %v1645 = vld [vmem:[%s1633 + $0x58] sm:$0xff]
      %v1646 = vld [vmem:[%s1633 + $0x60] sm:$0xff]
      %v1647 = vld [vmem:[%s1633 + $0x68] sm:$0xff]
      %v1648 = vld [vmem:[%s1633 + $0x70] sm:$0xff]
      %v1649 = vld [vmem:[%s1633 + $0x78] sm:$0xff]
      %v1650 = vld [vmem:[%s1633 + $0x80] sm:$0xff]
      %v1651 = vld [vmem:[%s1633 + $0x88] sm:$0xff]
      %v1652 = vld [vmem:[%s1633 + $0x90] sm:$0xff]
      %v1653 = vld [vmem:[%s1633 + $0x98] sm:$0xff]
      %v1654 = vld [vmem:[%s1633 + $0xa0] sm:$0xff]
      %v1655 = vld [vmem:[%s1633 + $0xa8] sm:$0xff]
      %v1656 = vld [vmem:[%s1633 + $0xb0] sm:$0xff]
      %v1657 = vld [vmem:[%s1633 + $0xb8] sm:$0xff]
      %v1658 = vld [vmem:[%s1633 + $0xc0] sm:$0xff]
      %v1659 = vld [vmem:[%s1633 + $0xc8] sm:$0xff]
      %v1660 = vld [vmem:[%s1633 + $0xd0] sm:$0xff]
      %v1661 = vld [vmem:[%s1633 + $0xd8] sm:$0xff]
      %v1662 = vld [vmem:[%s1633 + $0xe0] sm:$0xff]
      %v1663 = vld [vmem:[%s1633 + $0xe8] sm:$0xff]
      %v1664 = vld [vmem:[%s1633 + $0xf0] sm:$0xff]
      %v1665 = vld [vmem:[%s1633 + $0xf8] sm:$0xff]
      %s1666 = scalar_lea.vmem %s3, 16
      %v1667 = vld [vmem:[%s1666] sm:$0x1]
      %v1668 = vld [vmem:[%s1666 + $0x1] sm:$0x1]
      %v1669 = vld [vmem:[%s1666 + $0x2] sm:$0x1]
      %v1670 = vld [vmem:[%s1666 + $0x3] sm:$0x1]
      %v1671 = vld [vmem:[%s1666 + $0x4] sm:$0x1]
      %v1672 = vld [vmem:[%s1666 + $0x5] sm:$0x1]
      %v1673 = vld [vmem:[%s1666 + $0x6] sm:$0x1]
      %v1674 = vld [vmem:[%s1666 + $0x7] sm:$0x1]
      %v1675 = vld [vmem:[%s1666 + $0x8] sm:$0x1]
      %v1676 = vld [vmem:[%s1666 + $0x9] sm:$0x1]
      %v1677 = vld [vmem:[%s1666 + $0xa] sm:$0x1]
      %v1678 = vld [vmem:[%s1666 + $0xb] sm:$0x1]
      %v1679 = vld [vmem:[%s1666 + $0xc] sm:$0x1]
      %v1680 = vpack.c.bf16 %v1632, %v1632
      %v1681 = vpack.c.bf16 %v1635, %v1634
      %v1682 = vpack.c.bf16 %v1637, %v1636
      %v1683 = vlaneseq
      %v1684 = vshrl.u32 %v1683, 7
      %v1685 = vsub.s32 0, %v1684
      %v1686 = vrot.slane %v1667, %v1685
      %v1688 = vsel %vm298, %v1680, 0
      %1690 = vmatprep.subr.bf16.mxu0 0
      %1691 = vmatpush1.bf16.msra.mxu0 0
      %1692 = vmatprep.subr.bf16.mxu0 0
      %1693 = vmatpush1.bf16.msra.mxu0 0
      %1694 = vmatprep.subr.bf16.mxu0 0
      %1695 = vmatpush1.bf16.msra.mxu0 0
      %1696 = vmatprep.subr.bf16.mxu0 0
      %1697 = vmatpush1.bf16.msra.mxu0 0
      %1698 = vmatprep.subr.bf16.mxu0 0
      %1699 = vmatpush1.bf16.msra.mxu0 0
      %1700 = vmatprep.subr.bf16.mxu0 0
      %1701 = vmatpush1.bf16.msra.mxu0 0
      %1702 = vmatprep.subr.bf16.mxu0 0
      %1703 = vmatpush1.bf16.msra.mxu0 %v1682
      %1704 = vmatprep.subr.bf16.mxu0 0
      %1705 = vmatpush1.bf16.msra.mxu0 %v1681
      %1706 = vmatprep.subr.bf16.mxu0 0
      %1707 = vmatpush2.bf16.msra.mxu0 0
      %1708 = vmatprep.subr.bf16.mxu0 0
      %1709 = vmatpush2.bf16.msra.mxu0 0
      %1710 = vmatprep.subr.bf16.mxu0 0
      %1711 = vmatpush2.bf16.msra.mxu0 0
      %1712 = vmatprep.subr.bf16.mxu0 0
      %1713 = vmatpush2.bf16.msra.mxu0 0
      %1714 = vmatprep.subr.bf16.mxu0 0
      %1715 = vmatpush2.bf16.msra.mxu0 0
      %1716 = vmatprep.subr.bf16.mxu0 0
      %1717 = vmatpush2.bf16.msra.mxu0 0
      %1718 = vmatprep.subr.bf16.mxu0 0
      %1719 = vmatpush2.bf16.msra.mxu0 0
      %1720 = vmatprep.subr.bf16.mxu0 0
      %1721 = vmatpush2.bf16.msra.mxu0 0
      %1722 = vmatprep.mubr.bf16.mxu0 0
      %1723 = vmatmul.mubr.bf16.gmra.mxu0 %v1688
      %v1724 = vpop.f32.mrf.mxu0
      %v1725 = vadd.f32 %v1686, %v1724
      %v1726 = vpop.f32.mrf.mxu0
      %v1727 = vpop.f32.mrf.mxu0
      %v1728 = vpop.f32.mrf.mxu0
      %1729 = vdwg.mxu0
      %v1730 = vpack.c.bf16 %v1725, %v1725
      %1732 = vrot.lane.b32.xlu0 %v1730, 96
      %v1733 = vpop.permute.xlu0 %1732
      %v1735 = vsel %vm346, %v1730, 0
      %v1738 = vsel %vm346, %v1733, 0
      %1740 = vmatprep.subr.bf16.mxu0 0
      %1741 = vmatpush1.bf16.xpose.msra.mxu0 0
      %1742 = vmatprep.subr.bf16.mxu0 0
      %1743 = vmatpush1.bf16.xpose.msra.mxu0 0
      %1744 = vmatprep.subr.bf16.mxu0 0
      %1745 = vmatpush1.bf16.xpose.msra.mxu0 0
      %1746 = vmatprep.subr.bf16.mxu0 0
      %1747 = vmatpush1.bf16.xpose.msra.mxu0 0
      %1748 = vmatprep.subr.bf16.mxu0 0
      %1749 = vmatpush1.bf16.xpose.msra.mxu0 0
      %1750 = vmatprep.subr.bf16.mxu0 0
      %1751 = vmatpush1.bf16.xpose.msra.mxu0 0
      %1752 = vmatprep.subr.bf16.mxu0 0
      %1753 = vmatpush1.bf16.xpose.msra.mxu0 0
      %1754 = vmatprep.subr.bf16.mxu0 0
      %1755 = vmatpush1.bf16.xpose.msra.mxu0 %v1738
      %1756 = vmatprep.subr.bf16.mxu0 0
      %1757 = vmatpush2.bf16.xpose.msra.mxu0 0
      %1758 = vmatprep.subr.bf16.mxu0 0
      %1759 = vmatpush2.bf16.xpose.msra.mxu0 0
      %1760 = vmatprep.subr.bf16.mxu0 0
      %1761 = vmatpush2.bf16.xpose.msra.mxu0 0
      %1762 = vmatprep.subr.bf16.mxu0 0
      %1763 = vmatpush2.bf16.xpose.msra.mxu0 0
      %1764 = vmatprep.subr.bf16.mxu0 0
      %1765 = vmatpush2.bf16.xpose.msra.mxu0 0
      %1766 = vmatprep.subr.bf16.mxu0 0
      %1767 = vmatpush2.bf16.xpose.msra.mxu0 0
      %1768 = vmatprep.subr.bf16.mxu0 0
      %1769 = vmatpush2.bf16.xpose.msra.mxu0 0
      %1770 = vmatprep.subr.bf16.mxu0 0
      %1771 = vmatpush2.bf16.xpose.msra.mxu0 0
      %1772 = vmatprep.mubr.bf16.mxu0 0
      %1773 = vmatmul.mubr.bf16.gmra.mxu0 %v1735
      %v1774 = vpop.f32.mrf.mxu0
      %v1775 = vadd.f32 %v245, %v1774
      %v1776 = vpop.f32.mrf.mxu0
      %v1777 = vpop.f32.mrf.mxu0
      %v1778 = vpop.f32.mrf.mxu0
      %1779 = vdwg.mxu0
      %v1780 = vsel %vm346, %v1775, -inf
      %1781 = vmax.xlane.f32.xlu0 %v1780
      %v1782 = vpop.xlane.xlu0 %1781
      %v1783 = vsub.f32 %v1775, %v1782
      %v1784 = vmul.f32 %v1783, 1.442695
      %v1785 = vpow.pop %v1784
      %v1786 = vsel %vm346, %v1785, 0.0
      %1787 = vadd.xlane.f32.xlu0 %v1786
      %v1788 = vpop.xlane.xlu0 %1787
      %v1789 = vrcp.pop %v1788
      %v1790 = vmul.f32 %v1785, %v1789
      %v1791 = vpack.c.bf16 %v1790, %v1790
      %1792 = vrot.lane.b32.xlu0 %v1730, 64
      %v1793 = vpop.permute.xlu0 %1792
      %v1795 = vsel %vm346, %v1791, 0
      %v1798 = vsel %vm410, %v1793, 0
      %1800 = vmatprep.subr.bf16.mxu0 0
      %1801 = vmatpush1.bf16.msra.mxu0 0
      %1802 = vmatprep.subr.bf16.mxu0 0
      %1803 = vmatpush1.bf16.msra.mxu0 0
      %1804 = vmatprep.subr.bf16.mxu0 0
      %1805 = vmatpush1.bf16.msra.mxu0 0
      %1806 = vmatprep.subr.bf16.mxu0 0
      %1807 = vmatpush1.bf16.msra.mxu0 0
      %1808 = vmatprep.subr.bf16.mxu0 0
      %1809 = vmatpush1.bf16.msra.mxu0 0
      %1810 = vmatprep.subr.bf16.mxu0 0
      %1811 = vmatpush1.bf16.msra.mxu0 0
      %1812 = vmatprep.subr.bf16.mxu0 0
      %1813 = vmatpush1.bf16.msra.mxu0 0
      %1814 = vmatprep.subr.bf16.mxu0 0
      %1815 = vmatpush1.bf16.msra.mxu0 %v1798
      %1816 = vmatprep.subr.bf16.mxu0 0
      %1817 = vmatpush2.bf16.msra.mxu0 0
      %1818 = vmatprep.subr.bf16.mxu0 0
      %1819 = vmatpush2.bf16.msra.mxu0 0
      %1820 = vmatprep.subr.bf16.mxu0 0
      %1821 = vmatpush2.bf16.msra.mxu0 0
      %1822 = vmatprep.subr.bf16.mxu0 0
      %1823 = vmatpush2.bf16.msra.mxu0 0
      %1824 = vmatprep.subr.bf16.mxu0 0
      %1825 = vmatpush2.bf16.msra.mxu0 0
      %1826 = vmatprep.subr.bf16.mxu0 0
      %1827 = vmatpush2.bf16.msra.mxu0 0
      %1828 = vmatprep.subr.bf16.mxu0 0
      %1829 = vmatpush2.bf16.msra.mxu0 0
      %1830 = vmatprep.subr.bf16.mxu0 0
      %1831 = vmatpush2.bf16.msra.mxu0 0
      %1832 = vmatprep.mubr.bf16.mxu0 0
      %1833 = vmatmul.mubr.bf16.gmra.mxu0 %v1795
      %v1834 = vpop.f32.mrf.mxu0
      %v1835 = vadd.f32 0.0, %v1834
      %v1836 = vpop.f32.mrf.mxu0
      %v1837 = vpop.f32.mrf.mxu0
      %v1838 = vpop.f32.mrf.mxu0
      %1839 = vdwg.mxu0
      %1840 = vrot.lane.b32.xlu0 %v1730, 120
      %v1841 = vpop.permute.xlu0 %1840
      %1842 = vrot.lane.b32.xlu0 %v1730, 88
      %v1843 = vpop.permute.xlu0 %1842
      %v1845 = vsel %vm346, %v1841, 0
      %v1848 = vsel %vm346, %v1843, 0
      %1850 = vmatprep.subr.bf16.mxu0 0
      %1851 = vmatpush1.bf16.xpose.msra.mxu0 0
      %1852 = vmatprep.subr.bf16.mxu0 0
      %1853 = vmatpush1.bf16.xpose.msra.mxu0 0
      %1854 = vmatprep.subr.bf16.mxu0 0
      %1855 = vmatpush1.bf16.xpose.msra.mxu0 0
      %1856 = vmatprep.subr.bf16.mxu0 0
      %1857 = vmatpush1.bf16.xpose.msra.mxu0 0
      %1858 = vmatprep.subr.bf16.mxu0 0
      %1859 = vmatpush1.bf16.xpose.msra.mxu0 0
      %1860 = vmatprep.subr.bf16.mxu0 0
      %1861 = vmatpush1.bf16.xpose.msra.mxu0 0
      %1862 = vmatprep.subr.bf16.mxu0 0
      %1863 = vmatpush1.bf16.xpose.msra.mxu0 0
      %1864 = vmatprep.subr.bf16.mxu0 0
      %1865 = vmatpush1.bf16.xpose.msra.mxu0 %v1848
      %1866 = vmatprep.subr.bf16.mxu0 0
      %1867 = vmatpush2.bf16.xpose.msra.mxu0 0
      %1868 = vmatprep.subr.bf16.mxu0 0
      %1869 = vmatpush2.bf16.xpose.msra.mxu0 0
      %1870 = vmatprep.subr.bf16.mxu0 0
      %1871 = vmatpush2.bf16.xpose.msra.mxu0 0
      %1872 = vmatprep.subr.bf16.mxu0 0
      %1873 = vmatpush2.bf16.xpose.msra.mxu0 0
      %1874 = vmatprep.subr.bf16.mxu0 0
      %1875 = vmatpush2.bf16.xpose.msra.mxu0 0
      %1876 = vmatprep.subr.bf16.mxu0 0
      %1877 = vmatpush2.bf16.xpose.msra.mxu0 0
      %1878 = vmatprep.subr.bf16.mxu0 0
      %1879 = vmatpush2.bf16.xpose.msra.mxu0 0
      %1880 = vmatprep.subr.bf16.mxu0 0
      %1881 = vmatpush2.bf16.xpose.msra.mxu0 0
      %1882 = vmatprep.mubr.bf16.mxu0 0
      %1883 = vmatmul.mubr.bf16.gmra.mxu0 %v1845
      %v1884 = vpop.f32.mrf.mxu0
      %v1885 = vadd.f32 %v245, %v1884
      %v1886 = vpop.f32.mrf.mxu0
      %v1887 = vpop.f32.mrf.mxu0
      %v1888 = vpop.f32.mrf.mxu0
      %1889 = vdwg.mxu0
      %v1890 = vsel %vm346, %v1885, -inf
      %1891 = vmax.xlane.f32.xlu0 %v1890
      %v1892 = vpop.xlane.xlu0 %1891
      %v1893 = vsub.f32 %v1885, %v1892
      %v1894 = vmul.f32 %v1893, 1.442695
      %v1895 = vpow.pop %v1894
      %v1896 = vsel %vm346, %v1895, 0.0
      %1897 = vadd.xlane.f32.xlu0 %v1896
      %v1898 = vpop.xlane.xlu0 %1897
      %v1899 = vrcp.pop %v1898
      %v1900 = vmul.f32 %v1895, %v1899
      %v1901 = vpack.c.bf16 %v1900, %v1900
      %1902 = vrot.lane.b32.xlu0 %v1730, 56
      %v1903 = vpop.permute.xlu0 %1902
      %v1905 = vsel %vm346, %v1901, 0
      %v1908 = vsel %vm410, %v1903, 0
      %1910 = vmatprep.subr.bf16.mxu0 0
      %1911 = vmatpush1.bf16.msra.mxu0 0
      %1912 = vmatprep.subr.bf16.mxu0 0
      %1913 = vmatpush1.bf16.msra.mxu0 0
      %1914 = vmatprep.subr.bf16.mxu0 0
      %1915 = vmatpush1.bf16.msra.mxu0 0
      %1916 = vmatprep.subr.bf16.mxu0 0
      %1917 = vmatpush1.bf16.msra.mxu0 0
      %1918 = vmatprep.subr.bf16.mxu0 0
      %1919 = vmatpush1.bf16.msra.mxu0 0
      %1920 = vmatprep.subr.bf16.mxu0 0
      %1921 = vmatpush1.bf16.msra.mxu0 0
      %1922 = vmatprep.subr.bf16.mxu0 0
      %1923 = vmatpush1.bf16.msra.mxu0 0
      %1924 = vmatprep.subr.bf16.mxu0 0
      %1925 = vmatpush1.bf16.msra.mxu0 %v1908
      %1926 = vmatprep.subr.bf16.mxu0 0
      %1927 = vmatpush2.bf16.msra.mxu0 0
      %1928 = vmatprep.subr.bf16.mxu0 0
      %1929 = vmatpush2.bf16.msra.mxu0 0
      %1930 = vmatprep.subr.bf16.mxu0 0
      %1931 = vmatpush2.bf16.msra.mxu0 0
      %1932 = vmatprep.subr.bf16.mxu0 0
      %1933 = vmatpush2.bf16.msra.mxu0 0
      %1934 = vmatprep.subr.bf16.mxu0 0
      %1935 = vmatpush2.bf16.msra.mxu0 0
      %1936 = vmatprep.subr.bf16.mxu0 0
      %1937 = vmatpush2.bf16.msra.mxu0 0
      %1938 = vmatprep.subr.bf16.mxu0 0
      %1939 = vmatpush2.bf16.msra.mxu0 0
      %1940 = vmatprep.subr.bf16.mxu0 0
      %1941 = vmatpush2.bf16.msra.mxu0 0
      %1942 = vmatprep.mubr.bf16.mxu0 0
      %1943 = vmatmul.mubr.bf16.gmra.mxu0 %v1905
      %v1944 = vpop.f32.mrf.mxu0
      %v1945 = vadd.f32 0.0, %v1944
      %v1946 = vpop.f32.mrf.mxu0
      %v1947 = vpop.f32.mrf.mxu0
      %v1948 = vpop.f32.mrf.mxu0
      %1949 = vdwg.mxu0
      %1950 = vrot.lane.b32.xlu0 %v1730, 112
      %v1951 = vpop.permute.xlu0 %1950
      %1952 = vrot.lane.b32.xlu0 %v1730, 80
      %v1953 = vpop.permute.xlu0 %1952
      %v1955 = vsel %vm346, %v1951, 0
      %v1958 = vsel %vm346, %v1953, 0
      %1960 = vmatprep.subr.bf16.mxu0 0
      %1961 = vmatpush1.bf16.xpose.msra.mxu0 0
      %1962 = vmatprep.subr.bf16.mxu0 0
      %1963 = vmatpush1.bf16.xpose.msra.mxu0 0
      %1964 = vmatprep.subr.bf16.mxu0 0
      %1965 = vmatpush1.bf16.xpose.msra.mxu0 0
      %1966 = vmatprep.subr.bf16.mxu0 0
      %1967 = vmatpush1.bf16.xpose.msra.mxu0 0
      %1968 = vmatprep.subr.bf16.mxu0 0
      %1969 = vmatpush1.bf16.xpose.msra.mxu0 0
      %1970 = vmatprep.subr.bf16.mxu0 0
      %1971 = vmatpush1.bf16.xpose.msra.mxu0 0
      %1972 = vmatprep.subr.bf16.mxu0 0
      %1973 = vmatpush1.bf16.xpose.msra.mxu0 0
      %1974 = vmatprep.subr.bf16.mxu0 0
      %1975 = vmatpush1.bf16.xpose.msra.mxu0 %v1958
      %1976 = vmatprep.subr.bf16.mxu0 0
      %1977 = vmatpush2.bf16.xpose.msra.mxu0 0
      %1978 = vmatprep.subr.bf16.mxu0 0
      %1979 = vmatpush2.bf16.xpose.msra.mxu0 0
      %1980 = vmatprep.subr.bf16.mxu0 0
      %1981 = vmatpush2.bf16.xpose.msra.mxu0 0
      %1982 = vmatprep.subr.bf16.mxu0 0
      %1983 = vmatpush2.bf16.xpose.msra.mxu0 0
      %1984 = vmatprep.subr.bf16.mxu0 0
      %1985 = vmatpush2.bf16.xpose.msra.mxu0 0
      %1986 = vmatprep.subr.bf16.mxu0 0
      %1987 = vmatpush2.bf16.xpose.msra.mxu0 0
      %1988 = vmatprep.subr.bf16.mxu0 0
      %1989 = vmatpush2.bf16.xpose.msra.mxu0 0
      %1990 = vmatprep.subr.bf16.mxu0 0
      %1991 = vmatpush2.bf16.xpose.msra.mxu0 0
      %1992 = vmatprep.mubr.bf16.mxu0 0
      %1993 = vmatmul.mubr.bf16.gmra.mxu0 %v1955
      %v1994 = vpop.f32.mrf.mxu0
      %v1995 = vadd.f32 %v245, %v1994
      %v1996 = vpop.f32.mrf.mxu0
      %v1997 = vpop.f32.mrf.mxu0
      %v1998 = vpop.f32.mrf.mxu0
      %1999 = vdwg.mxu0
      %v2000 = vsel %vm346, %v1995, -inf
      %2001 = vmax.xlane.f32.xlu0 %v2000
      %v2002 = vpop.xlane.xlu0 %2001
      %v2003 = vsub.f32 %v1995, %v2002
      %v2004 = vmul.f32 %v2003, 1.442695
      %v2005 = vpow.pop %v2004
      %v2006 = vsel %vm346, %v2005, 0.0
      %2007 = vadd.xlane.f32.xlu0 %v2006
      %v2008 = vpop.xlane.xlu0 %2007
      %v2009 = vrcp.pop %v2008
      %v2010 = vmul.f32 %v2005, %v2009
      %v2011 = vpack.c.bf16 %v2010, %v2010
      %2012 = vrot.lane.b32.xlu0 %v1730, 48
      %v2013 = vpop.permute.xlu0 %2012
      %v2015 = vsel %vm346, %v2011, 0
      %v2018 = vsel %vm410, %v2013, 0
      %2020 = vmatprep.subr.bf16.mxu0 0
      %2021 = vmatpush1.bf16.msra.mxu0 0
      %2022 = vmatprep.subr.bf16.mxu0 0
      %2023 = vmatpush1.bf16.msra.mxu0 0
      %2024 = vmatprep.subr.bf16.mxu0 0
      %2025 = vmatpush1.bf16.msra.mxu0 0
      %2026 = vmatprep.subr.bf16.mxu0 0
      %2027 = vmatpush1.bf16.msra.mxu0 0
      %2028 = vmatprep.subr.bf16.mxu0 0
      %2029 = vmatpush1.bf16.msra.mxu0 0
      %2030 = vmatprep.subr.bf16.mxu0 0
      %2031 = vmatpush1.bf16.msra.mxu0 0
      %2032 = vmatprep.subr.bf16.mxu0 0
      %2033 = vmatpush1.bf16.msra.mxu0 0
      %2034 = vmatprep.subr.bf16.mxu0 0
      %2035 = vmatpush1.bf16.msra.mxu0 %v2018
      %2036 = vmatprep.subr.bf16.mxu0 0
      %2037 = vmatpush2.bf16.msra.mxu0 0
      %2038 = vmatprep.subr.bf16.mxu0 0
      %2039 = vmatpush2.bf16.msra.mxu0 0
      %2040 = vmatprep.subr.bf16.mxu0 0
      %2041 = vmatpush2.bf16.msra.mxu0 0
      %2042 = vmatprep.subr.bf16.mxu0 0
      %2043 = vmatpush2.bf16.msra.mxu0 0
      %2044 = vmatprep.subr.bf16.mxu0 0
      %2045 = vmatpush2.bf16.msra.mxu0 0
      %2046 = vmatprep.subr.bf16.mxu0 0
      %2047 = vmatpush2.bf16.msra.mxu0 0
      %2048 = vmatprep.subr.bf16.mxu0 0
      %2049 = vmatpush2.bf16.msra.mxu0 0
      %2050 = vmatprep.subr.bf16.mxu0 0
      %2051 = vmatpush2.bf16.msra.mxu0 0
      %2052 = vmatprep.mubr.bf16.mxu0 0
      %2053 = vmatmul.mubr.bf16.gmra.mxu0 %v2015
      %v2054 = vpop.f32.mrf.mxu0
      %v2055 = vadd.f32 0.0, %v2054
      %v2056 = vpop.f32.mrf.mxu0
      %v2057 = vpop.f32.mrf.mxu0
      %v2058 = vpop.f32.mrf.mxu0
      %2059 = vdwg.mxu0
      %2060 = vrot.lane.b32.xlu0 %v1730, 104
      %v2061 = vpop.permute.xlu0 %2060
      %2062 = vrot.lane.b32.xlu0 %v1730, 72
      %v2063 = vpop.permute.xlu0 %2062
      %v2065 = vsel %vm346, %v2061, 0
      %v2068 = vsel %vm346, %v2063, 0
      %2070 = vmatprep.subr.bf16.mxu0 0
      %2071 = vmatpush1.bf16.xpose.msra.mxu0 0
      %2072 = vmatprep.subr.bf16.mxu0 0
      %2073 = vmatpush1.bf16.xpose.msra.mxu0 0
      %2074 = vmatprep.subr.bf16.mxu0 0
      %2075 = vmatpush1.bf16.xpose.msra.mxu0 0
      %2076 = vmatprep.subr.bf16.mxu0 0
      %2077 = vmatpush1.bf16.xpose.msra.mxu0 0
      %2078 = vmatprep.subr.bf16.mxu0 0
      %2079 = vmatpush1.bf16.xpose.msra.mxu0 0
      %2080 = vmatprep.subr.bf16.mxu0 0
      %2081 = vmatpush1.bf16.xpose.msra.mxu0 0
      %2082 = vmatprep.subr.bf16.mxu0 0
      %2083 = vmatpush1.bf16.xpose.msra.mxu0 0
      %2084 = vmatprep.subr.bf16.mxu0 0
      %2085 = vmatpush1.bf16.xpose.msra.mxu0 %v2068
      %2086 = vmatprep.subr.bf16.mxu0 0
      %2087 = vmatpush2.bf16.xpose.msra.mxu0 0
      %2088 = vmatprep.subr.bf16.mxu0 0
      %2089 = vmatpush2.bf16.xpose.msra.mxu0 0
      %2090 = vmatprep.subr.bf16.mxu0 0
      %2091 = vmatpush2.bf16.xpose.msra.mxu0 0
      %2092 = vmatprep.subr.bf16.mxu0 0
      %2093 = vmatpush2.bf16.xpose.msra.mxu0 0
      %2094 = vmatprep.subr.bf16.mxu0 0
      %2095 = vmatpush2.bf16.xpose.msra.mxu0 0
      %2096 = vmatprep.subr.bf16.mxu0 0
      %2097 = vmatpush2.bf16.xpose.msra.mxu0 0
      %2098 = vmatprep.subr.bf16.mxu0 0
      %2099 = vmatpush2.bf16.xpose.msra.mxu0 0
      %2100 = vmatprep.subr.bf16.mxu0 0
      %2101 = vmatpush2.bf16.xpose.msra.mxu0 0
      %2102 = vmatprep.mubr.bf16.mxu0 0
      %2103 = vmatmul.mubr.bf16.gmra.mxu0 %v2065
      %v2104 = vpop.f32.mrf.mxu0
      %v2105 = vadd.f32 %v245, %v2104
      %v2106 = vpop.f32.mrf.mxu0
      %v2107 = vpop.f32.mrf.mxu0
      %v2108 = vpop.f32.mrf.mxu0
      %2109 = vdwg.mxu0
      %v2110 = vsel %vm346, %v2105, -inf
      %2111 = vmax.xlane.f32.xlu0 %v2110
      %v2112 = vpop.xlane.xlu0 %2111
      %v2113 = vsub.f32 %v2105, %v2112
      %v2114 = vmul.f32 %v2113, 1.442695
      %v2115 = vpow.pop %v2114
      %v2116 = vsel %vm346, %v2115, 0.0
      %2117 = vadd.xlane.f32.xlu0 %v2116
      %v2118 = vpop.xlane.xlu0 %2117
      %v2119 = vrcp.pop %v2118
      %v2120 = vmul.f32 %v2115, %v2119
      %v2121 = vpack.c.bf16 %v2120, %v2120
      %2122 = vrot.lane.b32.xlu0 %v1730, 40
      %v2123 = vpop.permute.xlu0 %2122
      %v2125 = vsel %vm346, %v2121, 0
      %v2128 = vsel %vm410, %v2123, 0
      %2130 = vmatprep.subr.bf16.mxu0 0
      %2131 = vmatpush1.bf16.msra.mxu0 0
      %2132 = vmatprep.subr.bf16.mxu0 0
      %2133 = vmatpush1.bf16.msra.mxu0 0
      %2134 = vmatprep.subr.bf16.mxu0 0
      %2135 = vmatpush1.bf16.msra.mxu0 0
      %2136 = vmatprep.subr.bf16.mxu0 0
      %2137 = vmatpush1.bf16.msra.mxu0 0
      %2138 = vmatprep.subr.bf16.mxu0 0
      %2139 = vmatpush1.bf16.msra.mxu0 0
      %2140 = vmatprep.subr.bf16.mxu0 0
      %2141 = vmatpush1.bf16.msra.mxu0 0
      %2142 = vmatprep.subr.bf16.mxu0 0
      %2143 = vmatpush1.bf16.msra.mxu0 0
      %2144 = vmatprep.subr.bf16.mxu0 0
      %2145 = vmatpush1.bf16.msra.mxu0 %v2128
      %2146 = vmatprep.subr.bf16.mxu0 0
      %2147 = vmatpush2.bf16.msra.mxu0 0
      %2148 = vmatprep.subr.bf16.mxu0 0
      %2149 = vmatpush2.bf16.msra.mxu0 0
      %2150 = vmatprep.subr.bf16.mxu0 0
      %2151 = vmatpush2.bf16.msra.mxu0 0
      %2152 = vmatprep.subr.bf16.mxu0 0
      %2153 = vmatpush2.bf16.msra.mxu0 0
      %2154 = vmatprep.subr.bf16.mxu0 0
      %2155 = vmatpush2.bf16.msra.mxu0 0
      %2156 = vmatprep.subr.bf16.mxu0 0
      %2157 = vmatpush2.bf16.msra.mxu0 0
      %2158 = vmatprep.subr.bf16.mxu0 0
      %2159 = vmatpush2.bf16.msra.mxu0 0
      %2160 = vmatprep.subr.bf16.mxu0 0
      %2161 = vmatpush2.bf16.msra.mxu0 0
      %2162 = vmatprep.mubr.bf16.mxu0 0
      %2163 = vmatmul.mubr.bf16.gmra.mxu0 %v2125
      %v2164 = vpop.f32.mrf.mxu0
      %v2165 = vadd.f32 0.0, %v2164
      %v2166 = vpop.f32.mrf.mxu0
      %v2167 = vpop.f32.mrf.mxu0
      %v2168 = vpop.f32.mrf.mxu0
      %2169 = vdwg.mxu0
      %2171 = vrot.lane.b32.xlu0 %v1945, 8
      %v2172 = vpop.permute.xlu0 %2171
      %2175 = vrot.lane.b32.xlu0 %v2055, 16
      %v2176 = vpop.permute.xlu0 %2175
      %2179 = vrot.lane.b32.xlu0 %v2165, 24
      %v2180 = vpop.permute.xlu0 %2179
      %v2182 = vsel %vm346, %v1835, %v2172
      %v2183 = vsel %vm797, %v2182, %v2176
      %v2184 = vsel %vm799, %v2183, %v2180
      %v2185 = vpack.c.bf16 %v2184, %v2184
      %v2186 = vpack.c.bf16 %v1639, %v1638
      %v2187 = vpack.c.bf16 %v1641, %v1640
      %v2188 = vlaneseq
      %v2189 = vshrl.u32 %v2188, 7
      %v2190 = vsub.s32 0, %v2189
      %v2191 = vrot.slane %v1668, %v2190
      %v2193 = vsel %vm298, %v2185, 0
      %2195 = vmatprep.subr.bf16.mxu0 0
      %2196 = vmatpush1.bf16.msra.mxu0 0
      %2197 = vmatprep.subr.bf16.mxu0 0
      %2198 = vmatpush1.bf16.msra.mxu0 0
      %2199 = vmatprep.subr.bf16.mxu0 0
      %2200 = vmatpush1.bf16.msra.mxu0 0
      %2201 = vmatprep.subr.bf16.mxu0 0
      %2202 = vmatpush1.bf16.msra.mxu0 0
      %2203 = vmatprep.subr.bf16.mxu0 0
      %2204 = vmatpush1.bf16.msra.mxu0 0
      %2205 = vmatprep.subr.bf16.mxu0 0
      %2206 = vmatpush1.bf16.msra.mxu0 0
      %2207 = vmatprep.subr.bf16.mxu0 0
      %2208 = vmatpush1.bf16.msra.mxu0 %v2187
      %2209 = vmatprep.subr.bf16.mxu0 0
      %2210 = vmatpush1.bf16.msra.mxu0 %v2186
      %2211 = vmatprep.subr.bf16.mxu0 0
      %2212 = vmatpush2.bf16.msra.mxu0 0
      %2213 = vmatprep.subr.bf16.mxu0 0
      %2214 = vmatpush2.bf16.msra.mxu0 0
      %2215 = vmatprep.subr.bf16.mxu0 0
      %2216 = vmatpush2.bf16.msra.mxu0 0
      %2217 = vmatprep.subr.bf16.mxu0 0
      %2218 = vmatpush2.bf16.msra.mxu0 0
      %2219 = vmatprep.subr.bf16.mxu0 0
      %2220 = vmatpush2.bf16.msra.mxu0 0
      %2221 = vmatprep.subr.bf16.mxu0 0
      %2222 = vmatpush2.bf16.msra.mxu0 0
      %2223 = vmatprep.subr.bf16.mxu0 0
      %2224 = vmatpush2.bf16.msra.mxu0 0
      %2225 = vmatprep.subr.bf16.mxu0 0
      %2226 = vmatpush2.bf16.msra.mxu0 0
      %2227 = vmatprep.mubr.bf16.mxu0 0
      %2228 = vmatmul.mubr.bf16.gmra.mxu0 %v2193
      %v2229 = vpop.f32.mrf.mxu0
      %v2230 = vadd.f32 %v2191, %v2229
      %v2231 = vpop.f32.mrf.mxu0
      %v2232 = vpop.f32.mrf.mxu0
      %v2233 = vpop.f32.mrf.mxu0
      %2234 = vdwg.mxu0
      %v2235 = vadd.f32 %v1632, %v2230
      %v2236 = vsel %vm298, %v2235, 0.0
      %2237 = vadd.xlane.f32.xlu0 %v2236
      %v2238 = vpop.xlane.xlu0 %2237
      %v2239 = vmul.f32 %v2238, %v855
      %v2240 = vsub.f32 %v2235, %v2239
      %v2241 = vmul.f32 %v2240, %v2240
      %v2242 = vsel %vm298, %v2241, 0.0
      %2243 = vadd.xlane.f32.xlu0 %v2242
      %v2244 = vpop.xlane.xlu0 %2243
      %v2245 = vmul.f32 %v2244, %v855
      %v2246 = vadd.f32 %v2245, 1e-05
      %v2247 = vrsqrt.pop %v2246
      %v2248 = vmul.f32 %v2240, %v2247
      %v2249 = vlaneseq
      %v2250 = vshrl.u32 %v2249, 7
      %v2251 = vsub.s32 0, %v2250
      %v2252 = vrot.slane %v1674, %v2251
      %v2253 = vmul.f32 %v2248, %v2252
      %v2254 = vlaneseq
      %v2255 = vshrl.u32 %v2254, 7
      %v2256 = vsub.s32 0, %v2255
      %v2257 = vrot.slane %v1675, %v2256
      %v2258 = vadd.f32 %v2253, %v2257
      %v2259 = vpack.c.bf16 %v2258, %v2258
      %v2260 = vpack.c.bf16 %v1643, %v1642
      %v2261 = vpack.c.bf16 %v1645, %v1644
      %v2262 = vlaneseq
      %v2263 = vshrl.u32 %v2262, 7
      %v2264 = vsub.s32 0, %v2263
      %v2265 = vrot.slane %v1669, %v2264
      %v2267 = vsel %vm298, %v2259, 0
      %2269 = vmatprep.subr.bf16.mxu0 0
      %2270 = vmatpush1.bf16.msra.mxu0 0
      %2271 = vmatprep.subr.bf16.mxu0 0
      %2272 = vmatpush1.bf16.msra.mxu0 0
      %2273 = vmatprep.subr.bf16.mxu0 0
      %2274 = vmatpush1.bf16.msra.mxu0 0
      %2275 = vmatprep.subr.bf16.mxu0 0
      %2276 = vmatpush1.bf16.msra.mxu0 0
      %2277 = vmatprep.subr.bf16.mxu0 0
      %2278 = vmatpush1.bf16.msra.mxu0 0
      %2279 = vmatprep.subr.bf16.mxu0 0
      %2280 = vmatpush1.bf16.msra.mxu0 0
      %2281 = vmatprep.subr.bf16.mxu0 0
      %2282 = vmatpush1.bf16.msra.mxu0 %v2261
      %2283 = vmatprep.subr.bf16.mxu0 0
      %2284 = vmatpush1.bf16.msra.mxu0 %v2260
      %2285 = vmatprep.subr.bf16.mxu0 0
      %2286 = vmatpush2.bf16.msra.mxu0 0
      %2287 = vmatprep.subr.bf16.mxu0 0
      %2288 = vmatpush2.bf16.msra.mxu0 0
      %2289 = vmatprep.subr.bf16.mxu0 0
      %2290 = vmatpush2.bf16.msra.mxu0 0
      %2291 = vmatprep.subr.bf16.mxu0 0
      %2292 = vmatpush2.bf16.msra.mxu0 0
      %2293 = vmatprep.subr.bf16.mxu0 0
      %2294 = vmatpush2.bf16.msra.mxu0 0
      %2295 = vmatprep.subr.bf16.mxu0 0
      %2296 = vmatpush2.bf16.msra.mxu0 0
      %2297 = vmatprep.subr.bf16.mxu0 0
      %2298 = vmatpush2.bf16.msra.mxu0 0
      %2299 = vmatprep.subr.bf16.mxu0 0
      %2300 = vmatpush2.bf16.msra.mxu0 0
      %2301 = vmatprep.mubr.bf16.mxu0 0
      %2302 = vmatmul.mubr.bf16.gmra.mxu0 %v2267
      %v2303 = vpop.f32.mrf.mxu0
      %v2304 = vadd.f32 %v2265, %v2303
      %v2305 = vpop.f32.mrf.mxu0
      %v2306 = vpop.f32.mrf.mxu0
      %v2307 = vpop.f32.mrf.mxu0
      %2308 = vdwg.mxu0
      %v2309 = vpack.c.bf16 %v1647, %v1646
      %v2310 = vpack.c.bf16 %v1649, %v1648
      %v2311 = vlaneseq
      %v2312 = vshrl.u32 %v2311, 7
      %v2313 = vsub.s32 0, %v2312
      %v2314 = vrot.slane %v1670, %v2313
      %2315 = vmatprep.subr.bf16.mxu0 0
      %2316 = vmatpush1.bf16.msra.mxu0 0
      %2317 = vmatprep.subr.bf16.mxu0 0
      %2318 = vmatpush1.bf16.msra.mxu0 0
      %2319 = vmatprep.subr.bf16.mxu0 0
      %2320 = vmatpush1.bf16.msra.mxu0 0
      %2321 = vmatprep.subr.bf16.mxu0 0
      %2322 = vmatpush1.bf16.msra.mxu0 0
      %2323 = vmatprep.subr.bf16.mxu0 0
      %2324 = vmatpush1.bf16.msra.mxu0 0
      %2325 = vmatprep.subr.bf16.mxu0 0
      %2326 = vmatpush1.bf16.msra.mxu0 0
      %2327 = vmatprep.subr.bf16.mxu0 0
      %2328 = vmatpush1.bf16.msra.mxu0 %v2310
      %2329 = vmatprep.subr.bf16.mxu0 0
      %2330 = vmatpush1.bf16.msra.mxu0 %v2309
      %2331 = vmatprep.subr.bf16.mxu0 0
      %2332 = vmatpush2.bf16.msra.mxu0 0
      %2333 = vmatprep.subr.bf16.mxu0 0
      %2334 = vmatpush2.bf16.msra.mxu0 0
      %2335 = vmatprep.subr.bf16.mxu0 0
      %2336 = vmatpush2.bf16.msra.mxu0 0
      %2337 = vmatprep.subr.bf16.mxu0 0
      %2338 = vmatpush2.bf16.msra.mxu0 0
      %2339 = vmatprep.subr.bf16.mxu0 0
      %2340 = vmatpush2.bf16.msra.mxu0 0
      %2341 = vmatprep.subr.bf16.mxu0 0
      %2342 = vmatpush2.bf16.msra.mxu0 0
      %2343 = vmatprep.subr.bf16.mxu0 0
      %2344 = vmatpush2.bf16.msra.mxu0 0
      %2345 = vmatprep.subr.bf16.mxu0 0
      %2346 = vmatpush2.bf16.msra.mxu0 0
      %2347 = vmatprep.mubr.bf16.mxu0 0
      %2348 = vmatmul.mubr.bf16.gmra.mxu0 %v934
      %v2349 = vpop.f32.mrf.mxu0
      %v2350 = vadd.f32 %v2314, %v2349
      %v2351 = vpop.f32.mrf.mxu0
      %v2352 = vpop.f32.mrf.mxu0
      %v2353 = vpop.f32.mrf.mxu0
      %2354 = vdwg.mxu0
      %v2355 = vpack.c.bf16 %v2304, %v2304
      %v2356 = vpack.c.bf16 %v2350, %v2350
      %v2358 = vsel %vm346, %v2355, 0
      %v2361 = vsel %vm346, %v2356, 0
      %2363 = vmatprep.subr.bf16.mxu0 0
      %2364 = vmatpush1.bf16.xpose.msra.mxu0 0
      %2365 = vmatprep.subr.bf16.mxu0 0
      %2366 = vmatpush1.bf16.xpose.msra.mxu0 0
      %2367 = vmatprep.subr.bf16.mxu0 0
      %2368 = vmatpush1.bf16.xpose.msra.mxu0 0
      %2369 = vmatprep.subr.bf16.mxu0 0
      %2370 = vmatpush1.bf16.xpose.msra.mxu0 0
      %2371 = vmatprep.subr.bf16.mxu0 0
      %2372 = vmatpush1.bf16.xpose.msra.mxu0 0
      %2373 = vmatprep.subr.bf16.mxu0 0
      %2374 = vmatpush1.bf16.xpose.msra.mxu0 0
      %2375 = vmatprep.subr.bf16.mxu0 0
      %2376 = vmatpush1.bf16.xpose.msra.mxu0 0
      %2377 = vmatprep.subr.bf16.mxu0 0
      %2378 = vmatpush1.bf16.xpose.msra.mxu0 %v2361
      %2379 = vmatprep.subr.bf16.mxu0 0
      %2380 = vmatpush2.bf16.xpose.msra.mxu0 0
      %2381 = vmatprep.subr.bf16.mxu0 0
      %2382 = vmatpush2.bf16.xpose.msra.mxu0 0
      %2383 = vmatprep.subr.bf16.mxu0 0
      %2384 = vmatpush2.bf16.xpose.msra.mxu0 0
      %2385 = vmatprep.subr.bf16.mxu0 0
      %2386 = vmatpush2.bf16.xpose.msra.mxu0 0
      %2387 = vmatprep.subr.bf16.mxu0 0
      %2388 = vmatpush2.bf16.xpose.msra.mxu0 0
      %2389 = vmatprep.subr.bf16.mxu0 0
      %2390 = vmatpush2.bf16.xpose.msra.mxu0 0
      %2391 = vmatprep.subr.bf16.mxu0 0
      %2392 = vmatpush2.bf16.xpose.msra.mxu0 0
      %2393 = vmatprep.subr.bf16.mxu0 0
      %2394 = vmatpush2.bf16.xpose.msra.mxu0 0
      %2395 = vmatprep.mubr.bf16.mxu0 0
      %2396 = vmatmul.mubr.bf16.gmra.mxu0 %v2358
      %v2397 = vpop.f32.mrf.mxu0
      %v2398 = vadd.f32 0.0, %v2397
      %v2399 = vpop.f32.mrf.mxu0
      %v2400 = vpop.f32.mrf.mxu0
      %v2401 = vpop.f32.mrf.mxu0
      %2402 = vdwg.mxu0
      %v2403 = vsel %vm346, %v2398, -inf
      %2404 = vmax.xlane.f32.xlu0 %v2403
      %v2405 = vpop.xlane.xlu0 %2404
      %v2406 = vsub.f32 %v2398, %v2405
      %v2407 = vmul.f32 %v2406, 1.442695
      %v2408 = vpow.pop %v2407
      %v2409 = vsel %vm346, %v2408, 0.0
      %2410 = vadd.xlane.f32.xlu0 %v2409
      %v2411 = vpop.xlane.xlu0 %2410
      %v2412 = vrcp.pop %v2411
      %v2413 = vmul.f32 %v2408, %v2412
      %v2414 = vpack.c.bf16 %v2413, %v2413
      %2416 = vrot.lane.b32.xlu0 %v2356, 96
      %v2417 = vpop.permute.xlu0 %2416
      %v2419 = vsel %vm346, %v2414, 0
      %v2422 = vsel %vm410, %v2417, 0
      %2424 = vmatprep.subr.bf16.mxu0 0
      %2425 = vmatpush1.bf16.msra.mxu0 0
      %2426 = vmatprep.subr.bf16.mxu0 0
      %2427 = vmatpush1.bf16.msra.mxu0 0
      %2428 = vmatprep.subr.bf16.mxu0 0
      %2429 = vmatpush1.bf16.msra.mxu0 0
      %2430 = vmatprep.subr.bf16.mxu0 0
      %2431 = vmatpush1.bf16.msra.mxu0 0
      %2432 = vmatprep.subr.bf16.mxu0 0
      %2433 = vmatpush1.bf16.msra.mxu0 0
      %2434 = vmatprep.subr.bf16.mxu0 0
      %2435 = vmatpush1.bf16.msra.mxu0 0
      %2436 = vmatprep.subr.bf16.mxu0 0
      %2437 = vmatpush1.bf16.msra.mxu0 0
      %2438 = vmatprep.subr.bf16.mxu0 0
      %2439 = vmatpush1.bf16.msra.mxu0 %v2422
      %2440 = vmatprep.subr.bf16.mxu0 0
      %2441 = vmatpush2.bf16.msra.mxu0 0
      %2442 = vmatprep.subr.bf16.mxu0 0
      %2443 = vmatpush2.bf16.msra.mxu0 0
      %2444 = vmatprep.subr.bf16.mxu0 0
      %2445 = vmatpush2.bf16.msra.mxu0 0
      %2446 = vmatprep.subr.bf16.mxu0 0
      %2447 = vmatpush2.bf16.msra.mxu0 0
      %2448 = vmatprep.subr.bf16.mxu0 0
      %2449 = vmatpush2.bf16.msra.mxu0 0
      %2450 = vmatprep.subr.bf16.mxu0 0
      %2451 = vmatpush2.bf16.msra.mxu0 0
      %2452 = vmatprep.subr.bf16.mxu0 0
      %2453 = vmatpush2.bf16.msra.mxu0 0
      %2454 = vmatprep.subr.bf16.mxu0 0
      %2455 = vmatpush2.bf16.msra.mxu0 0
      %2456 = vmatprep.mubr.bf16.mxu0 0
      %2457 = vmatmul.mubr.bf16.gmra.mxu0 %v2419
      %v2458 = vpop.f32.mrf.mxu0
      %v2459 = vadd.f32 0.0, %v2458
      %v2460 = vpop.f32.mrf.mxu0
      %v2461 = vpop.f32.mrf.mxu0
      %v2462 = vpop.f32.mrf.mxu0
      %2463 = vdwg.mxu0
      %2465 = vrot.lane.b32.xlu0 %v2355, 120
      %v2466 = vpop.permute.xlu0 %2465
      %2467 = vrot.lane.b32.xlu0 %v2356, 120
      %v2468 = vpop.permute.xlu0 %2467
      %v2470 = vsel %vm346, %v2466, 0
      %v2473 = vsel %vm346, %v2468, 0
      %2475 = vmatprep.subr.bf16.mxu0 0
      %2476 = vmatpush1.bf16.xpose.msra.mxu0 0
      %2477 = vmatprep.subr.bf16.mxu0 0
      %2478 = vmatpush1.bf16.xpose.msra.mxu0 0
      %2479 = vmatprep.subr.bf16.mxu0 0
      %2480 = vmatpush1.bf16.xpose.msra.mxu0 0
      %2481 = vmatprep.subr.bf16.mxu0 0
      %2482 = vmatpush1.bf16.xpose.msra.mxu0 0
      %2483 = vmatprep.subr.bf16.mxu0 0
      %2484 = vmatpush1.bf16.xpose.msra.mxu0 0
      %2485 = vmatprep.subr.bf16.mxu0 0
      %2486 = vmatpush1.bf16.xpose.msra.mxu0 0
      %2487 = vmatprep.subr.bf16.mxu0 0
      %2488 = vmatpush1.bf16.xpose.msra.mxu0 0
      %2489 = vmatprep.subr.bf16.mxu0 0
      %2490 = vmatpush1.bf16.xpose.msra.mxu0 %v2473
      %2491 = vmatprep.subr.bf16.mxu0 0
      %2492 = vmatpush2.bf16.xpose.msra.mxu0 0
      %2493 = vmatprep.subr.bf16.mxu0 0
      %2494 = vmatpush2.bf16.xpose.msra.mxu0 0
      %2495 = vmatprep.subr.bf16.mxu0 0
      %2496 = vmatpush2.bf16.xpose.msra.mxu0 0
      %2497 = vmatprep.subr.bf16.mxu0 0
      %2498 = vmatpush2.bf16.xpose.msra.mxu0 0
      %2499 = vmatprep.subr.bf16.mxu0 0
      %2500 = vmatpush2.bf16.xpose.msra.mxu0 0
      %2501 = vmatprep.subr.bf16.mxu0 0
      %2502 = vmatpush2.bf16.xpose.msra.mxu0 0
      %2503 = vmatprep.subr.bf16.mxu0 0
      %2504 = vmatpush2.bf16.xpose.msra.mxu0 0
      %2505 = vmatprep.subr.bf16.mxu0 0
      %2506 = vmatpush2.bf16.xpose.msra.mxu0 0
      %2507 = vmatprep.mubr.bf16.mxu0 0
      %2508 = vmatmul.mubr.bf16.gmra.mxu0 %v2470
      %v2509 = vpop.f32.mrf.mxu0
      %v2510 = vadd.f32 0.0, %v2509
      %v2511 = vpop.f32.mrf.mxu0
      %v2512 = vpop.f32.mrf.mxu0
      %v2513 = vpop.f32.mrf.mxu0
      %2514 = vdwg.mxu0
      %v2515 = vsel %vm346, %v2510, -inf
      %2516 = vmax.xlane.f32.xlu0 %v2515
      %v2517 = vpop.xlane.xlu0 %2516
      %v2518 = vsub.f32 %v2510, %v2517
      %v2519 = vmul.f32 %v2518, 1.442695
      %v2520 = vpow.pop %v2519
      %v2521 = vsel %vm346, %v2520, 0.0
      %2522 = vadd.xlane.f32.xlu0 %v2521
      %v2523 = vpop.xlane.xlu0 %2522
      %v2524 = vrcp.pop %v2523
      %v2525 = vmul.f32 %v2520, %v2524
      %v2526 = vpack.c.bf16 %v2525, %v2525
      %2527 = vrot.lane.b32.xlu0 %v2356, 88
      %v2528 = vpop.permute.xlu0 %2527
      %v2530 = vsel %vm346, %v2526, 0
      %v2533 = vsel %vm410, %v2528, 0
      %2535 = vmatprep.subr.bf16.mxu0 0
      %2536 = vmatpush1.bf16.msra.mxu0 0
      %2537 = vmatprep.subr.bf16.mxu0 0
      %2538 = vmatpush1.bf16.msra.mxu0 0
      %2539 = vmatprep.subr.bf16.mxu0 0
      %2540 = vmatpush1.bf16.msra.mxu0 0
      %2541 = vmatprep.subr.bf16.mxu0 0
      %2542 = vmatpush1.bf16.msra.mxu0 0
      %2543 = vmatprep.subr.bf16.mxu0 0
      %2544 = vmatpush1.bf16.msra.mxu0 0
      %2545 = vmatprep.subr.bf16.mxu0 0
      %2546 = vmatpush1.bf16.msra.mxu0 0
      %2547 = vmatprep.subr.bf16.mxu0 0
      %2548 = vmatpush1.bf16.msra.mxu0 0
      %2549 = vmatprep.subr.bf16.mxu0 0
      %2550 = vmatpush1.bf16.msra.mxu0 %v2533
      %2551 = vmatprep.subr.bf16.mxu0 0
      %2552 = vmatpush2.bf16.msra.mxu0 0
      %2553 = vmatprep.subr.bf16.mxu0 0
      %2554 = vmatpush2.bf16.msra.mxu0 0
      %2555 = vmatprep.subr.bf16.mxu0 0
      %2556 = vmatpush2.bf16.msra.mxu0 0
      %2557 = vmatprep.subr.bf16.mxu0 0
      %2558 = vmatpush2.bf16.msra.mxu0 0
      %2559 = vmatprep.subr.bf16.mxu0 0
      %2560 = vmatpush2.bf16.msra.mxu0 0
      %2561 = vmatprep.subr.bf16.mxu0 0
      %2562 = vmatpush2.bf16.msra.mxu0 0
      %2563 = vmatprep.subr.bf16.mxu0 0
      %2564 = vmatpush2.bf16.msra.mxu0 0
      %2565 = vmatprep.subr.bf16.mxu0 0
      %2566 = vmatpush2.bf16.msra.mxu0 0
      %2567 = vmatprep.mubr.bf16.mxu0 0
      %2568 = vmatmul.mubr.bf16.gmra.mxu0 %v2530
      %v2569 = vpop.f32.mrf.mxu0
      %v2570 = vadd.f32 0.0, %v2569
      %v2571 = vpop.f32.mrf.mxu0
      %v2572 = vpop.f32.mrf.mxu0
      %v2573 = vpop.f32.mrf.mxu0
      %2574 = vdwg.mxu0
      %2575 = vrot.lane.b32.xlu0 %v2355, 112
      %v2576 = vpop.permute.xlu0 %2575
      %2577 = vrot.lane.b32.xlu0 %v2356, 112
      %v2578 = vpop.permute.xlu0 %2577
      %v2580 = vsel %vm346, %v2576, 0
      %v2583 = vsel %vm346, %v2578, 0
      %2585 = vmatprep.subr.bf16.mxu0 0
      %2586 = vmatpush1.bf16.xpose.msra.mxu0 0
      %2587 = vmatprep.subr.bf16.mxu0 0
      %2588 = vmatpush1.bf16.xpose.msra.mxu0 0
      %2589 = vmatprep.subr.bf16.mxu0 0
      %2590 = vmatpush1.bf16.xpose.msra.mxu0 0
      %2591 = vmatprep.subr.bf16.mxu0 0
      %2592 = vmatpush1.bf16.xpose.msra.mxu0 0
      %2593 = vmatprep.subr.bf16.mxu0 0
      %2594 = vmatpush1.bf16.xpose.msra.mxu0 0
      %2595 = vmatprep.subr.bf16.mxu0 0
      %2596 = vmatpush1.bf16.xpose.msra.mxu0 0
      %2597 = vmatprep.subr.bf16.mxu0 0
      %2598 = vmatpush1.bf16.xpose.msra.mxu0 0
      %2599 = vmatprep.subr.bf16.mxu0 0
      %2600 = vmatpush1.bf16.xpose.msra.mxu0 %v2583
      %2601 = vmatprep.subr.bf16.mxu0 0
      %2602 = vmatpush2.bf16.xpose.msra.mxu0 0
      %2603 = vmatprep.subr.bf16.mxu0 0
      %2604 = vmatpush2.bf16.xpose.msra.mxu0 0
      %2605 = vmatprep.subr.bf16.mxu0 0
      %2606 = vmatpush2.bf16.xpose.msra.mxu0 0
      %2607 = vmatprep.subr.bf16.mxu0 0
      %2608 = vmatpush2.bf16.xpose.msra.mxu0 0
      %2609 = vmatprep.subr.bf16.mxu0 0
      %2610 = vmatpush2.bf16.xpose.msra.mxu0 0
      %2611 = vmatprep.subr.bf16.mxu0 0
      %2612 = vmatpush2.bf16.xpose.msra.mxu0 0
      %2613 = vmatprep.subr.bf16.mxu0 0
      %2614 = vmatpush2.bf16.xpose.msra.mxu0 0
      %2615 = vmatprep.subr.bf16.mxu0 0
      %2616 = vmatpush2.bf16.xpose.msra.mxu0 0
      %2617 = vmatprep.mubr.bf16.mxu0 0
      %2618 = vmatmul.mubr.bf16.gmra.mxu0 %v2580
      %v2619 = vpop.f32.mrf.mxu0
      %v2620 = vadd.f32 0.0, %v2619
      %v2621 = vpop.f32.mrf.mxu0
      %v2622 = vpop.f32.mrf.mxu0
      %v2623 = vpop.f32.mrf.mxu0
      %2624 = vdwg.mxu0
      %v2625 = vsel %vm346, %v2620, -inf
      %2626 = vmax.xlane.f32.xlu0 %v2625
      %v2627 = vpop.xlane.xlu0 %2626
      %v2628 = vsub.f32 %v2620, %v2627
      %v2629 = vmul.f32 %v2628, 1.442695
      %v2630 = vpow.pop %v2629
      %v2631 = vsel %vm346, %v2630, 0.0
      %2632 = vadd.xlane.f32.xlu0 %v2631
      %v2633 = vpop.xlane.xlu0 %2632
      %v2634 = vrcp.pop %v2633
      %v2635 = vmul.f32 %v2630, %v2634
      %v2636 = vpack.c.bf16 %v2635, %v2635
      %2637 = vrot.lane.b32.xlu0 %v2356, 80
      %v2638 = vpop.permute.xlu0 %2637
      %v2640 = vsel %vm346, %v2636, 0
      %v2643 = vsel %vm410, %v2638, 0
      %2645 = vmatprep.subr.bf16.mxu0 0
      %2646 = vmatpush1.bf16.msra.mxu0 0
      %2647 = vmatprep.subr.bf16.mxu0 0
      %2648 = vmatpush1.bf16.msra.mxu0 0
      %2649 = vmatprep.subr.bf16.mxu0 0
      %2650 = vmatpush1.bf16.msra.mxu0 0
      %2651 = vmatprep.subr.bf16.mxu0 0
      %2652 = vmatpush1.bf16.msra.mxu0 0
      %2653 = vmatprep.subr.bf16.mxu0 0
      %2654 = vmatpush1.bf16.msra.mxu0 0
      %2655 = vmatprep.subr.bf16.mxu0 0
      %2656 = vmatpush1.bf16.msra.mxu0 0
      %2657 = vmatprep.subr.bf16.mxu0 0
      %2658 = vmatpush1.bf16.msra.mxu0 0
      %2659 = vmatprep.subr.bf16.mxu0 0
      %2660 = vmatpush1.bf16.msra.mxu0 %v2643
      %2661 = vmatprep.subr.bf16.mxu0 0
      %2662 = vmatpush2.bf16.msra.mxu0 0
      %2663 = vmatprep.subr.bf16.mxu0 0
      %2664 = vmatpush2.bf16.msra.mxu0 0
      %2665 = vmatprep.subr.bf16.mxu0 0
      %2666 = vmatpush2.bf16.msra.mxu0 0
      %2667 = vmatprep.subr.bf16.mxu0 0
      %2668 = vmatpush2.bf16.msra.mxu0 0
      %2669 = vmatprep.subr.bf16.mxu0 0
      %2670 = vmatpush2.bf16.msra.mxu0 0
      %2671 = vmatprep.subr.bf16.mxu0 0
      %2672 = vmatpush2.bf16.msra.mxu0 0
      %2673 = vmatprep.subr.bf16.mxu0 0
      %2674 = vmatpush2.bf16.msra.mxu0 0
      %2675 = vmatprep.subr.bf16.mxu0 0
      %2676 = vmatpush2.bf16.msra.mxu0 0
      %2677 = vmatprep.mubr.bf16.mxu0 0
      %2678 = vmatmul.mubr.bf16.gmra.mxu0 %v2640
      %v2679 = vpop.f32.mrf.mxu0
      %v2680 = vadd.f32 0.0, %v2679
      %v2681 = vpop.f32.mrf.mxu0
      %v2682 = vpop.f32.mrf.mxu0
      %v2683 = vpop.f32.mrf.mxu0
      %2684 = vdwg.mxu0
      %2685 = vrot.lane.b32.xlu0 %v2355, 104
      %v2686 = vpop.permute.xlu0 %2685
      %2687 = vrot.lane.b32.xlu0 %v2356, 104
      %v2688 = vpop.permute.xlu0 %2687
      %v2690 = vsel %vm346, %v2686, 0
      %v2693 = vsel %vm346, %v2688, 0
      %2695 = vmatprep.subr.bf16.mxu0 0
      %2696 = vmatpush1.bf16.xpose.msra.mxu0 0
      %2697 = vmatprep.subr.bf16.mxu0 0
      %2698 = vmatpush1.bf16.xpose.msra.mxu0 0
      %2699 = vmatprep.subr.bf16.mxu0 0
      %2700 = vmatpush1.bf16.xpose.msra.mxu0 0
      %2701 = vmatprep.subr.bf16.mxu0 0
      %2702 = vmatpush1.bf16.xpose.msra.mxu0 0
      %2703 = vmatprep.subr.bf16.mxu0 0
      %2704 = vmatpush1.bf16.xpose.msra.mxu0 0
      %2705 = vmatprep.subr.bf16.mxu0 0
      %2706 = vmatpush1.bf16.xpose.msra.mxu0 0
      %2707 = vmatprep.subr.bf16.mxu0 0
      %2708 = vmatpush1.bf16.xpose.msra.mxu0 0
      %2709 = vmatprep.subr.bf16.mxu0 0
      %2710 = vmatpush1.bf16.xpose.msra.mxu0 %v2693
      %2711 = vmatprep.subr.bf16.mxu0 0
      %2712 = vmatpush2.bf16.xpose.msra.mxu0 0
      %2713 = vmatprep.subr.bf16.mxu0 0
      %2714 = vmatpush2.bf16.xpose.msra.mxu0 0
      %2715 = vmatprep.subr.bf16.mxu0 0
      %2716 = vmatpush2.bf16.xpose.msra.mxu0 0
      %2717 = vmatprep.subr.bf16.mxu0 0
      %2718 = vmatpush2.bf16.xpose.msra.mxu0 0
      %2719 = vmatprep.subr.bf16.mxu0 0
      %2720 = vmatpush2.bf16.xpose.msra.mxu0 0
      %2721 = vmatprep.subr.bf16.mxu0 0
      %2722 = vmatpush2.bf16.xpose.msra.mxu0 0
      %2723 = vmatprep.subr.bf16.mxu0 0
      %2724 = vmatpush2.bf16.xpose.msra.mxu0 0
      %2725 = vmatprep.subr.bf16.mxu0 0
      %2726 = vmatpush2.bf16.xpose.msra.mxu0 0
      %2727 = vmatprep.mubr.bf16.mxu0 0
      %2728 = vmatmul.mubr.bf16.gmra.mxu0 %v2690
      %v2729 = vpop.f32.mrf.mxu0
      %v2730 = vadd.f32 0.0, %v2729
      %v2731 = vpop.f32.mrf.mxu0
      %v2732 = vpop.f32.mrf.mxu0
      %v2733 = vpop.f32.mrf.mxu0
      %2734 = vdwg.mxu0
      %v2735 = vsel %vm346, %v2730, -inf
      %2736 = vmax.xlane.f32.xlu0 %v2735
      %v2737 = vpop.xlane.xlu0 %2736
      %v2738 = vsub.f32 %v2730, %v2737
      %v2739 = vmul.f32 %v2738, 1.442695
      %v2740 = vpow.pop %v2739
      %v2741 = vsel %vm346, %v2740, 0.0
      %2742 = vadd.xlane.f32.xlu0 %v2741
      %v2743 = vpop.xlane.xlu0 %2742
      %v2744 = vrcp.pop %v2743
      %v2745 = vmul.f32 %v2740, %v2744
      %v2746 = vpack.c.bf16 %v2745, %v2745
      %2747 = vrot.lane.b32.xlu0 %v2356, 72
      %v2748 = vpop.permute.xlu0 %2747
      %v2750 = vsel %vm346, %v2746, 0
      %v2753 = vsel %vm410, %v2748, 0
      %2755 = vmatprep.subr.bf16.mxu0 0
      %2756 = vmatpush1.bf16.msra.mxu0 0
      %2757 = vmatprep.subr.bf16.mxu0 0
      %2758 = vmatpush1.bf16.msra.mxu0 0
      %2759 = vmatprep.subr.bf16.mxu0 0
      %2760 = vmatpush1.bf16.msra.mxu0 0
      %2761 = vmatprep.subr.bf16.mxu0 0
      %2762 = vmatpush1.bf16.msra.mxu0 0
      %2763 = vmatprep.subr.bf16.mxu0 0
      %2764 = vmatpush1.bf16.msra.mxu0 0
      %2765 = vmatprep.subr.bf16.mxu0 0
      %2766 = vmatpush1.bf16.msra.mxu0 0
      %2767 = vmatprep.subr.bf16.mxu0 0
      %2768 = vmatpush1.bf16.msra.mxu0 0
      %2769 = vmatprep.subr.bf16.mxu0 0
      %2770 = vmatpush1.bf16.msra.mxu0 %v2753
      %2771 = vmatprep.subr.bf16.mxu0 0
      %2772 = vmatpush2.bf16.msra.mxu0 0
      %2773 = vmatprep.subr.bf16.mxu0 0
      %2774 = vmatpush2.bf16.msra.mxu0 0
      %2775 = vmatprep.subr.bf16.mxu0 0
      %2776 = vmatpush2.bf16.msra.mxu0 0
      %2777 = vmatprep.subr.bf16.mxu0 0
      %2778 = vmatpush2.bf16.msra.mxu0 0
      %2779 = vmatprep.subr.bf16.mxu0 0
      %2780 = vmatpush2.bf16.msra.mxu0 0
      %2781 = vmatprep.subr.bf16.mxu0 0
      %2782 = vmatpush2.bf16.msra.mxu0 0
      %2783 = vmatprep.subr.bf16.mxu0 0
      %2784 = vmatpush2.bf16.msra.mxu0 0
      %2785 = vmatprep.subr.bf16.mxu0 0
      %2786 = vmatpush2.bf16.msra.mxu0 0
      %2787 = vmatprep.mubr.bf16.mxu0 0
      %2788 = vmatmul.mubr.bf16.gmra.mxu0 %v2750
      %v2789 = vpop.f32.mrf.mxu0
      %v2790 = vadd.f32 0.0, %v2789
      %v2791 = vpop.f32.mrf.mxu0
      %v2792 = vpop.f32.mrf.mxu0
      %v2793 = vpop.f32.mrf.mxu0
      %2794 = vdwg.mxu0
      %2796 = vrot.lane.b32.xlu0 %v2570, 8
      %v2797 = vpop.permute.xlu0 %2796
      %2800 = vrot.lane.b32.xlu0 %v2680, 16
      %v2801 = vpop.permute.xlu0 %2800
      %2804 = vrot.lane.b32.xlu0 %v2790, 24
      %v2805 = vpop.permute.xlu0 %2804
      %v2807 = vsel %vm346, %v2459, %v2797
      %v2808 = vsel %vm797, %v2807, %v2801
      %v2809 = vsel %vm799, %v2808, %v2805
      %v2810 = vpack.c.bf16 %v2809, %v2809
      %v2811 = vpack.c.bf16 %v1651, %v1650
      %v2812 = vpack.c.bf16 %v1653, %v1652
      %v2813 = vlaneseq
      %v2814 = vshrl.u32 %v2813, 7
      %v2815 = vsub.s32 0, %v2814
      %v2816 = vrot.slane %v1671, %v2815
      %v2818 = vsel %vm298, %v2810, 0
      %2820 = vmatprep.subr.bf16.mxu0 0
      %2821 = vmatpush1.bf16.msra.mxu0 0
      %2822 = vmatprep.subr.bf16.mxu0 0
      %2823 = vmatpush1.bf16.msra.mxu0 0
      %2824 = vmatprep.subr.bf16.mxu0 0
      %2825 = vmatpush1.bf16.msra.mxu0 0
      %2826 = vmatprep.subr.bf16.mxu0 0
      %2827 = vmatpush1.bf16.msra.mxu0 0
      %2828 = vmatprep.subr.bf16.mxu0 0
      %2829 = vmatpush1.bf16.msra.mxu0 0
      %2830 = vmatprep.subr.bf16.mxu0 0
      %2831 = vmatpush1.bf16.msra.mxu0 0
      %2832 = vmatprep.subr.bf16.mxu0 0
      %2833 = vmatpush1.bf16.msra.mxu0 %v2812
      %2834 = vmatprep.subr.bf16.mxu0 0
      %2835 = vmatpush1.bf16.msra.mxu0 %v2811
      %2836 = vmatprep.subr.bf16.mxu0 0
      %2837 = vmatpush2.bf16.msra.mxu0 0
      %2838 = vmatprep.subr.bf16.mxu0 0
      %2839 = vmatpush2.bf16.msra.mxu0 0
      %2840 = vmatprep.subr.bf16.mxu0 0
      %2841 = vmatpush2.bf16.msra.mxu0 0
      %2842 = vmatprep.subr.bf16.mxu0 0
      %2843 = vmatpush2.bf16.msra.mxu0 0
      %2844 = vmatprep.subr.bf16.mxu0 0
      %2845 = vmatpush2.bf16.msra.mxu0 0
      %2846 = vmatprep.subr.bf16.mxu0 0
      %2847 = vmatpush2.bf16.msra.mxu0 0
      %2848 = vmatprep.subr.bf16.mxu0 0
      %2849 = vmatpush2.bf16.msra.mxu0 0
      %2850 = vmatprep.subr.bf16.mxu0 0
      %2851 = vmatpush2.bf16.msra.mxu0 0
      %2852 = vmatprep.mubr.bf16.mxu0 0
      %2853 = vmatmul.mubr.bf16.gmra.mxu0 %v2818
      %v2854 = vpop.f32.mrf.mxu0
      %v2855 = vadd.f32 %v2816, %v2854
      %v2856 = vpop.f32.mrf.mxu0
      %v2857 = vpop.f32.mrf.mxu0
      %v2858 = vpop.f32.mrf.mxu0
      %2859 = vdwg.mxu0
      %v2860 = vadd.f32 %v2258, %v2855
      %v2861 = vsel %vm298, %v2860, 0.0
      %2862 = vadd.xlane.f32.xlu0 %v2861
      %v2863 = vpop.xlane.xlu0 %2862
      %v2864 = vmul.f32 %v2863, %v855
      %v2865 = vsub.f32 %v2860, %v2864
      %v2866 = vmul.f32 %v2865, %v2865
      %v2867 = vsel %vm298, %v2866, 0.0
      %2868 = vadd.xlane.f32.xlu0 %v2867
      %v2869 = vpop.xlane.xlu0 %2868
      %v2870 = vmul.f32 %v2869, %v855
      %v2871 = vadd.f32 %v2870, 1e-05
      %v2872 = vrsqrt.pop %v2871
      %v2873 = vmul.f32 %v2865, %v2872
      %v2874 = vlaneseq
      %v2875 = vshrl.u32 %v2874, 7
      %v2876 = vsub.s32 0, %v2875
      %v2877 = vrot.slane %v1676, %v2876
      %v2878 = vmul.f32 %v2873, %v2877
      %v2879 = vlaneseq
      %v2880 = vshrl.u32 %v2879, 7
      %v2881 = vsub.s32 0, %v2880
      %v2882 = vrot.slane %v1677, %v2881
      %v2883 = vadd.f32 %v2878, %v2882
      %v2884 = vpack.c.bf16 %v2883, %v2883
      %v2885 = vpack.c.bf16 %v1655, %v1654
      %v2886 = vpack.c.bf16 %v1657, %v1656
      %v2887 = vlaneseq
      %v2888 = vshrl.u32 %v2887, 7
      %v2889 = vsub.s32 0, %v2888
      %v2890 = vrot.slane %v1672, %v2889
      %v2892 = vsel %vm298, %v2884, 0
      %2894 = vmatprep.subr.bf16.mxu0 0
      %2895 = vmatpush1.bf16.msra.mxu0 0
      %2896 = vmatprep.subr.bf16.mxu0 0
      %2897 = vmatpush1.bf16.msra.mxu0 0
      %2898 = vmatprep.subr.bf16.mxu0 0
      %2899 = vmatpush1.bf16.msra.mxu0 0
      %2900 = vmatprep.subr.bf16.mxu0 0
      %2901 = vmatpush1.bf16.msra.mxu0 0
      %2902 = vmatprep.subr.bf16.mxu0 0
      %2903 = vmatpush1.bf16.msra.mxu0 0
      %2904 = vmatprep.subr.bf16.mxu0 0
      %2905 = vmatpush1.bf16.msra.mxu0 0
      %2906 = vmatprep.subr.bf16.mxu0 0
      %2907 = vmatpush1.bf16.msra.mxu0 %v2886
      %2908 = vmatprep.subr.bf16.mxu0 0
      %2909 = vmatpush1.bf16.msra.mxu0 %v2885
      %2910 = vmatprep.subr.bf16.mxu0 0
      %2911 = vmatpush2.bf16.msra.mxu0 0
      %2912 = vmatprep.subr.bf16.mxu0 0
      %2913 = vmatpush2.bf16.msra.mxu0 0
      %2914 = vmatprep.subr.bf16.mxu0 0
      %2915 = vmatpush2.bf16.msra.mxu0 0
      %2916 = vmatprep.subr.bf16.mxu0 0
      %2917 = vmatpush2.bf16.msra.mxu0 0
      %2918 = vmatprep.subr.bf16.mxu0 0
      %2919 = vmatpush2.bf16.msra.mxu0 0
      %2920 = vmatprep.subr.bf16.mxu0 0
      %2921 = vmatpush2.bf16.msra.mxu0 0
      %2922 = vmatprep.subr.bf16.mxu0 0
      %2923 = vmatpush2.bf16.msra.mxu0 0
      %2924 = vmatprep.subr.bf16.mxu0 0
      %2925 = vmatpush2.bf16.msra.mxu0 0
      %2926 = vmatprep.mubr.bf16.mxu0 0
      %2927 = vmatmul.mubr.bf16.gmra.mxu0 %v2892
      %v2928 = vpop.f32.mrf.mxu0
      %v2929 = vadd.f32 %v2890, %v2928
      %v2930 = vpop.f32.mrf.mxu0
      %v2931 = vpop.f32.mrf.mxu0
      %v2932 = vpop.f32.mrf.mxu0
      %2933 = vdwg.mxu0
      %v2934 = vmax.f32 %v2929, 0.0
      %v2935 = vpack.c.bf16 %v2934, %v2934
      %v2936 = vpack.c.bf16 %v1659, %v1658
      %v2937 = vpack.c.bf16 %v1661, %v1660
      %v2938 = vpack.c.bf16 %v1663, %v1662
      %v2939 = vpack.c.bf16 %v1665, %v1664
      %v2940 = vlaneseq
      %v2941 = vshrl.u32 %v2940, 7
      %v2942 = vsub.s32 0, %v2941
      %v2943 = vrot.slane %v1673, %v2942
      %v2945 = vsel %vm1565, %v2935, 0
      %2947 = vmatprep.subr.bf16.mxu0 0
      %2948 = vmatpush1.bf16.msra.mxu0 0
      %2949 = vmatprep.subr.bf16.mxu0 0
      %2950 = vmatpush1.bf16.msra.mxu0 0
      %2951 = vmatprep.subr.bf16.mxu0 0
      %2952 = vmatpush1.bf16.msra.mxu0 0
      %2953 = vmatprep.subr.bf16.mxu0 0
      %2954 = vmatpush1.bf16.msra.mxu0 0
      %2955 = vmatprep.subr.bf16.mxu0 0
      %2956 = vmatpush1.bf16.msra.mxu0 %v2939
      %2957 = vmatprep.subr.bf16.mxu0 0
      %2958 = vmatpush1.bf16.msra.mxu0 %v2938
      %2959 = vmatprep.subr.bf16.mxu0 0
      %2960 = vmatpush1.bf16.msra.mxu0 %v2937
      %2961 = vmatprep.subr.bf16.mxu0 0
      %2962 = vmatpush1.bf16.msra.mxu0 %v2936
      %2963 = vmatprep.subr.bf16.mxu0 0
      %2964 = vmatpush2.bf16.msra.mxu0 0
      %2965 = vmatprep.subr.bf16.mxu0 0
      %2966 = vmatpush2.bf16.msra.mxu0 0
      %2967 = vmatprep.subr.bf16.mxu0 0
      %2968 = vmatpush2.bf16.msra.mxu0 0
      %2969 = vmatprep.subr.bf16.mxu0 0
      %2970 = vmatpush2.bf16.msra.mxu0 0
      %2971 = vmatprep.subr.bf16.mxu0 0
      %2972 = vmatpush2.bf16.msra.mxu0 0
      %2973 = vmatprep.subr.bf16.mxu0 0
      %2974 = vmatpush2.bf16.msra.mxu0 0
      %2975 = vmatprep.subr.bf16.mxu0 0
      %2976 = vmatpush2.bf16.msra.mxu0 0
      %2977 = vmatprep.subr.bf16.mxu0 0
      %2978 = vmatpush2.bf16.msra.mxu0 0
      %2979 = vmatprep.mubr.bf16.mxu0 0
      %2980 = vmatmul.mubr.bf16.gmra.mxu0 %v2945
      %v2981 = vpop.f32.mrf.mxu0
      %v2982 = vadd.f32 %v2943, %v2981
      %v2983 = vpop.f32.mrf.mxu0
      %v2984 = vpop.f32.mrf.mxu0
      %v2985 = vpop.f32.mrf.mxu0
      %2986 = vdwg.mxu0
      %v2987 = vadd.f32 %v2883, %v2982
      %v2988 = vsel %vm298, %v2987, 0.0
      %2989 = vadd.xlane.f32.xlu0 %v2988
      %v2990 = vpop.xlane.xlu0 %2989
      %v2991 = vmul.f32 %v2990, %v855
      %v2992 = vsub.f32 %v2987, %v2991
      %v2993 = vmul.f32 %v2992, %v2992
      %v2994 = vsel %vm298, %v2993, 0.0
      %2995 = vadd.xlane.f32.xlu0 %v2994
      %v2996 = vpop.xlane.xlu0 %2995
      %v2997 = vmul.f32 %v2996, %v855
      %v2998 = vadd.f32 %v2997, 1e-05
      %v2999 = vrsqrt.pop %v2998
      %v3000 = vmul.f32 %v2992, %v2999
      %v3001 = vlaneseq
      %v3002 = vshrl.u32 %v3001, 7
      %v3003 = vsub.s32 0, %v3002
      %v3004 = vrot.slane %v1678, %v3003
      %v3005 = vmul.f32 %v3000, %v3004
      %v3006 = vlaneseq
      %v3007 = vshrl.u32 %v3006, 7
      %v3008 = vsub.s32 0, %v3007
      %v3009 = vrot.slane %v1679, %v3008
      %v3010 = vadd.f32 %v3005, %v3009
      %v3011 = vld [vmem:[%s4] sm:$0xff]
      %v3012 = vld [vmem:[%s4 + $0x8] sm:$0xff]
      %v3013 = vld [vmem:[%s4 + $0x10] sm:$0xff]
      %v3014 = vld [vmem:[%s4 + $0x18] sm:$0xff]
      %v3015 = vld [vmem:[%s4 + $0x20] sm:$0x1]
      %v3016 = vpack.c.bf16 %v3010, %v3010
      %v3017 = vpack.c.bf16 %v3012, %v3011
      %v3018 = vpack.c.bf16 %v3014, %v3013
      %v3019 = vlaneseq
      %v3020 = vshrl.u32 %v3019, 7
      %v3021 = vsub.s32 0, %v3020
      %v3022 = vrot.slane %v3015, %v3021
      %v3024 = vsel %vm298, %v3016, 0
      %3026 = vmatprep.subr.bf16.mxu0 0
      %3027 = vmatpush1.bf16.msra.mxu0 0
      %3028 = vmatprep.subr.bf16.mxu0 0
      %3029 = vmatpush1.bf16.msra.mxu0 0
      %3030 = vmatprep.subr.bf16.mxu0 0
      %3031 = vmatpush1.bf16.msra.mxu0 0
      %3032 = vmatprep.subr.bf16.mxu0 0
      %3033 = vmatpush1.bf16.msra.mxu0 0
      %3034 = vmatprep.subr.bf16.mxu0 0
      %3035 = vmatpush1.bf16.msra.mxu0 0
      %3036 = vmatprep.subr.bf16.mxu0 0
      %3037 = vmatpush1.bf16.msra.mxu0 0
      %3038 = vmatprep.subr.bf16.mxu0 0
      %3039 = vmatpush1.bf16.msra.mxu0 %v3018
      %3040 = vmatprep.subr.bf16.mxu0 0
      %3041 = vmatpush1.bf16.msra.mxu0 %v3017
      %3042 = vmatprep.subr.bf16.mxu0 0
      %3043 = vmatpush2.bf16.msra.mxu0 0
      %3044 = vmatprep.subr.bf16.mxu0 0
      %3045 = vmatpush2.bf16.msra.mxu0 0
      %3046 = vmatprep.subr.bf16.mxu0 0
      %3047 = vmatpush2.bf16.msra.mxu0 0
      %3048 = vmatprep.subr.bf16.mxu0 0
      %3049 = vmatpush2.bf16.msra.mxu0 0
      %3050 = vmatprep.subr.bf16.mxu0 0
      %3051 = vmatpush2.bf16.msra.mxu0 0
      %3052 = vmatprep.subr.bf16.mxu0 0
      %3053 = vmatpush2.bf16.msra.mxu0 0
      %3054 = vmatprep.subr.bf16.mxu0 0
      %3055 = vmatpush2.bf16.msra.mxu0 0
      %3056 = vmatprep.subr.bf16.mxu0 0
      %3057 = vmatpush2.bf16.msra.mxu0 0
      %3058 = vmatprep.mubr.bf16.mxu0 0
      %3059 = vmatmul.mubr.bf16.gmra.mxu0 %v3024
      %v3060 = vpop.f32.mrf.mxu0
      %v3061 = vadd.f32 %v3022, %v3060
      %v3062 = vpop.f32.mrf.mxu0
      %v3063 = vpop.f32.mrf.mxu0
      %v3064 = vpop.f32.mrf.mxu0
      %3065 = vdwg.mxu0
      %3066 = vst [vmem:[%s236] sm:$0xff] %v3061
      %p3067 = scmp.lt.s32.totalorder %s16, 1
      %s3068 = scalar_select %p3067, %s16, 1
      %s3069 = smul.addr %s3068, 8
      %s3070 = scalar_lea.vmem %s5, %s3069
      // Predicated region
      $region41: #{decoder_transformer_forward.1} parent=39 // pred_check
        %p3071 = pneg %p149
      $region42: #{decoder_transformer_forward.1} parent=39 // pred_check_branch
        %3073 = sbr.rel (%p3071) target = $region44
      $region43: #{decoder_transformer_forward.1} parent=39 // pred_region
        _
      $region44: #{decoder_transformer_forward.1} parent=39 // pred_fallthru
        _
    $region40: #{decoder_transformer_forward.1} parent=5 // pred_fallthru
      _
    %p3074 = scmp.le.s32.totalorder 2, %s11
    // Predicated region
    $region45: #{decoder_transformer_forward.1} parent=5 // pred_check
      %p3075 = pneg %p3074
    $region46: #{decoder_transformer_forward.1} parent=5 // pred_check_branch
      %3077 = sbr.rel (%p3075) target = $region48
    $region47: #{decoder_transformer_forward.1} parent=5 // pred_region
      %s3078 = ssub.s32 %s11, 2
      // Predicated region
      $region49: #{decoder_transformer_forward.1} parent=47 // pred_check
        %p3079 = pneg %p155
      $region50: #{decoder_transformer_forward.1} parent=47 // pred_check_branch
        %3081 = sbr.rel (%p3079) target = $region52
      $region51: #{decoder_transformer_forward.1} parent=47 // pred_region
        %p3082 = scmp.lt.s32.totalorder %s17, 1
        %s3083 = scalar_select %p3082, %s17, 1
        %s3084 = smul.addr %s3083, 8
        %s3085 = scalar_lea.vmem %s5, %s3084
      $region52: #{decoder_transformer_forward.1} parent=47 // pred_fallthru
        _
    $region48: #{decoder_transformer_forward.1} parent=5 // pred_fallthru
      _
  $region6: #{decoder_transformer_forward.1} parent=0 // loop_footer
    %s15 = sadd.s32 1, %s11
  $region7: #{decoder_transformer_forward.1} parent=0 // loop_footer_branch
    %10 = sbr.rel target = $region3
  $region8: #{decoder_transformer_forward.1} parent=0 // loop_exit
    _

</llo_original>
